<compile_context>
chip_gen: v7x
topology: tpu7x:2x2x1
jax: 0.10.0
libtpu: 0.0.40
codegen_flags: <defaults>
</compile_context>

<pallas_src>
import functools
import itertools
from collections import namedtuple

import numpy as np
import jax
import jax.numpy as jnp
from jax import lax
from jax.experimental import pallas as pl
from jax.experimental.pallas import tpu as pltpu


PackedParams = namedtuple("PackedParams", ["w1", "b1", "w2", "b2", "seg"])


def _round_up(n, m):
    return ((n + m - 1) // m) * m


def _perm_sign(perm):
    inv = 0
    for a in range(len(perm)):
        for b in range(a + 1, len(perm)):
            inv += perm[a] > perm[b]
    return -1.0 if (inv % 2) else 1.0


def _det_from_packed(entries, offset, nf):
    """det of the nf x nf matrix lane-packed as entries[:, offset + i*nf + j]."""
    total = None
    for perm in itertools.permutations(range(nf)):
        c0 = offset + 0 * nf + perm[0]
        term = entries[:, c0:c0 + 1]
        for i in range(1, nf):
            c = offset + i * nf + perm[i]
            term = term * entries[:, c:c + 1]
        if _perm_sign(perm) < 0:
            term = -term
        total = term if total is None else total + term
    return total


def pack_spinsep_params(params, *, sys_size, num_fillings):
    """One-time packing of torch-layout params (hoisted out of the forward path).

    Returns lane-padded, spin-fused weights plus the constant segment-sum
    tensor used to reduce the masked backflow matrices to determinant entries.
    """
    nup, ndown = num_fillings
    S = sys_size
    w1u, b1u, w2u, b2u, w1d, b1d, w2d, b2d = [
        jnp.asarray(p, jnp.float32) for p in params]
    H = w1u.shape[1]
    R = nup + ndown
    W = R * S                          # fused second-layer logical width
    E = nup * nup + ndown * ndown      # number of determinant entries
    Hp = _round_up(2 * H, 128)         # lane-padded fused hidden width
    Wp = _round_up(W, 128)             # lane-padded second-layer width
    Ep = _round_up(E, 128)             # lane-padded entries width

    def col_major(w, nf):   # (., S*nf) row-major view -> (., nf*S) column-major view
        return w.reshape(-1, S, nf).transpose(0, 2, 1).reshape(-1, nf * S)

    # First layer: W1_up || W1_down (zero-padded to Hp lanes).
    w1 = jnp.zeros((2 * S, Hp), jnp.float32)
    w1 = w1.at[:, :H].set(w1u).at[:, H:2 * H].set(w1d)
    b1 = jnp.zeros((1, Hp), jnp.float32)
    b1 = b1.at[:, :H].set(b1u).at[:, H:2 * H].set(b1d)

    # Second layer: block-diagonal, column-major per branch, zero-padded.
    # out_all[b, j*S + s] = out_up[b, s, j] (down segments follow the up ones).
    w2 = jnp.zeros((Hp, Wp), jnp.float32)
    w2 = w2.at[:H, :nup * S].set(col_major(w2u, nup))
    w2 = w2.at[H:2 * H, nup * S:W].set(col_major(w2d, ndown))
    b2 = jnp.zeros((1, Wp), jnp.float32)
    b2 = b2.at[:, :W].set(jnp.concatenate(
        [col_major(b2u, nup), col_major(b2d, ndown)], axis=1))

    # Constant segment-sum tensor: one matmul per gathered matrix row r reduces
    # every S-wide segment (holding exactly one selected value) to its entry.
    # Columns for the wrong spin's segments and all padding lanes stay zero --
    # this preserves the implicit masking of cross-spin / padded selects.
    seg = np.zeros((R, Wp, Ep), np.float32)
    for r in range(R):                  # gathered matrix row (up rows, then down)
        for q in range(R):              # S-wide column segment inside out_all
            if r < nup and q < nup:
                k = r * nup + q                                 # up entry (i=r, j=q)
            elif r >= nup and q >= nup:
                k = nup * nup + (r - nup) * ndown + (q - nup)   # down entry
            else:
                continue
            seg[r, q * S:(q + 1) * S, k] = 1.0

    return PackedParams(w1, b1, w2, b2, jnp.asarray(seg))


def _make_kernel(sys_size, nup, ndown, w_pad):
    R = nup + ndown
    S = sys_size
    s_pow2 = (S & (S - 1)) == 0

    def kernel(x_ref, pos_ref, w1_ref, b1_ref, w2_ref, b2_ref, seg_ref, out_ref):
        bb = x_ref.shape[0]

        # --- fused two-branch MLP, f32 inputs / f32 MXU accumulation ---
        h = jnp.maximum(
            jnp.dot(x_ref[...], w1_ref[...], preferred_element_type=jnp.float32)
            + b1_ref[...], 0.0)                                           # (bb, Hp)
        out_all = (jnp.dot(h, w2_ref[...], preferred_element_type=jnp.float32)
                   + b2_ref[...])                                         # (bb, Wp)

        # --- vectorized gather of all determinant entries (no concat) ---
        pos = pos_ref[...]                                                # (bb, R)
        lane = lax.broadcasted_iota(jnp.int32, (bb, w_pad), 1)
        lane_in_seg = (lane & (S - 1)) if s_pow2 else (lane % S)

        ep = seg_ref.shape[-1]
        entries = jnp.zeros((bb, ep), jnp.float32)
        for r in range(R):              # one compare+select+small matmul per row
            masked = jnp.where(lane_in_seg == pos[:, r:r + 1], out_all, 0.0)
            entries = entries + jnp.dot(masked, seg_ref[r],
                                        preferred_element_type=jnp.float32)

        det_up = _det_from_packed(entries, 0, nup)
        det_dn = _det_from_packed(entries, nup * nup, ndown)
        out_ref[...] = det_up * det_dn

    return kernel


def spinsep_nnb_forward(config_fermion, position_fermion, packed, *,
                        sys_size, num_fillings, block_b=512):
    nup, ndown = num_fillings
    B = config_fermion.shape[0]
    block_b = min(block_b, B)
    assert B % block_b == 0, (B, block_b)
    S = sys_size
    R = nup + ndown
    Wp = packed.w2.shape[1]

    # Per-call glue: merged, sorted, offset-corrected positions (matches torch).
    pos_up = jnp.sort(position_fermion[:, :nup], axis=1)
    pos_dn = jnp.sort(position_fermion[:, nup:], axis=1) - S
    pos_all = jnp.concatenate([pos_up, pos_dn], axis=1).astype(jnp.int32)  # (B, R)
    x = config_fermion.astype(jnp.float32)

    const = lambda a: pl.BlockSpec(a.shape, lambda i, n=a.ndim: (0,) * n)

    out = pl.pallas_call(
        _make_kernel(S, nup, ndown, Wp),
        out_shape=jax.ShapeDtypeStruct((B, 1), jnp.float32),
        grid_spec=pltpu.PrefetchScalarGridSpec(
            num_scalar_prefetch=0,
            grid=(B // block_b,),
            in_specs=[
                pl.BlockSpec((block_b, 2 * S), lambda i: (i, 0)),   # x
                pl.BlockSpec((block_b, R), lambda i: (i, 0)),       # merged positions
                const(packed.w1), const(packed.b1),
                const(packed.w2), const(packed.b2),
                const(packed.seg),
            ],
            out_specs=pl.BlockSpec((block_b, 1), lambda i: (i, 0)),
        ),
        compiler_params=pltpu.CompilerParams(
            dimension_semantics=("parallel",)),
    )(x, pos_all, packed.w1, packed.b1, packed.w2, packed.b2, packed.seg)
    return out[:, 0]


def _reference_forward(config_fermion, position_fermion, params, *,
                       sys_size, num_fillings):
    """Pure-JAX f32 reference mirroring the PyTorch forward."""
    nup, ndown = num_fillings
    (w1u, b1u, w2u, b2u, w1d, b1d, w2d, b2d) = params
    hi = jax.lax.Precision.HIGHEST
    x = config_fermion.astype(jnp.float32)
    out_u = jnp.dot(jnp.maximum(jnp.dot(x, w1u, precision=hi) + b1u, 0.0), w2u,
                    precision=hi) + b2u
    out_d = jnp.dot(jnp.maximum(jnp.dot(x, w1d, precision=hi) + b1d, 0.0), w2d,
                    precision=hi) + b2d
    B = x.shape[0]
    out_u = out_u.reshape(B, sys_size, nup)
    out_d = out_d.reshape(B, sys_size, ndown)
    pos_up = jnp.sort(position_fermion[:, :nup], axis=1)
    pos_dn = jnp.sort(position_fermion[:, nup:], axis=1) - sys_size
    mu = jnp.take_along_axis(out_u, jnp.broadcast_to(pos_up[:, :, None], (B, nup, nup)), axis=1)
    md = jnp.take_along_axis(out_d, jnp.broadcast_to(pos_dn[:, :, None], (B, ndown, ndown)), axis=1)
    return jnp.linalg.det(mu) * jnp.linalg.det(md)


if __name__ == "__main__":
    sys_size = 16
    hidden_size = 32
    num_fillings = (2, 2)          # (Nup, Ndown)
    B = 1024                       # block_b=512 -> 2 parallel grid steps (both v7x TCs)
    nup, ndown = num_fillings

    key = jax.random.PRNGKey(0)
    kp, kpos = jax.random.split(key)
    kw = jax.random.split(kp, 8)
    scale = 0.1
    params = (
        scale * jax.random.normal(kw[0], (2 * sys_size, hidden_size), jnp.float32),
        scale * jax.random.normal(kw[1], (1, hidden_size), jnp.float32),
        scale * jax.random.normal(kw[2], (hidden_size, nup * sys_size), jnp.float32),
        scale * jax.random.normal(kw[3], (1, nup * sys_size), jnp.float32),
        scale * jax.random.normal(kw[4], (2 * sys_size, hidden_size), jnp.float32),
        scale * jax.random.normal(kw[5], (1, hidden_size), jnp.float32),
        scale * jax.random.normal(kw[6], (hidden_size, ndown * sys_size), jnp.float32),
        scale * jax.random.normal(kw[7], (1, ndown * sys_size), jnp.float32),
    )
    # Note: the torch module also defines p_neuron, which is unused in forward().

    def _one_batch_positions(k):
        ku, kd = jax.random.split(k)
        pu = jax.random.permutation(ku, sys_size)[:nup]
        pd = sys_size + jax.random.permutation(kd, sys_size)[:ndown]
        return jnp.concatenate([pu, pd]).astype(jnp.int32)

    position_fermion = jax.vmap(_one_batch_positions)(jax.random.split(kpos, B))  # (B, 4)
    config_fermion = jnp.zeros((B, 2 * sys_size), jnp.float32)
    config_fermion = config_fermion.at[jnp.arange(B)[:, None], position_fermion].set(1.0)

    # One-time packing (hoisted out of the forward path / sampling loop).
    packed = pack_spinsep_params(params, sys_size=sys_size, num_fillings=num_fillings)

    forward = jax.jit(functools.partial(
        spinsep_nnb_forward, sys_size=sys_size, num_fillings=num_fillings,
        block_b=512))

    out = jax.block_until_ready(forward(config_fermion, position_fermion, packed))
    assert out.shape == (B,)

    ref = _reference_forward(config_fermion, position_fermion, params,
                             sys_size=sys_size, num_fillings=num_fillings)
    # f32 kernel vs the f32 (torch: f64) reference, plus 2x2 determinant
    # cancellation on near-zero samples -> keep a moderate elementwise tolerance.
    assert jnp.allclose(out, ref, rtol=5e-2, atol=1e-3), (
        float(jnp.max(jnp.abs(out - ref))))
    # Norm-level check (dominated by large-magnitude samples): catches any
    # structural gather/layout/det bug while being insensitive to near-zero dets.
    assert float(jnp.linalg.norm(out - ref)) <= 5e-2 * float(jnp.linalg.norm(ref))

    print("KERNEL_OK")
</pallas_src>

<mosaic_0001>
module attributes {stable_mosaic.version = 11 : i64} {
  func.func @kernel(%arg0: i32, %arg1: memref<512x32xf32, #tpu.memory_space<vmem>>, %arg2: memref<512x4xi32, #tpu.memory_space<vmem>>, %arg3: memref<32x128xf32, #tpu.memory_space<vmem>>, %arg4: memref<1x128xf32, #tpu.memory_space<vmem>>, %arg5: memref<128x128xf32, #tpu.memory_space<vmem>>, %arg6: memref<1x128xf32, #tpu.memory_space<vmem>>, %arg7: memref<4x128x128xf32, #tpu.memory_space<vmem>>, %arg8: memref<512x1xf32, #tpu.memory_space<vmem>>) attributes {dimension_semantics = [#tpu.dimension_semantics<parallel>], iteration_bounds = array<i64: 2>, scalar_prefetch = 0 : i64, scratch_operands = 0 : i64, tpu.core_type = #tpu.core_type<tc>, window_params = [{transform_indices = @transform_0, window_bounds = array<i64: 512, 32>}, {transform_indices = @transform_1, window_bounds = array<i64: 512, 4>}, {pipeline_mode = #tpu.pipeline_mode<synchronous>, transform_indices = @transform_2, window_bounds = array<i64: 32, 128>}, {pipeline_mode = #tpu.pipeline_mode<synchronous>, transform_indices = @transform_3, window_bounds = array<i64: 1, 128>}, {pipeline_mode = #tpu.pipeline_mode<synchronous>, transform_indices = @transform_4, window_bounds = array<i64: 128, 128>}, {pipeline_mode = #tpu.pipeline_mode<synchronous>, transform_indices = @transform_5, window_bounds = array<i64: 1, 128>}, {pipeline_mode = #tpu.pipeline_mode<synchronous>, transform_indices = @transform_6, window_bounds = array<i64: 4, 128, 128>}, {transform_indices = @transform_7, window_bounds = array<i64: 512, 1>}]} {
    %c0 = arith.constant 0 : index
    %c0_0 = arith.constant 0 : index
    %0 = vector.load %arg1[%c0, %c0_0] : memref<512x32xf32, #tpu.memory_space<vmem>>, vector<512x32xf32>
    %c0_1 = arith.constant 0 : index
    %c0_2 = arith.constant 0 : index
    %1 = vector.load %arg3[%c0_1, %c0_2] : memref<32x128xf32, #tpu.memory_space<vmem>>, vector<32x128xf32>
    %cst = arith.constant dense<0.000000e+00> : vector<512x128xf32>
    %2 = tpu.matmul %0, %1, %cst {dimension_numbers = #tpu.dot_dimension_numbers<[1], [0], [0], [1], [0, 0, 1, 1], [], []>} : vector<512x32xf32>, vector<32x128xf32>, vector<512x128xf32> -> vector<512x128xf32>
    %c0_3 = arith.constant 0 : index
    %c0_4 = arith.constant 0 : index
    %3 = vector.load %arg4[%c0_3, %c0_4] : memref<1x128xf32, #tpu.memory_space<vmem>>, vector<1x128xf32>
    %4 = vector.broadcast %3 : vector<1x128xf32> to vector<512x128xf32>
    %5 = arith.addf %2, %4 : vector<512x128xf32>
    %cst_5 = arith.constant 0.000000e+00 : f32
    %6 = vector.broadcast %cst_5 : f32 to vector<512x128xf32>
    %7 = arith.maximumf %5, %6 : vector<512x128xf32>
    %c0_6 = arith.constant 0 : index
    %c0_7 = arith.constant 0 : index
    %8 = vector.load %arg5[%c0_6, %c0_7] : memref<128x128xf32, #tpu.memory_space<vmem>>, vector<128x128xf32>
    %cst_8 = arith.constant dense<0.000000e+00> : vector<512x128xf32>
    %9 = tpu.matmul %7, %8, %cst_8 {dimension_numbers = #tpu.dot_dimension_numbers<[1], [0], [0], [1], [0, 0, 1, 1], [], []>} : vector<512x128xf32>, vector<128x128xf32>, vector<512x128xf32> -> vector<512x128xf32>
    %c0_9 = arith.constant 0 : index
    %c0_10 = arith.constant 0 : index
    %10 = vector.load %arg6[%c0_9, %c0_10] : memref<1x128xf32, #tpu.memory_space<vmem>>, vector<1x128xf32>
    %11 = vector.broadcast %10 : vector<1x128xf32> to vector<512x128xf32>
    %12 = arith.addf %9, %11 : vector<512x128xf32>
    %c0_11 = arith.constant 0 : index
    %c0_12 = arith.constant 0 : index
    %13 = vector.load %arg2[%c0_11, %c0_12] : memref<512x4xi32, #tpu.memory_space<vmem>>, vector<512x4xi32>
    %14 = tpu.iota {dimensions = array<i32: 1>} : vector<512x128xi32>
    %c15_i32 = arith.constant 15 : i32
    %15 = vector.broadcast %c15_i32 : i32 to vector<512x128xi32>
    %16 = arith.andi %14, %15 : vector<512x128xi32>
    %cst_13 = arith.constant 0.000000e+00 : f32
    %17 = vector.broadcast %cst_13 : f32 to vector<512x128xf32>
    %18 = vector.extract_strided_slice %13 {offsets = [0, 0], sizes = [512, 1], strides = [1, 1]} : vector<512x4xi32> to vector<512x1xi32>
    %19 = vector.broadcast %18 : vector<512x1xi32> to vector<512x128xi32>
    %20 = arith.cmpi eq, %16, %19 : vector<512x128xi32>
    %cst_14 = arith.constant 0.000000e+00 : f32
    %21 = vector.broadcast %cst_14 : f32 to vector<512x128xf32>
    %22 = arith.select %20, %12, %21 : vector<512x128xi1>, vector<512x128xf32>
    %c0_15 = arith.constant 0 : index
    %c0_16 = arith.constant 0 : index
    %c0_17 = arith.constant 0 : index
    %23 = vector.load %arg7[%c0_15, %c0_16, %c0_17] : memref<4x128x128xf32, #tpu.memory_space<vmem>>, vector<1x128x128xf32>
    %24 = vector.shape_cast %23 : vector<1x128x128xf32> to vector<128x128xf32>
    %cst_18 = arith.constant dense<0.000000e+00> : vector<512x128xf32>
    %25 = tpu.matmul %22, %24, %cst_18 {dimension_numbers = #tpu.dot_dimension_numbers<[1], [0], [0], [1], [0, 0, 1, 1], [], []>} : vector<512x128xf32>, vector<128x128xf32>, vector<512x128xf32> -> vector<512x128xf32>
    %26 = arith.addf %17, %25 : vector<512x128xf32>
    %27 = vector.extract_strided_slice %13 {offsets = [0, 1], sizes = [512, 1], strides = [1, 1]} : vector<512x4xi32> to vector<512x1xi32>
    %28 = vector.broadcast %27 : vector<512x1xi32> to vector<512x128xi32>
    %29 = arith.cmpi eq, %16, %28 : vector<512x128xi32>
    %cst_19 = arith.constant 0.000000e+00 : f32
    %30 = vector.broadcast %cst_19 : f32 to vector<512x128xf32>
    %31 = arith.select %29, %12, %30 : vector<512x128xi1>, vector<512x128xf32>
    %c1 = arith.constant 1 : index
    %c0_20 = arith.constant 0 : index
    %c0_21 = arith.constant 0 : index
    %32 = vector.load %arg7[%c1, %c0_20, %c0_21] : memref<4x128x128xf32, #tpu.memory_space<vmem>>, vector<1x128x128xf32>
    %33 = vector.shape_cast %32 : vector<1x128x128xf32> to vector<128x128xf32>
    %cst_22 = arith.constant dense<0.000000e+00> : vector<512x128xf32>
    %34 = tpu.matmul %31, %33, %cst_22 {dimension_numbers = #tpu.dot_dimension_numbers<[1], [0], [0], [1], [0, 0, 1, 1], [], []>} : vector<512x128xf32>, vector<128x128xf32>, vector<512x128xf32> -> vector<512x128xf32>
    %35 = arith.addf %26, %34 : vector<512x128xf32>
    %36 = vector.extract_strided_slice %13 {offsets = [0, 2], sizes = [512, 1], strides = [1, 1]} : vector<512x4xi32> to vector<512x1xi32>
    %37 = vector.broadcast %36 : vector<512x1xi32> to vector<512x128xi32>
    %38 = arith.cmpi eq, %16, %37 : vector<512x128xi32>
    %cst_23 = arith.constant 0.000000e+00 : f32
    %39 = vector.broadcast %cst_23 : f32 to vector<512x128xf32>
    %40 = arith.select %38, %12, %39 : vector<512x128xi1>, vector<512x128xf32>
    %c2 = arith.constant 2 : index
    %c0_24 = arith.constant 0 : index
    %c0_25 = arith.constant 0 : index
    %41 = vector.load %arg7[%c2, %c0_24, %c0_25] : memref<4x128x128xf32, #tpu.memory_space<vmem>>, vector<1x128x128xf32>
    %42 = vector.shape_cast %41 : vector<1x128x128xf32> to vector<128x128xf32>
    %cst_26 = arith.constant dense<0.000000e+00> : vector<512x128xf32>
    %43 = tpu.matmul %40, %42, %cst_26 {dimension_numbers = #tpu.dot_dimension_numbers<[1], [0], [0], [1], [0, 0, 1, 1], [], []>} : vector<512x128xf32>, vector<128x128xf32>, vector<512x128xf32> -> vector<512x128xf32>
    %44 = arith.addf %35, %43 : vector<512x128xf32>
    %45 = vector.extract_strided_slice %13 {offsets = [0, 3], sizes = [512, 1], strides = [1, 1]} : vector<512x4xi32> to vector<512x1xi32>
    %46 = vector.broadcast %45 : vector<512x1xi32> to vector<512x128xi32>
    %47 = arith.cmpi eq, %16, %46 : vector<512x128xi32>
    %cst_27 = arith.constant 0.000000e+00 : f32
    %48 = vector.broadcast %cst_27 : f32 to vector<512x128xf32>
    %49 = arith.select %47, %12, %48 : vector<512x128xi1>, vector<512x128xf32>
    %c3 = arith.constant 3 : index
    %c0_28 = arith.constant 0 : index
    %c0_29 = arith.constant 0 : index
    %50 = vector.load %arg7[%c3, %c0_28, %c0_29] : memref<4x128x128xf32, #tpu.memory_space<vmem>>, vector<1x128x128xf32>
    %51 = vector.shape_cast %50 : vector<1x128x128xf32> to vector<128x128xf32>
    %cst_30 = arith.constant dense<0.000000e+00> : vector<512x128xf32>
    %52 = tpu.matmul %49, %51, %cst_30 {dimension_numbers = #tpu.dot_dimension_numbers<[1], [0], [0], [1], [0, 0, 1, 1], [], []>} : vector<512x128xf32>, vector<128x128xf32>, vector<512x128xf32> -> vector<512x128xf32>
    %53 = arith.addf %44, %52 : vector<512x128xf32>
    %54 = vector.extract_strided_slice %53 {offsets = [0, 0], sizes = [512, 1], strides = [1, 1]} : vector<512x128xf32> to vector<512x1xf32>
    %55 = vector.extract_strided_slice %53 {offsets = [0, 3], sizes = [512, 1], strides = [1, 1]} : vector<512x128xf32> to vector<512x1xf32>
    %56 = arith.mulf %54, %55 : vector<512x1xf32>
    %57 = vector.extract_strided_slice %53 {offsets = [0, 1], sizes = [512, 1], strides = [1, 1]} : vector<512x128xf32> to vector<512x1xf32>
    %58 = vector.extract_strided_slice %53 {offsets = [0, 2], sizes = [512, 1], strides = [1, 1]} : vector<512x128xf32> to vector<512x1xf32>
    %59 = arith.mulf %57, %58 : vector<512x1xf32>
    %cst_31 = arith.constant 0.000000e+00 : f32
    %60 = vector.broadcast %cst_31 : f32 to vector<512x1xf32>
    %61 = arith.subf %60, %59 : vector<512x1xf32>
    %62 = arith.addf %56, %61 : vector<512x1xf32>
    %63 = vector.extract_strided_slice %53 {offsets = [0, 4], sizes = [512, 1], strides = [1, 1]} : vector<512x128xf32> to vector<512x1xf32>
    %64 = vector.extract_strided_slice %53 {offsets = [0, 7], sizes = [512, 1], strides = [1, 1]} : vector<512x128xf32> to vector<512x1xf32>
    %65 = arith.mulf %63, %64 : vector<512x1xf32>
    %66 = vector.extract_strided_slice %53 {offsets = [0, 5], sizes = [512, 1], strides = [1, 1]} : vector<512x128xf32> to vector<512x1xf32>
    %67 = vector.extract_strided_slice %53 {offsets = [0, 6], sizes = [512, 1], strides = [1, 1]} : vector<512x128xf32> to vector<512x1xf32>
    %68 = arith.mulf %66, %67 : vector<512x1xf32>
    %cst_32 = arith.constant 0.000000e+00 : f32
    %69 = vector.broadcast %cst_32 : f32 to vector<512x1xf32>
    %70 = arith.subf %69, %68 : vector<512x1xf32>
    %71 = arith.addf %65, %70 : vector<512x1xf32>
    %72 = arith.mulf %62, %71 : vector<512x1xf32>
    %c0_33 = arith.constant 0 : index
    %c0_34 = arith.constant 0 : index
    %73 = vector.load %arg8[%c0_33, %c0_34] : memref<512x1xf32, #tpu.memory_space<vmem>>, vector<512x1xf32>
    tpu.vector_store %arg8[%c0_33, %c0_34], %72 {strides = array<i32>} : memref<512x1xf32, #tpu.memory_space<vmem>>, vector<512x1xf32>,
    return
  }
  func.func @transform_0(%arg0: i32) -> (i32, i32) {
    %c0_i32 = arith.constant 0 : i32
    %c0_i32_0 = arith.constant 0 : i32
    return %arg0, %c0_i32 : i32, i32
  }
  func.func @transform_1(%arg0: i32) -> (i32, i32) {
    %c0_i32 = arith.constant 0 : i32
    %c0_i32_0 = arith.constant 0 : i32
    return %arg0, %c0_i32 : i32, i32
  }
  func.func @transform_2(%arg0: i32) -> (i32, i32) {
    %c0_i32 = arith.constant 0 : i32
    %c0_i32_0 = arith.constant 0 : i32
    %c0_i32_1 = arith.constant 0 : i32
    return %c0_i32, %c0_i32_0 : i32, i32
  }
  func.func @transform_3(%arg0: i32) -> (i32, i32) {
    %c0_i32 = arith.constant 0 : i32
    %c0_i32_0 = arith.constant 0 : i32
    %c0_i32_1 = arith.constant 0 : i32
    return %c0_i32, %c0_i32_0 : i32, i32
  }
  func.func @transform_4(%arg0: i32) -> (i32, i32) {
    %c0_i32 = arith.constant 0 : i32
    %c0_i32_0 = arith.constant 0 : i32
    %c0_i32_1 = arith.constant 0 : i32
    return %c0_i32, %c0_i32_0 : i32, i32
  }
  func.func @transform_5(%arg0: i32) -> (i32, i32) {
    %c0_i32 = arith.constant 0 : i32
    %c0_i32_0 = arith.constant 0 : i32
    %c0_i32_1 = arith.constant 0 : i32
    return %c0_i32, %c0_i32_0 : i32, i32
  }
  func.func @transform_6(%arg0: i32) -> (i32, i32, i32) {
    %c0_i32 = arith.constant 0 : i32
    %c0_i32_0 = arith.constant 0 : i32
    %c0_i32_1 = arith.constant 0 : i32
    %c0_i32_2 = arith.constant 0 : i32
    return %c0_i32, %c0_i32_0, %c0_i32_1 : i32, i32, i32
  }
  func.func @transform_7(%arg0: i32) -> (i32, i32) {
    %c0_i32 = arith.constant 0 : i32
    %c0_i32_0 = arith.constant 0 : i32
    return %arg0, %c0_i32 : i32, i32
  }
}

</mosaic_0001>

<llo_original>
// kernel: spinsep_nnb_forward.1
$region0: #{spinsep_nnb_forward.1}
  #allocation0 [shape = 'u32[]', space=smem, size = 0x4, offset = 0x4, fixed_abs, tag = 'smem constant byte address 0x4 - core index']
  #allocation1 [shape = 'u32[144,128]{1,0:T(1,128)}', space=vmem, size = 0x12000, scoped, tag = 'internal scratch']
  %s0 = inlined_call_operand.vmem [shape: f32[1024,32], index: 0, kind: input, shape index: {}]
  %s1 = inlined_call_operand.vmem [shape: s32[1024,4], index: 1, kind: input, shape index: {}]
  %s2 = inlined_call_operand.vmem [shape: f32[32,128], index: 2, kind: input, shape index: {}]
  %s3 = inlined_call_operand.vmem [shape: f32[1,128], index: 3, kind: input, shape index: {}]
  %s4 = inlined_call_operand.vmem [shape: f32[128,128], index: 4, kind: input, shape index: {}]
  %s5 = inlined_call_operand.vmem [shape: f32[1,128], index: 5, kind: input, shape index: {}]
  %s6 = inlined_call_operand.vmem [shape: f32[4,128,128], index: 6, kind: input, shape index: {}]
  %s7 = inlined_call_operand.vmem [shape: f32[1024,1], index: 7, kind: output, shape index: {}]
  %s8 = sld [smem:[#allocation0]]
  $region61: #{spinsep_nnb_forward.1} parent=0
    _
  %s10 = ssub.s32 1, %s8
  %s11 = scalar_select 0, %s10, %s8
  loop: start=0, step=1, limit=4
  $region2: #{spinsep_nnb_forward.1} parent=0 // loop_pre_header
    _
  $region3: #{spinsep_nnb_forward.1} parent=0 // loop_header
    %s13 = sphi 0, %s17
    %p14 = scmp.ge.s32.totalorder %s13, 4
    %s23 = sphi 0, %s25
    %s26 = sphi 0, %s23
    %s27 = sphi 0, %s26
    %s43 = sphi 0, %s27
    %s49 = sphi 0, %s51
    %s52 = sphi 0, %s49
    %s53 = sphi 0, %s52
    %s69 = sphi 0, %s53
    %s73 = sphi 0, %s73
    %s75 = sphi 0, %s73
    %s76 = sphi 0, %s75
    %s90 = sphi 0, %s76
    %s94 = sphi 0, %s94
    %s96 = sphi 0, %s94
    %s97 = sphi 0, %s96
    %s111 = sphi 0, %s97
    %s115 = sphi 0, %s115
    %s117 = sphi 0, %s115
    %s118 = sphi 0, %s117
    %s132 = sphi 0, %s118
    %s136 = sphi 0, %s136
    %s138 = sphi 0, %s136
    %s139 = sphi 0, %s138
    %s153 = sphi 0, %s139
    %s157 = sphi 0, %s157
    %s159 = sphi 0, %s157
    %s160 = sphi 0, %s159
    %s174 = sphi 0, %s160
    %s180 = sphi 0, %s182
    %s183 = sphi 0, %s180
    %s184 = sphi 0, %s183
    %s200 = sphi 0, %s184
  $region4: #{spinsep_nnb_forward.1} parent=0 // loop_header_branch
    %16 = sbr.rel (%p14) target = $region8
  $region5: #{spinsep_nnb_forward.1} parent=0 // loop_body
    %s18 = ssub.s32 %s13, 1
    %s19 = ssub.s32 %s13, 2
    %s20 = sadd.s32 %s13, 1
    %s21 = ssub.s32 %s13, %s20
    %p22 = scmp.eq.s32.totalorder %s21, 0
    %s24 = sadd.s32 %s23, 1
    %s25 = scalar_select %p22, %s23, %s24
    %p28 = pneg %p22
    %p29 = scmp.eq.s32.totalorder %s13, 1
    %p30 = por %p28, %p29
    %p31 = scmp.ne.s32.totalorder %s23, %s26
    %p32 = scmp.eq.s32.totalorder %s13, 0
    %p33 = por %p31, %p32
    %p34 = scmp.ne.s32.totalorder %s23, %s26
    %p35 = scmp.eq.s32.totalorder %s18, 1
    %p36 = por %p34, %p35
    %p37 = scmp.ne.s32.totalorder %s26, %s27
    %p38 = scmp.eq.s32.totalorder %s18, 0
    %p39 = por %p37, %p38
    %p40 = scmp.ne.s32.totalorder %s26, %s27
    %p41 = scmp.eq.s32.totalorder %s19, 1
    %p42 = por %p40, %p41
    %p44 = scmp.ne.s32.totalorder %s27, %s43
    %p45 = scmp.eq.s32.totalorder %s19, 0
    %p46 = por %p44, %p45
    %s47 = ssub.s32 %s13, %s20
    %p48 = scmp.eq.s32.totalorder %s47, 0
    %s50 = sadd.s32 %s49, 1
    %s51 = scalar_select %p48, %s49, %s50
    %p54 = pneg %p48
    %p55 = scmp.eq.s32.totalorder %s13, 1
    %p56 = por %p54, %p55
    %p57 = scmp.ne.s32.totalorder %s49, %s52
    %p58 = scmp.eq.s32.totalorder %s13, 0
    %p59 = por %p57, %p58
    %p60 = scmp.ne.s32.totalorder %s49, %s52
    %p61 = scmp.eq.s32.totalorder %s18, 1
    %p62 = por %p60, %p61
    %p63 = scmp.ne.s32.totalorder %s52, %s53
    %p64 = scmp.eq.s32.totalorder %s18, 0
    %p65 = por %p63, %p64
    %p66 = scmp.ne.s32.totalorder %s52, %s53
    %p67 = scmp.eq.s32.totalorder %s19, 1
    %p68 = por %p66, %p67
    %p70 = scmp.ne.s32.totalorder %s53, %s69
    %p71 = scmp.eq.s32.totalorder %s19, 0
    %p72 = por %p70, %p71
    %s74 = sadd.s32 %s73, 1
    %p77 = scmp.eq.s32.totalorder %s13, 1
    %p78 = scmp.ne.s32.totalorder %s73, %s75
    %p79 = scmp.eq.s32.totalorder %s13, 0
    %p80 = por %p78, %p79
    %p81 = scmp.ne.s32.totalorder %s73, %s75
    %p82 = scmp.eq.s32.totalorder %s18, 1
    %p83 = por %p81, %p82
    %p84 = scmp.ne.s32.totalorder %s75, %s76
    %p85 = scmp.eq.s32.totalorder %s18, 0
    %p86 = por %p84, %p85
    %p87 = scmp.ne.s32.totalorder %s75, %s76
    %p88 = scmp.eq.s32.totalorder %s19, 1
    %p89 = por %p87, %p88
    %p91 = scmp.ne.s32.totalorder %s76, %s90
    %p92 = scmp.eq.s32.totalorder %s19, 0
    %p93 = por %p91, %p92
    %s95 = sadd.s32 %s94, 1
    %p98 = scmp.eq.s32.totalorder %s13, 1
    %p99 = scmp.ne.s32.totalorder %s94, %s96
    %p100 = scmp.eq.s32.totalorder %s13, 0
    %p101 = por %p99, %p100
    %p102 = scmp.ne.s32.totalorder %s94, %s96
    %p103 = scmp.eq.s32.totalorder %s18, 1
    %p104 = por %p102, %p103
    %p105 = scmp.ne.s32.totalorder %s96, %s97
    %p106 = scmp.eq.s32.totalorder %s18, 0
    %p107 = por %p105, %p106
    %p108 = scmp.ne.s32.totalorder %s96, %s97
    %p109 = scmp.eq.s32.totalorder %s19, 1
    %p110 = por %p108, %p109
    %p112 = scmp.ne.s32.totalorder %s97, %s111
    %p113 = scmp.eq.s32.totalorder %s19, 0
    %p114 = por %p112, %p113
    %s116 = sadd.s32 %s115, 1
    %p119 = scmp.eq.s32.totalorder %s13, 1
    %p120 = scmp.ne.s32.totalorder %s115, %s117
    %p121 = scmp.eq.s32.totalorder %s13, 0
    %p122 = por %p120, %p121
    %p123 = scmp.ne.s32.totalorder %s115, %s117
    %p124 = scmp.eq.s32.totalorder %s18, 1
    %p125 = por %p123, %p124
    %p126 = scmp.ne.s32.totalorder %s117, %s118
    %p127 = scmp.eq.s32.totalorder %s18, 0
    %p128 = por %p126, %p127
    %p129 = scmp.ne.s32.totalorder %s117, %s118
    %p130 = scmp.eq.s32.totalorder %s19, 1
    %p131 = por %p129, %p130
    %p133 = scmp.ne.s32.totalorder %s118, %s132
    %p134 = scmp.eq.s32.totalorder %s19, 0
    %p135 = por %p133, %p134
    %s137 = sadd.s32 %s136, 1
    %p140 = scmp.eq.s32.totalorder %s13, 1
    %p141 = scmp.ne.s32.totalorder %s136, %s138
    %p142 = scmp.eq.s32.totalorder %s13, 0
    %p143 = por %p141, %p142
    %p144 = scmp.ne.s32.totalorder %s136, %s138
    %p145 = scmp.eq.s32.totalorder %s18, 1
    %p146 = por %p144, %p145
    %p147 = scmp.ne.s32.totalorder %s138, %s139
    %p148 = scmp.eq.s32.totalorder %s18, 0
    %p149 = por %p147, %p148
    %p150 = scmp.ne.s32.totalorder %s138, %s139
    %p151 = scmp.eq.s32.totalorder %s19, 1
    %p152 = por %p150, %p151
    %p154 = scmp.ne.s32.totalorder %s139, %s153
    %p155 = scmp.eq.s32.totalorder %s19, 0
    %p156 = por %p154, %p155
    %s158 = sadd.s32 %s157, 1
    %p161 = scmp.eq.s32.totalorder %s13, 1
    %p162 = scmp.ne.s32.totalorder %s157, %s159
    %p163 = scmp.eq.s32.totalorder %s13, 0
    %p164 = por %p162, %p163
    %p165 = scmp.ne.s32.totalorder %s157, %s159
    %p166 = scmp.eq.s32.totalorder %s18, 1
    %p167 = por %p165, %p166
    %p168 = scmp.ne.s32.totalorder %s159, %s160
    %p169 = scmp.eq.s32.totalorder %s18, 0
    %p170 = por %p168, %p169
    %p171 = scmp.ne.s32.totalorder %s159, %s160
    %p172 = scmp.eq.s32.totalorder %s19, 1
    %p173 = por %p171, %p172
    %p175 = scmp.ne.s32.totalorder %s160, %s174
    %p176 = scmp.eq.s32.totalorder %s19, 0
    %p177 = por %p175, %p176
    %s178 = ssub.s32 %s13, %s20
    %p179 = scmp.eq.s32.totalorder %s178, 0
    %s181 = sadd.s32 %s180, 1
    %s182 = scalar_select %p179, %s180, %s181
    %p185 = pneg %p179
    %p186 = scmp.eq.s32.totalorder %s13, 1
    %p187 = por %p185, %p186
    %p188 = scmp.ne.s32.totalorder %s180, %s183
    %p189 = scmp.eq.s32.totalorder %s13, 0
    %p190 = por %p188, %p189
    %p191 = scmp.ne.s32.totalorder %s180, %s183
    %p192 = scmp.eq.s32.totalorder %s18, 1
    %p193 = por %p191, %p192
    %p194 = scmp.ne.s32.totalorder %s183, %s184
    %p195 = scmp.eq.s32.totalorder %s18, 0
    %p196 = por %p194, %p195
    %p197 = scmp.ne.s32.totalorder %s183, %s184
    %p198 = scmp.eq.s32.totalorder %s19, 1
    %p199 = por %p197, %p198
    %p201 = scmp.ne.s32.totalorder %s184, %s200
    %p202 = scmp.eq.s32.totalorder %s19, 0
    %p203 = por %p201, %p202
    %p204 = scmp.le.s32.totalorder 1, %s13
    %p205 = scmp.lt.s32.totalorder %s13, 3
    %p206 = pnand %p204, %p205
    %p207 = pneg %p206
    // Predicated region
    $region9: #{spinsep_nnb_forward.1} parent=5 // pred_check
      _
    $region10: #{spinsep_nnb_forward.1} parent=5 // pred_check_branch
      %209 = sbr.rel (%p206) target = $region12
    $region11: #{spinsep_nnb_forward.1} parent=5 // pred_region
      %s210 = ssub.s32 %s13, 1
      // Predicated region
      $region13: #{spinsep_nnb_forward.1} parent=11 // pred_check
        %p211 = pneg %p86
      $region14: #{spinsep_nnb_forward.1} parent=11 // pred_check_branch
        %213 = sbr.rel (%p211) target = $region16
      $region15: #{spinsep_nnb_forward.1} parent=11 // pred_region
        _
      $region16: #{spinsep_nnb_forward.1} parent=11 // pred_fallthru
        _
      // Predicated region
      $region17: #{spinsep_nnb_forward.1} parent=11 // pred_check
        %p214 = pneg %p107
      $region18: #{spinsep_nnb_forward.1} parent=11 // pred_check_branch
        %216 = sbr.rel (%p214) target = $region20
      $region19: #{spinsep_nnb_forward.1} parent=11 // pred_region
        _
      $region20: #{spinsep_nnb_forward.1} parent=11 // pred_fallthru
        _
      // Predicated region
      $region21: #{spinsep_nnb_forward.1} parent=11 // pred_check
        %p217 = pneg %p128
      $region22: #{spinsep_nnb_forward.1} parent=11 // pred_check_branch
        %219 = sbr.rel (%p217) target = $region24
      $region23: #{spinsep_nnb_forward.1} parent=11 // pred_region
        _
      $region24: #{spinsep_nnb_forward.1} parent=11 // pred_fallthru
        _
      // Predicated region
      $region25: #{spinsep_nnb_forward.1} parent=11 // pred_check
        %p220 = pneg %p149
      $region26: #{spinsep_nnb_forward.1} parent=11 // pred_check_branch
        %222 = sbr.rel (%p220) target = $region28
      $region27: #{spinsep_nnb_forward.1} parent=11 // pred_region
        _
      $region28: #{spinsep_nnb_forward.1} parent=11 // pred_fallthru
        _
      // Predicated region
      $region29: #{spinsep_nnb_forward.1} parent=11 // pred_check
        %p223 = pneg %p170
      $region30: #{spinsep_nnb_forward.1} parent=11 // pred_check_branch
        %225 = sbr.rel (%p223) target = $region32
      $region31: #{spinsep_nnb_forward.1} parent=11 // pred_region
        _
      $region32: #{spinsep_nnb_forward.1} parent=11 // pred_fallthru
        _
    $region12: #{spinsep_nnb_forward.1} parent=5 // pred_fallthru
      _
    %p226 = scmp.lt.s32.totalorder %s13, 2
    // Predicated region
    $region33: #{spinsep_nnb_forward.1} parent=5 // pred_check
      %p227 = pneg %p226
    $region34: #{spinsep_nnb_forward.1} parent=5 // pred_check_branch
      %229 = sbr.rel (%p227) target = $region36
    $region35: #{spinsep_nnb_forward.1} parent=5 // pred_region
      // Predicated region
      $region37: #{spinsep_nnb_forward.1} parent=35 // pred_check
        %p230 = pneg %p33
      $region38: #{spinsep_nnb_forward.1} parent=35 // pred_check_branch
        %232 = sbr.rel (%p230) target = $region40
      $region39: #{spinsep_nnb_forward.1} parent=35 // pred_region
        %s233 = smul.u32 64, %s13
        %p234 = scmp.lt.s32.totalorder %s233, 127
        %s235 = scalar_select %p234, %s233, 127
        %s236 = smul.addr %s235, 8
        %s237 = scalar_lea.vmem %s0, %s236
        %s238 = smul.u32 64, %s13
      $region40: #{spinsep_nnb_forward.1} parent=35 // pred_fallthru
        _
      // Predicated region
      $region41: #{spinsep_nnb_forward.1} parent=35 // pred_check
        %p239 = pneg %p59
      $region42: #{spinsep_nnb_forward.1} parent=35 // pred_check_branch
        %241 = sbr.rel (%p239) target = $region44
      $region43: #{spinsep_nnb_forward.1} parent=35 // pred_region
        %s242 = smul.u32 64, %s13
        %p243 = scmp.lt.s32.totalorder %s242, 127
        %s244 = scalar_select %p243, %s242, 127
        %s245 = smul.addr %s244, 8
        %s246 = scalar_lea.vmem %s1, %s245
        %s247 = smul.u32 64, %s13
      $region44: #{spinsep_nnb_forward.1} parent=35 // pred_fallthru
        _
    $region36: #{spinsep_nnb_forward.1} parent=5 // pred_fallthru
      _
    %p248 = scmp.le.s32.totalorder 1, %s13
    %p249 = scmp.lt.s32.totalorder %s13, 3
    %p250 = pnand %p248, %p249
    %p251 = pneg %p250
    // Predicated region
    $region45: #{spinsep_nnb_forward.1} parent=5 // pred_check
      _
    $region46: #{spinsep_nnb_forward.1} parent=5 // pred_check_branch
      %253 = sbr.rel (%p250) target = $region48
    $region47: #{spinsep_nnb_forward.1} parent=5 // pred_region
      %s254 = ssub.s32 %s13, 1
      %s255 = smul.u32 64, %s18
      %p256 = scmp.lt.s32.totalorder %s255, 127
      %s257 = scalar_select %p256, %s255, 127
      %s258 = smul.addr %s257, 8
      %s259 = scalar_lea.vmem %s0, %s258
      %p260 = pneg %p39
      %p261 = pneg %p36
      %s262 = smul.u32 64, %s18
      %p263 = scmp.lt.s32.totalorder %s262, 127
      %s264 = scalar_select %p263, %s262, 127
      %s265 = smul.addr %s264, 8
      %s266 = scalar_lea.vmem %s1, %s265
      %p267 = pneg %p65
      %p268 = pneg %p62
      %p269 = pneg %p86
      %p270 = pneg %p83
      %p271 = pneg %p107
      %p272 = pneg %p104
      %p273 = pneg %p128
      %p274 = pneg %p125
      %p275 = pneg %p149
      %p276 = pneg %p146
      %p277 = pneg %p170
      %p278 = pneg %p167
      %p279 = pneg %p196
      %p280 = pneg %p193
      %s281 = smul.u32 64, %s18
      %p282 = scmp.lt.s32.totalorder %s281, 127
      %s283 = scalar_select %p282, %s281, 127
      %s284 = smul.addr %s283, 8
      %s285 = scalar_lea.vmem %s7, %s284
      %s286 = smul.u32 64, %s18
      %p287 = scmp.lt.s32.totalorder %s286, 127
      %s288 = scalar_select %p287, %s286, 127
      %s289 = smul.addr %s288, 8
      %s290 = scalar_lea.vmem %s0, %s289
      %s291 = smul.u32 64, %s18
      %s292 = smul.u32 64, %s18
      %p293 = scmp.lt.s32.totalorder %s292, 127
      %s294 = scalar_select %p293, %s292, 127
      %s295 = smul.addr %s294, 8
      %s296 = scalar_lea.vmem %s1, %s295
      %s297 = smul.u32 64, %s18
      %s298 = smul.u32 64, %s18
      %p299 = scmp.lt.s32.totalorder %s298, 127
      %s300 = scalar_select %p299, %s298, 127
      %s301 = smul.addr %s300, 8
      %s302 = scalar_lea.vmem %s7, %s301
      %s303 = smul.u32 64, %s18
      %v304 = vld [vmem:[%s290] sm:$0xff]
      %v305 = vld [vmem:[%s290 + $0x8] sm:$0xff]
      %v306 = vld [vmem:[%s290 + $0x10] sm:$0xff]
      %v307 = vld [vmem:[%s290 + $0x18] sm:$0xff]
      %v308 = vld [vmem:[%s290 + $0x20] sm:$0xff]
      %v309 = vld [vmem:[%s290 + $0x28] sm:$0xff]
      %v310 = vld [vmem:[%s290 + $0x30] sm:$0xff]
      %v311 = vld [vmem:[%s290 + $0x38] sm:$0xff]
      %v312 = vld [vmem:[%s290 + $0x40] sm:$0xff]
      %v313 = vld [vmem:[%s290 + $0x48] sm:$0xff]
      %v314 = vld [vmem:[%s290 + $0x50] sm:$0xff]
      %v315 = vld [vmem:[%s290 + $0x58] sm:$0xff]
      %v316 = vld [vmem:[%s290 + $0x60] sm:$0xff]
      %v317 = vld [vmem:[%s290 + $0x68] sm:$0xff]
      %v318 = vld [vmem:[%s290 + $0x70] sm:$0xff]
      %v319 = vld [vmem:[%s290 + $0x78] sm:$0xff]
      %v320 = vld [vmem:[%s290 + $0x80] sm:$0xff]
      %v321 = vld [vmem:[%s290 + $0x88] sm:$0xff]
      %v322 = vld [vmem:[%s290 + $0x90] sm:$0xff]
      %v323 = vld [vmem:[%s290 + $0x98] sm:$0xff]
      %v324 = vld [vmem:[%s290 + $0xa0] sm:$0xff]
      %v325 = vld [vmem:[%s290 + $0xa8] sm:$0xff]
      %v326 = vld [vmem:[%s290 + $0xb0] sm:$0xff]
      %v327 = vld [vmem:[%s290 + $0xb8] sm:$0xff]
      %v328 = vld [vmem:[%s290 + $0xc0] sm:$0xff]
      %v329 = vld [vmem:[%s290 + $0xc8] sm:$0xff]
      %v330 = vld [vmem:[%s290 + $0xd0] sm:$0xff]
      %v331 = vld [vmem:[%s290 + $0xd8] sm:$0xff]
      %v332 = vld [vmem:[%s290 + $0xe0] sm:$0xff]
      %v333 = vld [vmem:[%s290 + $0xe8] sm:$0xff]
      %v334 = vld [vmem:[%s290 + $0xf0] sm:$0xff]
      %v335 = vld [vmem:[%s290 + $0xf8] sm:$0xff]
      %v336 = vld [vmem:[%s290 + $0x100] sm:$0xff]
      %v337 = vld [vmem:[%s290 + $0x108] sm:$0xff]
      %v338 = vld [vmem:[%s290 + $0x110] sm:$0xff]
      %v339 = vld [vmem:[%s290 + $0x118] sm:$0xff]
      %v340 = vld [vmem:[%s290 + $0x120] sm:$0xff]
      %v341 = vld [vmem:[%s290 + $0x128] sm:$0xff]
      %v342 = vld [vmem:[%s290 + $0x130] sm:$0xff]
      %v343 = vld [vmem:[%s290 + $0x138] sm:$0xff]
      %v344 = vld [vmem:[%s290 + $0x140] sm:$0xff]
      %v345 = vld [vmem:[%s290 + $0x148] sm:$0xff]
      %v346 = vld [vmem:[%s290 + $0x150] sm:$0xff]
      %v347 = vld [vmem:[%s290 + $0x158] sm:$0xff]
      %v348 = vld [vmem:[%s290 + $0x160] sm:$0xff]
      %v349 = vld [vmem:[%s290 + $0x168] sm:$0xff]
      %v350 = vld [vmem:[%s290 + $0x170] sm:$0xff]
      %v351 = vld [vmem:[%s290 + $0x178] sm:$0xff]
      %v352 = vld [vmem:[%s290 + $0x180] sm:$0xff]
      %v353 = vld [vmem:[%s290 + $0x188] sm:$0xff]
      %v354 = vld [vmem:[%s290 + $0x190] sm:$0xff]
      %v355 = vld [vmem:[%s290 + $0x198] sm:$0xff]
      %v356 = vld [vmem:[%s290 + $0x1a0] sm:$0xff]
      %v357 = vld [vmem:[%s290 + $0x1a8] sm:$0xff]
      %v358 = vld [vmem:[%s290 + $0x1b0] sm:$0xff]
      %v359 = vld [vmem:[%s290 + $0x1b8] sm:$0xff]
      %v360 = vld [vmem:[%s290 + $0x1c0] sm:$0xff]
      %v361 = vld [vmem:[%s290 + $0x1c8] sm:$0xff]
      %v362 = vld [vmem:[%s290 + $0x1d0] sm:$0xff]
      %v363 = vld [vmem:[%s290 + $0x1d8] sm:$0xff]
      %v364 = vld [vmem:[%s290 + $0x1e0] sm:$0xff]
      %v365 = vld [vmem:[%s290 + $0x1e8] sm:$0xff]
      %v366 = vld [vmem:[%s290 + $0x1f0] sm:$0xff]
      %v367 = vld [vmem:[%s290 + $0x1f8] sm:$0xff]
      %v368 = vld [vmem:[%s2] sm:$0xff]
      %v369 = vld [vmem:[%s2 + $0x8] sm:$0xff]
      %v370 = vld [vmem:[%s2 + $0x10] sm:$0xff]
      %v371 = vld [vmem:[%s2 + $0x18] sm:$0xff]
      %v372 = vld [vmem:[%s3] sm:$0x1]
      %v374 = vlaneseq
      %v375 = vshrl.u32 %v374, 7
      %v376 = vsub.s32 0, %v375
      %v377 = vrot.slane %v372, %v376
      %vm379 = vcmask 261120
      %v381 = vsel %vm379, %v304, 0
      %v384 = vsel %vm379, %v305, 0
      %v387 = vsel %vm379, %v306, 0
      %v390 = vsel %vm379, %v307, 0
      %v393 = vsel %vm379, %v308, 0
      %v396 = vsel %vm379, %v309, 0
      %v399 = vsel %vm379, %v310, 0
      %v402 = vsel %vm379, %v311, 0
      %v405 = vsel %vm379, %v312, 0
      %v408 = vsel %vm379, %v313, 0
      %v411 = vsel %vm379, %v314, 0
      %v414 = vsel %vm379, %v315, 0
      %v417 = vsel %vm379, %v316, 0
      %v420 = vsel %vm379, %v317, 0
      %v423 = vsel %vm379, %v318, 0
      %v426 = vsel %vm379, %v319, 0
      %v429 = vsel %vm379, %v320, 0
      %v432 = vsel %vm379, %v321, 0
      %v435 = vsel %vm379, %v322, 0
      %v438 = vsel %vm379, %v323, 0
      %v441 = vsel %vm379, %v324, 0
      %v444 = vsel %vm379, %v325, 0
      %v447 = vsel %vm379, %v326, 0
      %v450 = vsel %vm379, %v327, 0
      %v453 = vsel %vm379, %v328, 0
      %v456 = vsel %vm379, %v329, 0
      %v459 = vsel %vm379, %v330, 0
      %v462 = vsel %vm379, %v331, 0
      %v465 = vsel %vm379, %v332, 0
      %v468 = vsel %vm379, %v333, 0
      %v471 = vsel %vm379, %v334, 0
      %v474 = vsel %vm379, %v335, 0
      %v477 = vsel %vm379, %v336, 0
      %v480 = vsel %vm379, %v337, 0
      %v483 = vsel %vm379, %v338, 0
      %v486 = vsel %vm379, %v339, 0
      %v489 = vsel %vm379, %v340, 0
      %v492 = vsel %vm379, %v341, 0
      %v495 = vsel %vm379, %v342, 0
      %v498 = vsel %vm379, %v343, 0
      %v501 = vsel %vm379, %v344, 0
      %v504 = vsel %vm379, %v345, 0
      %v507 = vsel %vm379, %v346, 0
      %v510 = vsel %vm379, %v347, 0
      %v513 = vsel %vm379, %v348, 0
      %v516 = vsel %vm379, %v349, 0
      %v519 = vsel %vm379, %v350, 0
      %v522 = vsel %vm379, %v351, 0
      %v525 = vsel %vm379, %v352, 0
      %v528 = vsel %vm379, %v353, 0
      %v531 = vsel %vm379, %v354, 0
      %v534 = vsel %vm379, %v355, 0
      %v537 = vsel %vm379, %v356, 0
      %v540 = vsel %vm379, %v357, 0
      %v543 = vsel %vm379, %v358, 0
      %v546 = vsel %vm379, %v359, 0
      %v549 = vsel %vm379, %v360, 0
      %v552 = vsel %vm379, %v361, 0
      %v555 = vsel %vm379, %v362, 0
      %v558 = vsel %vm379, %v363, 0
      %v561 = vsel %vm379, %v364, 0
      %v564 = vsel %vm379, %v365, 0
      %v567 = vsel %vm379, %v366, 0
      %v570 = vsel %vm379, %v367, 0
      %572 = vmatprep.subr.mxu0 0.0
      %573 = vmatpush1.msra.mxu0 %v368
      %574 = vmatprep.subr.mxu0 0.0
      %575 = vmatpush1.msra.mxu0 %v369
      %576 = vmatprep.subr.mxu0 0.0
      %577 = vmatpush1.msra.mxu0 %v370
      %578 = vmatprep.subr.mxu0 0.0
      %579 = vmatpush1.msra.mxu0 %v371
      %580 = vmatprep.subr.mxu0 0.0
      %581 = vmatpush1.msra.mxu0 0.0
      %582 = vmatprep.subr.mxu0 0.0
      %583 = vmatpush1.msra.mxu0 0.0
      %584 = vmatprep.subr.mxu0 0.0
      %585 = vmatpush1.msra.mxu0 0.0
      %586 = vmatprep.subr.mxu0 0.0
      %587 = vmatpush1.msra.mxu0 0.0
      %588 = vmatprep.subr.mxu0 0.0
      %589 = vmatpush1.msra.mxu0 0.0
      %590 = vmatprep.subr.mxu0 0.0
      %591 = vmatpush1.msra.mxu0 0.0
      %592 = vmatprep.subr.mxu0 0.0
      %593 = vmatpush1.msra.mxu0 0.0
      %594 = vmatprep.subr.mxu0 0.0
      %595 = vmatpush1.msra.mxu0 0.0
      %596 = vmatprep.subr.mxu0 0.0
      %597 = vmatpush1.msra.mxu0 0.0
      %598 = vmatprep.subr.mxu0 0.0
      %599 = vmatpush1.msra.mxu0 0.0
      %600 = vmatprep.subr.mxu0 0.0
      %601 = vmatpush1.msra.mxu0 0.0
      %602 = vmatprep.subr.mxu0 0.0
      %603 = vmatpush1.msra.mxu0 0.0
      %604 = vmatprep.subr.mxu0 0.0
      %605 = vmatpush1.msra.mxu0 0.0
      %606 = vmatprep.subr.mxu0 0.0
      %607 = vmatpush1.msra.mxu0 0.0
      %608 = vmatprep.subr.mxu0 0.0
      %609 = vmatpush1.msra.mxu0 0.0
      %610 = vmatprep.subr.mxu0 0.0
      %611 = vmatpush1.msra.mxu0 0.0
      %612 = vmatprep.subr.mxu0 0.0
      %613 = vmatpush1.msra.mxu0 0.0
      %614 = vmatprep.subr.mxu0 0.0
      %615 = vmatpush1.msra.mxu0 0.0
      %616 = vmatprep.subr.mxu0 0.0
      %617 = vmatpush1.msra.mxu0 0.0
      %618 = vmatprep.subr.mxu0 0.0
      %619 = vmatpush1.msra.mxu0 0.0
      %620 = vmatprep.subr.mxu0 0.0
      %621 = vmatpush1.msra.mxu0 0.0
      %622 = vmatprep.subr.mxu0 0.0
      %623 = vmatpush1.msra.mxu0 0.0
      %624 = vmatprep.subr.mxu0 0.0
      %625 = vmatpush1.msra.mxu0 0.0
      %626 = vmatprep.subr.mxu0 0.0
      %627 = vmatpush1.msra.mxu0 0.0
      %628 = vmatprep.subr.mxu0 0.0
      %629 = vmatpush1.msra.mxu0 0.0
      %630 = vmatprep.subr.mxu0 0.0
      %631 = vmatpush1.msra.mxu0 0.0
      %632 = vmatprep.subr.mxu0 0.0
      %633 = vmatpush1.msra.mxu0 0.0
      %634 = vmatprep.subr.mxu0 0.0
      %635 = vmatpush1.msra.mxu0 0.0
      %636 = vmatprep.mubr.f32.mxu0 0.0
      %637 = vmatmul.mubr.f32.gmra.mrb[0].mxu0 %v381
      %v638 = vpop.f32.mrb[0].mxu0
      %v639 = vadd.f32 %v377, %v638
      %v640 = vpop.f32.mrb[0].mxu0
      %641 = vmatprep.mubr.f32.mxu0 0.0
      %642 = vmatmul.mubr.f32.gmra.mrb[0].mxu0 %v384
      %v643 = vpop.f32.mrb[0].mxu0
      %v644 = vadd.f32 %v377, %v643
      %v645 = vpop.f32.mrb[0].mxu0
      %646 = vmatprep.mubr.f32.mxu0 0.0
      %647 = vmatmul.mubr.f32.gmra.mrb[0].mxu0 %v387
      %v648 = vpop.f32.mrb[0].mxu0
      %v649 = vadd.f32 %v377, %v648
      %v650 = vpop.f32.mrb[0].mxu0
      %651 = vmatprep.mubr.f32.mxu0 0.0
      %652 = vmatmul.mubr.f32.gmra.mrb[0].mxu0 %v390
      %v653 = vpop.f32.mrb[0].mxu0
      %v654 = vadd.f32 %v377, %v653
      %v655 = vpop.f32.mrb[0].mxu0
      %656 = vmatprep.mubr.f32.mxu0 0.0
      %657 = vmatmul.mubr.f32.gmra.mrb[0].mxu0 %v393
      %v658 = vpop.f32.mrb[0].mxu0
      %v659 = vadd.f32 %v377, %v658
      %v660 = vpop.f32.mrb[0].mxu0
      %661 = vmatprep.mubr.f32.mxu0 0.0
      %662 = vmatmul.mubr.f32.gmra.mrb[0].mxu0 %v396
      %v663 = vpop.f32.mrb[0].mxu0
      %v664 = vadd.f32 %v377, %v663
      %v665 = vpop.f32.mrb[0].mxu0
      %666 = vmatprep.mubr.f32.mxu0 0.0
      %667 = vmatmul.mubr.f32.gmra.mrb[0].mxu0 %v399
      %v668 = vpop.f32.mrb[0].mxu0
      %v669 = vadd.f32 %v377, %v668
      %v670 = vpop.f32.mrb[0].mxu0
      %671 = vmatprep.mubr.f32.mxu0 0.0
      %672 = vmatmul.mubr.f32.gmra.mrb[0].mxu0 %v402
      %v673 = vpop.f32.mrb[0].mxu0
      %v674 = vadd.f32 %v377, %v673
      %v675 = vpop.f32.mrb[0].mxu0
      %676 = vmatprep.mubr.f32.mxu0 0.0
      %677 = vmatmul.mubr.f32.gmra.mrb[0].mxu0 %v405
      %v678 = vpop.f32.mrb[0].mxu0
      %v679 = vadd.f32 %v377, %v678
      %v680 = vpop.f32.mrb[0].mxu0
      %681 = vmatprep.mubr.f32.mxu0 0.0
      %682 = vmatmul.mubr.f32.gmra.mrb[0].mxu0 %v408
      %v683 = vpop.f32.mrb[0].mxu0
      %v684 = vadd.f32 %v377, %v683
      %v685 = vpop.f32.mrb[0].mxu0
      %686 = vmatprep.mubr.f32.mxu0 0.0
      %687 = vmatmul.mubr.f32.gmra.mrb[0].mxu0 %v411
      %v688 = vpop.f32.mrb[0].mxu0
      %v689 = vadd.f32 %v377, %v688
      %v690 = vpop.f32.mrb[0].mxu0
      %691 = vmatprep.mubr.f32.mxu0 0.0
      %692 = vmatmul.mubr.f32.gmra.mrb[0].mxu0 %v414
      %v693 = vpop.f32.mrb[0].mxu0
      %v694 = vadd.f32 %v377, %v693
      %v695 = vpop.f32.mrb[0].mxu0
      %696 = vmatprep.mubr.f32.mxu0 0.0
      %697 = vmatmul.mubr.f32.gmra.mrb[0].mxu0 %v417
      %v698 = vpop.f32.mrb[0].mxu0
      %v699 = vadd.f32 %v377, %v698
      %v700 = vpop.f32.mrb[0].mxu0
      %701 = vmatprep.mubr.f32.mxu0 0.0
      %702 = vmatmul.mubr.f32.gmra.mrb[0].mxu0 %v420
      %v703 = vpop.f32.mrb[0].mxu0
      %v704 = vadd.f32 %v377, %v703
      %v705 = vpop.f32.mrb[0].mxu0
      %706 = vmatprep.mubr.f32.mxu0 0.0
      %707 = vmatmul.mubr.f32.gmra.mrb[0].mxu0 %v423
      %v708 = vpop.f32.mrb[0].mxu0
      %v709 = vadd.f32 %v377, %v708
      %v710 = vpop.f32.mrb[0].mxu0
      %711 = vmatprep.mubr.f32.mxu0 0.0
      %712 = vmatmul.mubr.f32.gmra.mrb[0].mxu0 %v426
      %v713 = vpop.f32.mrb[0].mxu0
      %v714 = vadd.f32 %v377, %v713
      %v715 = vpop.f32.mrb[0].mxu0
      %716 = vmatprep.mubr.f32.mxu0 0.0
      %717 = vmatmul.mubr.f32.gmra.mrb[0].mxu0 %v429
      %v718 = vpop.f32.mrb[0].mxu0
      %v719 = vadd.f32 %v377, %v718
      %v720 = vpop.f32.mrb[0].mxu0
      %721 = vmatprep.mubr.f32.mxu0 0.0
      %722 = vmatmul.mubr.f32.gmra.mrb[0].mxu0 %v432
      %v723 = vpop.f32.mrb[0].mxu0
      %v724 = vadd.f32 %v377, %v723
      %v725 = vpop.f32.mrb[0].mxu0
      %726 = vmatprep.mubr.f32.mxu0 0.0
      %727 = vmatmul.mubr.f32.gmra.mrb[0].mxu0 %v435
      %v728 = vpop.f32.mrb[0].mxu0
      %v729 = vadd.f32 %v377, %v728
      %v730 = vpop.f32.mrb[0].mxu0
      %731 = vmatprep.mubr.f32.mxu0 0.0
      %732 = vmatmul.mubr.f32.gmra.mrb[0].mxu0 %v438
      %v733 = vpop.f32.mrb[0].mxu0
      %v734 = vadd.f32 %v377, %v733
      %v735 = vpop.f32.mrb[0].mxu0
      %736 = vmatprep.mubr.f32.mxu0 0.0
      %737 = vmatmul.mubr.f32.gmra.mrb[0].mxu0 %v441
      %v738 = vpop.f32.mrb[0].mxu0
      %v739 = vadd.f32 %v377, %v738
      %v740 = vpop.f32.mrb[0].mxu0
      %741 = vmatprep.mubr.f32.mxu0 0.0
      %742 = vmatmul.mubr.f32.gmra.mrb[0].mxu0 %v444
      %v743 = vpop.f32.mrb[0].mxu0
      %v744 = vadd.f32 %v377, %v743
      %v745 = vpop.f32.mrb[0].mxu0
      %746 = vmatprep.mubr.f32.mxu0 0.0
      %747 = vmatmul.mubr.f32.gmra.mrb[0].mxu0 %v447
      %v748 = vpop.f32.mrb[0].mxu0
      %v749 = vadd.f32 %v377, %v748
      %v750 = vpop.f32.mrb[0].mxu0
      %751 = vmatprep.mubr.f32.mxu0 0.0
      %752 = vmatmul.mubr.f32.gmra.mrb[0].mxu0 %v450
      %v753 = vpop.f32.mrb[0].mxu0
      %v754 = vadd.f32 %v377, %v753
      %v755 = vpop.f32.mrb[0].mxu0
      %756 = vmatprep.mubr.f32.mxu0 0.0
      %757 = vmatmul.mubr.f32.gmra.mrb[0].mxu0 %v453
      %v758 = vpop.f32.mrb[0].mxu0
      %v759 = vadd.f32 %v377, %v758
      %v760 = vpop.f32.mrb[0].mxu0
      %761 = vmatprep.mubr.f32.mxu0 0.0
      %762 = vmatmul.mubr.f32.gmra.mrb[0].mxu0 %v456
      %v763 = vpop.f32.mrb[0].mxu0
      %v764 = vadd.f32 %v377, %v763
      %v765 = vpop.f32.mrb[0].mxu0
      %766 = vmatprep.mubr.f32.mxu0 0.0
      %767 = vmatmul.mubr.f32.gmra.mrb[0].mxu0 %v459
      %v768 = vpop.f32.mrb[0].mxu0
      %v769 = vadd.f32 %v377, %v768
      %v770 = vpop.f32.mrb[0].mxu0
      %771 = vmatprep.mubr.f32.mxu0 0.0
      %772 = vmatmul.mubr.f32.gmra.mrb[0].mxu0 %v462
      %v773 = vpop.f32.mrb[0].mxu0
      %v774 = vadd.f32 %v377, %v773
      %v775 = vpop.f32.mrb[0].mxu0
      %776 = vmatprep.mubr.f32.mxu0 0.0
      %777 = vmatmul.mubr.f32.gmra.mrb[0].mxu0 %v465
      %v778 = vpop.f32.mrb[0].mxu0
      %v779 = vadd.f32 %v377, %v778
      %v780 = vpop.f32.mrb[0].mxu0
      %781 = vmatprep.mubr.f32.mxu0 0.0
      %782 = vmatmul.mubr.f32.gmra.mrb[0].mxu0 %v468
      %v783 = vpop.f32.mrb[0].mxu0
      %v784 = vadd.f32 %v377, %v783
      %v785 = vpop.f32.mrb[0].mxu0
      %786 = vmatprep.mubr.f32.mxu0 0.0
      %787 = vmatmul.mubr.f32.gmra.mrb[0].mxu0 %v471
      %v788 = vpop.f32.mrb[0].mxu0
      %v789 = vadd.f32 %v377, %v788
      %v790 = vpop.f32.mrb[0].mxu0
      %791 = vmatprep.mubr.f32.mxu0 0.0
      %792 = vmatmul.mubr.f32.gmra.mrb[0].mxu0 %v474
      %v793 = vpop.f32.mrb[0].mxu0
      %v794 = vadd.f32 %v377, %v793
      %v795 = vpop.f32.mrb[0].mxu0
      %796 = vmatprep.mubr.f32.mxu0 0.0
      %797 = vmatmul.mubr.f32.gmra.mrb[0].mxu0 %v477
      %v798 = vpop.f32.mrb[0].mxu0
      %v799 = vadd.f32 %v377, %v798
      %v800 = vpop.f32.mrb[0].mxu0
      %801 = vmatprep.mubr.f32.mxu0 0.0
      %802 = vmatmul.mubr.f32.gmra.mrb[0].mxu0 %v480
      %v803 = vpop.f32.mrb[0].mxu0
      %v804 = vadd.f32 %v377, %v803
      %v805 = vpop.f32.mrb[0].mxu0
      %806 = vmatprep.mubr.f32.mxu0 0.0
      %807 = vmatmul.mubr.f32.gmra.mrb[0].mxu0 %v483
      %v808 = vpop.f32.mrb[0].mxu0
      %v809 = vadd.f32 %v377, %v808
      %v810 = vpop.f32.mrb[0].mxu0
      %811 = vmatprep.mubr.f32.mxu0 0.0
      %812 = vmatmul.mubr.f32.gmra.mrb[0].mxu0 %v486
      %v813 = vpop.f32.mrb[0].mxu0
      %v814 = vadd.f32 %v377, %v813
      %v815 = vpop.f32.mrb[0].mxu0
      %816 = vmatprep.mubr.f32.mxu0 0.0
      %817 = vmatmul.mubr.f32.gmra.mrb[0].mxu0 %v489
      %v818 = vpop.f32.mrb[0].mxu0
      %v819 = vadd.f32 %v377, %v818
      %v820 = vpop.f32.mrb[0].mxu0
      %821 = vmatprep.mubr.f32.mxu0 0.0
      %822 = vmatmul.mubr.f32.gmra.mrb[0].mxu0 %v492
      %v823 = vpop.f32.mrb[0].mxu0
      %v824 = vadd.f32 %v377, %v823
      %v825 = vpop.f32.mrb[0].mxu0
      %826 = vmatprep.mubr.f32.mxu0 0.0
      %827 = vmatmul.mubr.f32.gmra.mrb[0].mxu0 %v495
      %v828 = vpop.f32.mrb[0].mxu0
      %v829 = vadd.f32 %v377, %v828
      %v830 = vpop.f32.mrb[0].mxu0
      %831 = vmatprep.mubr.f32.mxu0 0.0
      %832 = vmatmul.mubr.f32.gmra.mrb[0].mxu0 %v498
      %v833 = vpop.f32.mrb[0].mxu0
      %v834 = vadd.f32 %v377, %v833
      %v835 = vpop.f32.mrb[0].mxu0
      %836 = vmatprep.mubr.f32.mxu0 0.0
      %837 = vmatmul.mubr.f32.gmra.mrb[0].mxu0 %v501
      %v838 = vpop.f32.mrb[0].mxu0
      %v839 = vadd.f32 %v377, %v838
      %v840 = vpop.f32.mrb[0].mxu0
      %841 = vmatprep.mubr.f32.mxu0 0.0
      %842 = vmatmul.mubr.f32.gmra.mrb[0].mxu0 %v504
      %v843 = vpop.f32.mrb[0].mxu0
      %v844 = vadd.f32 %v377, %v843
      %v845 = vpop.f32.mrb[0].mxu0
      %846 = vmatprep.mubr.f32.mxu0 0.0
      %847 = vmatmul.mubr.f32.gmra.mrb[0].mxu0 %v507
      %v848 = vpop.f32.mrb[0].mxu0
      %v849 = vadd.f32 %v377, %v848
      %v850 = vpop.f32.mrb[0].mxu0
      %851 = vmatprep.mubr.f32.mxu0 0.0
      %852 = vmatmul.mubr.f32.gmra.mrb[0].mxu0 %v510
      %v853 = vpop.f32.mrb[0].mxu0
      %v854 = vadd.f32 %v377, %v853
      %v855 = vpop.f32.mrb[0].mxu0
      %856 = vmatprep.mubr.f32.mxu0 0.0
      %857 = vmatmul.mubr.f32.gmra.mrb[0].mxu0 %v513
      %v858 = vpop.f32.mrb[0].mxu0
      %v859 = vadd.f32 %v377, %v858
      %v860 = vpop.f32.mrb[0].mxu0
      %861 = vmatprep.mubr.f32.mxu0 0.0
      %862 = vmatmul.mubr.f32.gmra.mrb[0].mxu0 %v516
      %v863 = vpop.f32.mrb[0].mxu0
      %v864 = vadd.f32 %v377, %v863
      %v865 = vpop.f32.mrb[0].mxu0
      %866 = vmatprep.mubr.f32.mxu0 0.0
      %867 = vmatmul.mubr.f32.gmra.mrb[0].mxu0 %v519
      %v868 = vpop.f32.mrb[0].mxu0
      %v869 = vadd.f32 %v377, %v868
      %v870 = vpop.f32.mrb[0].mxu0
      %871 = vmatprep.mubr.f32.mxu0 0.0
      %872 = vmatmul.mubr.f32.gmra.mrb[0].mxu0 %v522
      %v873 = vpop.f32.mrb[0].mxu0
      %v874 = vadd.f32 %v377, %v873
      %v875 = vpop.f32.mrb[0].mxu0
      %876 = vmatprep.mubr.f32.mxu0 0.0
      %877 = vmatmul.mubr.f32.gmra.mrb[0].mxu0 %v525
      %v878 = vpop.f32.mrb[0].mxu0
      %v879 = vadd.f32 %v377, %v878
      %v880 = vpop.f32.mrb[0].mxu0
      %881 = vmatprep.mubr.f32.mxu0 0.0
      %882 = vmatmul.mubr.f32.gmra.mrb[0].mxu0 %v528
      %v883 = vpop.f32.mrb[0].mxu0
      %v884 = vadd.f32 %v377, %v883
      %v885 = vpop.f32.mrb[0].mxu0
      %886 = vmatprep.mubr.f32.mxu0 0.0
      %887 = vmatmul.mubr.f32.gmra.mrb[0].mxu0 %v531
      %v888 = vpop.f32.mrb[0].mxu0
      %v889 = vadd.f32 %v377, %v888
      %v890 = vpop.f32.mrb[0].mxu0
      %891 = vmatprep.mubr.f32.mxu0 0.0
      %892 = vmatmul.mubr.f32.gmra.mrb[0].mxu0 %v534
      %v893 = vpop.f32.mrb[0].mxu0
      %v894 = vadd.f32 %v377, %v893
      %v895 = vpop.f32.mrb[0].mxu0
      %896 = vmatprep.mubr.f32.mxu0 0.0
      %897 = vmatmul.mubr.f32.gmra.mrb[0].mxu0 %v537
      %v898 = vpop.f32.mrb[0].mxu0
      %v899 = vadd.f32 %v377, %v898
      %v900 = vpop.f32.mrb[0].mxu0
      %901 = vmatprep.mubr.f32.mxu0 0.0
      %902 = vmatmul.mubr.f32.gmra.mrb[0].mxu0 %v540
      %v903 = vpop.f32.mrb[0].mxu0
      %v904 = vadd.f32 %v377, %v903
      %v905 = vpop.f32.mrb[0].mxu0
      %906 = vmatprep.mubr.f32.mxu0 0.0
      %907 = vmatmul.mubr.f32.gmra.mrb[0].mxu0 %v543
      %v908 = vpop.f32.mrb[0].mxu0
      %v909 = vadd.f32 %v377, %v908
      %v910 = vpop.f32.mrb[0].mxu0
      %911 = vmatprep.mubr.f32.mxu0 0.0
      %912 = vmatmul.mubr.f32.gmra.mrb[0].mxu0 %v546
      %v913 = vpop.f32.mrb[0].mxu0
      %v914 = vadd.f32 %v377, %v913
      %v915 = vpop.f32.mrb[0].mxu0
      %916 = vmatprep.mubr.f32.mxu0 0.0
      %917 = vmatmul.mubr.f32.gmra.mrb[0].mxu0 %v549
      %v918 = vpop.f32.mrb[0].mxu0
      %v919 = vadd.f32 %v377, %v918
      %v920 = vpop.f32.mrb[0].mxu0
      %921 = vmatprep.mubr.f32.mxu0 0.0
      %922 = vmatmul.mubr.f32.gmra.mrb[0].mxu0 %v552
      %v923 = vpop.f32.mrb[0].mxu0
      %v924 = vadd.f32 %v377, %v923
      %v925 = vpop.f32.mrb[0].mxu0
      %926 = vmatprep.mubr.f32.mxu0 0.0
      %927 = vmatmul.mubr.f32.gmra.mrb[0].mxu0 %v555
      %v928 = vpop.f32.mrb[0].mxu0
      %v929 = vadd.f32 %v377, %v928
      %v930 = vpop.f32.mrb[0].mxu0
      %931 = vmatprep.mubr.f32.mxu0 0.0
      %932 = vmatmul.mubr.f32.gmra.mrb[0].mxu0 %v558
      %v933 = vpop.f32.mrb[0].mxu0
      %v934 = vadd.f32 %v377, %v933
      %v935 = vpop.f32.mrb[0].mxu0
      %936 = vmatprep.mubr.f32.mxu0 0.0
      %937 = vmatmul.mubr.f32.gmra.mrb[0].mxu0 %v561
      %v938 = vpop.f32.mrb[0].mxu0
      %v939 = vadd.f32 %v377, %v938
      %v940 = vpop.f32.mrb[0].mxu0
      %941 = vmatprep.mubr.f32.mxu0 0.0
      %942 = vmatmul.mubr.f32.gmra.mrb[0].mxu0 %v564
      %v943 = vpop.f32.mrb[0].mxu0
      %v944 = vadd.f32 %v377, %v943
      %v945 = vpop.f32.mrb[0].mxu0
      %946 = vmatprep.mubr.f32.mxu0 0.0
      %947 = vmatmul.mubr.f32.gmra.mrb[0].mxu0 %v567
      %v948 = vpop.f32.mrb[0].mxu0
      %v949 = vadd.f32 %v377, %v948
      %v950 = vpop.f32.mrb[0].mxu0
      %951 = vmatprep.mubr.f32.mxu0 0.0
      %952 = vmatmul.mubr.f32.gmra.mrb[0].mxu0 %v570
      %v953 = vpop.f32.mrb[0].mxu0
      %v954 = vadd.f32 %v377, %v953
      %v955 = vpop.f32.mrb[0].mxu0
      %956 = vdwg.mxu0
      %v957 = vmax.f32 %v639, 0.0
      %v958 = vmax.f32 %v644, 0.0
      %v959 = vmax.f32 %v649, 0.0
      %v960 = vmax.f32 %v654, 0.0
      %v961 = vmax.f32 %v659, 0.0
      %v962 = vmax.f32 %v664, 0.0
      %v963 = vmax.f32 %v669, 0.0
      %v964 = vmax.f32 %v674, 0.0
      %v965 = vmax.f32 %v679, 0.0
      %v966 = vmax.f32 %v684, 0.0
      %v967 = vmax.f32 %v689, 0.0
      %v968 = vmax.f32 %v694, 0.0
      %v969 = vmax.f32 %v699, 0.0
      %v970 = vmax.f32 %v704, 0.0
      %v971 = vmax.f32 %v709, 0.0
      %v972 = vmax.f32 %v714, 0.0
      %v973 = vmax.f32 %v719, 0.0
      %v974 = vmax.f32 %v724, 0.0
      %v975 = vmax.f32 %v729, 0.0
      %v976 = vmax.f32 %v734, 0.0
      %v977 = vmax.f32 %v739, 0.0
      %v978 = vmax.f32 %v744, 0.0
      %v979 = vmax.f32 %v749, 0.0
      %v980 = vmax.f32 %v754, 0.0
      %v981 = vmax.f32 %v759, 0.0
      %v982 = vmax.f32 %v764, 0.0
      %v983 = vmax.f32 %v769, 0.0
      %v984 = vmax.f32 %v774, 0.0
      %v985 = vmax.f32 %v779, 0.0
      %v986 = vmax.f32 %v784, 0.0
      %v987 = vmax.f32 %v789, 0.0
      %v988 = vmax.f32 %v794, 0.0
      %v989 = vmax.f32 %v799, 0.0
      %v990 = vmax.f32 %v804, 0.0
      %v991 = vmax.f32 %v809, 0.0
      %v992 = vmax.f32 %v814, 0.0
      %v993 = vmax.f32 %v819, 0.0
      %v994 = vmax.f32 %v824, 0.0
      %v995 = vmax.f32 %v829, 0.0
      %v996 = vmax.f32 %v834, 0.0
      %v997 = vmax.f32 %v839, 0.0
      %v998 = vmax.f32 %v844, 0.0
      %v999 = vmax.f32 %v849, 0.0
      %v1000 = vmax.f32 %v854, 0.0
      %v1001 = vmax.f32 %v859, 0.0
      %v1002 = vmax.f32 %v864, 0.0
      %v1003 = vmax.f32 %v869, 0.0
      %v1004 = vmax.f32 %v874, 0.0
      %v1005 = vmax.f32 %v879, 0.0
      %v1006 = vmax.f32 %v884, 0.0
      %v1007 = vmax.f32 %v889, 0.0
      %v1008 = vmax.f32 %v894, 0.0
      %v1009 = vmax.f32 %v899, 0.0
      %v1010 = vmax.f32 %v904, 0.0
      %v1011 = vmax.f32 %v909, 0.0
      %v1012 = vmax.f32 %v914, 0.0
      %v1013 = vmax.f32 %v919, 0.0
      %v1014 = vmax.f32 %v924, 0.0
      %v1015 = vmax.f32 %v929, 0.0
      %v1016 = vmax.f32 %v934, 0.0
      %v1017 = vmax.f32 %v939, 0.0
      %v1018 = vmax.f32 %v944, 0.0
      %v1019 = vmax.f32 %v949, 0.0
      %v1020 = vmax.f32 %v954, 0.0
      %v1021 = vld [vmem:[%s4] sm:$0xff]
      %v1022 = vld [vmem:[%s4 + $0x8] sm:$0xff]
      %v1023 = vld [vmem:[%s4 + $0x10] sm:$0xff]
      %v1024 = vld [vmem:[%s4 + $0x18] sm:$0xff]
      %v1025 = vld [vmem:[%s4 + $0x20] sm:$0xff]
      %v1026 = vld [vmem:[%s4 + $0x28] sm:$0xff]
      %v1027 = vld [vmem:[%s4 + $0x30] sm:$0xff]
      %v1028 = vld [vmem:[%s4 + $0x38] sm:$0xff]
      %v1029 = vld [vmem:[%s4 + $0x40] sm:$0xff]
      %v1030 = vld [vmem:[%s4 + $0x48] sm:$0xff]
      %v1031 = vld [vmem:[%s4 + $0x50] sm:$0xff]
      %v1032 = vld [vmem:[%s4 + $0x58] sm:$0xff]
      %v1033 = vld [vmem:[%s4 + $0x60] sm:$0xff]
      %v1034 = vld [vmem:[%s4 + $0x68] sm:$0xff]
      %v1035 = vld [vmem:[%s4 + $0x70] sm:$0xff]
      %v1036 = vld [vmem:[%s4 + $0x78] sm:$0xff]
      %v1037 = vld [vmem:[%s5] sm:$0x1]
      %v1039 = vlaneseq
      %v1040 = vshrl.u32 %v1039, 7
      %v1041 = vsub.s32 0, %v1040
      %v1042 = vrot.slane %v1037, %v1041
      %1044 = vmatprep.subr.mxu0 0.0
      %1045 = vmatpush1.msra.mxu0 %v1021
      %1046 = vmatprep.subr.mxu0 0.0
      %1047 = vmatpush1.msra.mxu0 %v1022
      %1048 = vmatprep.subr.mxu0 0.0
      %1049 = vmatpush1.msra.mxu0 %v1023
      %1050 = vmatprep.subr.mxu0 0.0
      %1051 = vmatpush1.msra.mxu0 %v1024
      %1052 = vmatprep.subr.mxu0 0.0
      %1053 = vmatpush1.msra.mxu0 %v1025
      %1054 = vmatprep.subr.mxu0 0.0
      %1055 = vmatpush1.msra.mxu0 %v1026
      %1056 = vmatprep.subr.mxu0 0.0
      %1057 = vmatpush1.msra.mxu0 %v1027
      %1058 = vmatprep.subr.mxu0 0.0
      %1059 = vmatpush1.msra.mxu0 %v1028
      %1060 = vmatprep.subr.mxu0 0.0
      %1061 = vmatpush1.msra.mxu0 %v1029
      %1062 = vmatprep.subr.mxu0 0.0
      %1063 = vmatpush1.msra.mxu0 %v1030
      %1064 = vmatprep.subr.mxu0 0.0
      %1065 = vmatpush1.msra.mxu0 %v1031
      %1066 = vmatprep.subr.mxu0 0.0
      %1067 = vmatpush1.msra.mxu0 %v1032
      %1068 = vmatprep.subr.mxu0 0.0
      %1069 = vmatpush1.msra.mxu0 %v1033
      %1070 = vmatprep.subr.mxu0 0.0
      %1071 = vmatpush1.msra.mxu0 %v1034
      %1072 = vmatprep.subr.mxu0 0.0
      %1073 = vmatpush1.msra.mxu0 %v1035
      %1074 = vmatprep.subr.mxu0 0.0
      %1075 = vmatpush1.msra.mxu0 %v1036
      %1076 = vmatprep.subr.mxu0 0.0
      %1077 = vmatpush1.msra.mxu0 0.0
      %1078 = vmatprep.subr.mxu0 0.0
      %1079 = vmatpush1.msra.mxu0 0.0
      %1080 = vmatprep.subr.mxu0 0.0
      %1081 = vmatpush1.msra.mxu0 0.0
      %1082 = vmatprep.subr.mxu0 0.0
      %1083 = vmatpush1.msra.mxu0 0.0
      %1084 = vmatprep.subr.mxu0 0.0
      %1085 = vmatpush1.msra.mxu0 0.0
      %1086 = vmatprep.subr.mxu0 0.0
      %1087 = vmatpush1.msra.mxu0 0.0
      %1088 = vmatprep.subr.mxu0 0.0
      %1089 = vmatpush1.msra.mxu0 0.0
      %1090 = vmatprep.subr.mxu0 0.0
      %1091 = vmatpush1.msra.mxu0 0.0
      %1092 = vmatprep.subr.mxu0 0.0
      %1093 = vmatpush1.msra.mxu0 0.0
      %1094 = vmatprep.subr.mxu0 0.0
      %1095 = vmatpush1.msra.mxu0 0.0
      %1096 = vmatprep.subr.mxu0 0.0
      %1097 = vmatpush1.msra.mxu0 0.0
      %1098 = vmatprep.subr.mxu0 0.0
      %1099 = vmatpush1.msra.mxu0 0.0
      %1100 = vmatprep.subr.mxu0 0.0
      %1101 = vmatpush1.msra.mxu0 0.0
      %1102 = vmatprep.subr.mxu0 0.0
      %1103 = vmatpush1.msra.mxu0 0.0
      %1104 = vmatprep.subr.mxu0 0.0
      %1105 = vmatpush1.msra.mxu0 0.0
      %1106 = vmatprep.subr.mxu0 0.0
      %1107 = vmatpush1.msra.mxu0 0.0
      %1108 = vmatprep.mubr.f32.mxu0 0.0
      %1109 = vmatmul.mubr.f32.gmra.mrb[0].mxu0 %v957
      %v1110 = vpop.f32.mrb[0].mxu0
      %v1111 = vadd.f32 %v1042, %v1110
      %v1112 = vpop.f32.mrb[0].mxu0
      %1113 = vmatprep.mubr.f32.mxu0 0.0
      %1114 = vmatmul.mubr.f32.gmra.mrb[0].mxu0 %v958
      %v1115 = vpop.f32.mrb[0].mxu0
      %v1116 = vadd.f32 %v1042, %v1115
      %v1117 = vpop.f32.mrb[0].mxu0
      %1118 = vmatprep.mubr.f32.mxu0 0.0
      %1119 = vmatmul.mubr.f32.gmra.mrb[0].mxu0 %v959
      %v1120 = vpop.f32.mrb[0].mxu0
      %v1121 = vadd.f32 %v1042, %v1120
      %v1122 = vpop.f32.mrb[0].mxu0
      %1123 = vmatprep.mubr.f32.mxu0 0.0
      %1124 = vmatmul.mubr.f32.gmra.mrb[0].mxu0 %v960
      %v1125 = vpop.f32.mrb[0].mxu0
      %v1126 = vadd.f32 %v1042, %v1125
      %v1127 = vpop.f32.mrb[0].mxu0
      %1128 = vmatprep.mubr.f32.mxu0 0.0
      %1129 = vmatmul.mubr.f32.gmra.mrb[0].mxu0 %v961
      %v1130 = vpop.f32.mrb[0].mxu0
      %v1131 = vadd.f32 %v1042, %v1130
      %v1132 = vpop.f32.mrb[0].mxu0
      %1133 = vmatprep.mubr.f32.mxu0 0.0
      %1134 = vmatmul.mubr.f32.gmra.mrb[0].mxu0 %v962
      %v1135 = vpop.f32.mrb[0].mxu0
      %v1136 = vadd.f32 %v1042, %v1135
      %v1137 = vpop.f32.mrb[0].mxu0
      %1138 = vmatprep.mubr.f32.mxu0 0.0
      %1139 = vmatmul.mubr.f32.gmra.mrb[0].mxu0 %v963
      %v1140 = vpop.f32.mrb[0].mxu0
      %v1141 = vadd.f32 %v1042, %v1140
      %v1142 = vpop.f32.mrb[0].mxu0
      %1143 = vmatprep.mubr.f32.mxu0 0.0
      %1144 = vmatmul.mubr.f32.gmra.mrb[0].mxu0 %v964
      %v1145 = vpop.f32.mrb[0].mxu0
      %v1146 = vadd.f32 %v1042, %v1145
      %v1147 = vpop.f32.mrb[0].mxu0
      %1148 = vmatprep.mubr.f32.mxu0 0.0
      %1149 = vmatmul.mubr.f32.gmra.mrb[0].mxu0 %v965
      %v1150 = vpop.f32.mrb[0].mxu0
      %v1151 = vadd.f32 %v1042, %v1150
      %v1152 = vpop.f32.mrb[0].mxu0
      %1153 = vmatprep.mubr.f32.mxu0 0.0
      %1154 = vmatmul.mubr.f32.gmra.mrb[0].mxu0 %v966
      %v1155 = vpop.f32.mrb[0].mxu0
      %v1156 = vadd.f32 %v1042, %v1155
      %v1157 = vpop.f32.mrb[0].mxu0
      %1158 = vmatprep.mubr.f32.mxu0 0.0
      %1159 = vmatmul.mubr.f32.gmra.mrb[0].mxu0 %v967
      %v1160 = vpop.f32.mrb[0].mxu0
      %v1161 = vadd.f32 %v1042, %v1160
      %v1162 = vpop.f32.mrb[0].mxu0
      %1163 = vmatprep.mubr.f32.mxu0 0.0
      %1164 = vmatmul.mubr.f32.gmra.mrb[0].mxu0 %v968
      %v1165 = vpop.f32.mrb[0].mxu0
      %v1166 = vadd.f32 %v1042, %v1165
      %v1167 = vpop.f32.mrb[0].mxu0
      %1168 = vmatprep.mubr.f32.mxu0 0.0
      %1169 = vmatmul.mubr.f32.gmra.mrb[0].mxu0 %v969
      %v1170 = vpop.f32.mrb[0].mxu0
      %v1171 = vadd.f32 %v1042, %v1170
      %v1172 = vpop.f32.mrb[0].mxu0
      %1173 = vmatprep.mubr.f32.mxu0 0.0
      %1174 = vmatmul.mubr.f32.gmra.mrb[0].mxu0 %v970
      %v1175 = vpop.f32.mrb[0].mxu0
      %v1176 = vadd.f32 %v1042, %v1175
      %v1177 = vpop.f32.mrb[0].mxu0
      %1178 = vmatprep.mubr.f32.mxu0 0.0
      %1179 = vmatmul.mubr.f32.gmra.mrb[0].mxu0 %v971
      %v1180 = vpop.f32.mrb[0].mxu0
      %v1181 = vadd.f32 %v1042, %v1180
      %v1182 = vpop.f32.mrb[0].mxu0
      %1183 = vmatprep.mubr.f32.mxu0 0.0
      %1184 = vmatmul.mubr.f32.gmra.mrb[0].mxu0 %v972
      %v1185 = vpop.f32.mrb[0].mxu0
      %v1186 = vadd.f32 %v1042, %v1185
      %v1187 = vpop.f32.mrb[0].mxu0
      %1188 = vmatprep.mubr.f32.mxu0 0.0
      %1189 = vmatmul.mubr.f32.gmra.mrb[0].mxu0 %v973
      %v1190 = vpop.f32.mrb[0].mxu0
      %v1191 = vadd.f32 %v1042, %v1190
      %v1192 = vpop.f32.mrb[0].mxu0
      %1193 = vmatprep.mubr.f32.mxu0 0.0
      %1194 = vmatmul.mubr.f32.gmra.mrb[0].mxu0 %v974
      %v1195 = vpop.f32.mrb[0].mxu0
      %v1196 = vadd.f32 %v1042, %v1195
      %v1197 = vpop.f32.mrb[0].mxu0
      %1198 = vmatprep.mubr.f32.mxu0 0.0
      %1199 = vmatmul.mubr.f32.gmra.mrb[0].mxu0 %v975
      %v1200 = vpop.f32.mrb[0].mxu0
      %v1201 = vadd.f32 %v1042, %v1200
      %v1202 = vpop.f32.mrb[0].mxu0
      %1203 = vmatprep.mubr.f32.mxu0 0.0
      %1204 = vmatmul.mubr.f32.gmra.mrb[0].mxu0 %v976
      %v1205 = vpop.f32.mrb[0].mxu0
      %v1206 = vadd.f32 %v1042, %v1205
      %v1207 = vpop.f32.mrb[0].mxu0
      %1208 = vmatprep.mubr.f32.mxu0 0.0
      %1209 = vmatmul.mubr.f32.gmra.mrb[0].mxu0 %v977
      %v1210 = vpop.f32.mrb[0].mxu0
      %v1211 = vadd.f32 %v1042, %v1210
      %v1212 = vpop.f32.mrb[0].mxu0
      %1213 = vmatprep.mubr.f32.mxu0 0.0
      %1214 = vmatmul.mubr.f32.gmra.mrb[0].mxu0 %v978
      %v1215 = vpop.f32.mrb[0].mxu0
      %v1216 = vadd.f32 %v1042, %v1215
      %v1217 = vpop.f32.mrb[0].mxu0
      %1218 = vmatprep.mubr.f32.mxu0 0.0
      %1219 = vmatmul.mubr.f32.gmra.mrb[0].mxu0 %v979
      %v1220 = vpop.f32.mrb[0].mxu0
      %v1221 = vadd.f32 %v1042, %v1220
      %v1222 = vpop.f32.mrb[0].mxu0
      %1223 = vmatprep.mubr.f32.mxu0 0.0
      %1224 = vmatmul.mubr.f32.gmra.mrb[0].mxu0 %v980
      %v1225 = vpop.f32.mrb[0].mxu0
      %v1226 = vadd.f32 %v1042, %v1225
      %v1227 = vpop.f32.mrb[0].mxu0
      %1228 = vmatprep.mubr.f32.mxu0 0.0
      %1229 = vmatmul.mubr.f32.gmra.mrb[0].mxu0 %v981
      %v1230 = vpop.f32.mrb[0].mxu0
      %v1231 = vadd.f32 %v1042, %v1230
      %v1232 = vpop.f32.mrb[0].mxu0
      %1233 = vmatprep.mubr.f32.mxu0 0.0
      %1234 = vmatmul.mubr.f32.gmra.mrb[0].mxu0 %v982
      %v1235 = vpop.f32.mrb[0].mxu0
      %v1236 = vadd.f32 %v1042, %v1235
      %v1237 = vpop.f32.mrb[0].mxu0
      %1238 = vmatprep.mubr.f32.mxu0 0.0
      %1239 = vmatmul.mubr.f32.gmra.mrb[0].mxu0 %v983
      %v1240 = vpop.f32.mrb[0].mxu0
      %v1241 = vadd.f32 %v1042, %v1240
      %v1242 = vpop.f32.mrb[0].mxu0
      %1243 = vmatprep.mubr.f32.mxu0 0.0
      %1244 = vmatmul.mubr.f32.gmra.mrb[0].mxu0 %v984
      %v1245 = vpop.f32.mrb[0].mxu0
      %v1246 = vadd.f32 %v1042, %v1245
      %v1247 = vpop.f32.mrb[0].mxu0
      %1248 = vmatprep.mubr.f32.mxu0 0.0
      %1249 = vmatmul.mubr.f32.gmra.mrb[0].mxu0 %v985
      %v1250 = vpop.f32.mrb[0].mxu0
      %v1251 = vadd.f32 %v1042, %v1250
      %v1252 = vpop.f32.mrb[0].mxu0
      %1253 = vmatprep.mubr.f32.mxu0 0.0
      %1254 = vmatmul.mubr.f32.gmra.mrb[0].mxu0 %v986
      %v1255 = vpop.f32.mrb[0].mxu0
      %v1256 = vadd.f32 %v1042, %v1255
      %v1257 = vpop.f32.mrb[0].mxu0
      %1258 = vmatprep.mubr.f32.mxu0 0.0
      %1259 = vmatmul.mubr.f32.gmra.mrb[0].mxu0 %v987
      %v1260 = vpop.f32.mrb[0].mxu0
      %v1261 = vadd.f32 %v1042, %v1260
      %v1262 = vpop.f32.mrb[0].mxu0
      %1263 = vmatprep.mubr.f32.mxu0 0.0
      %1264 = vmatmul.mubr.f32.gmra.mrb[0].mxu0 %v988
      %v1265 = vpop.f32.mrb[0].mxu0
      %v1266 = vadd.f32 %v1042, %v1265
      %v1267 = vpop.f32.mrb[0].mxu0
      %1268 = vmatprep.mubr.f32.mxu0 0.0
      %1269 = vmatmul.mubr.f32.gmra.mrb[0].mxu0 %v989
      %v1270 = vpop.f32.mrb[0].mxu0
      %v1271 = vadd.f32 %v1042, %v1270
      %v1272 = vpop.f32.mrb[0].mxu0
      %1273 = vmatprep.mubr.f32.mxu0 0.0
      %1274 = vmatmul.mubr.f32.gmra.mrb[0].mxu0 %v990
      %v1275 = vpop.f32.mrb[0].mxu0
      %v1276 = vadd.f32 %v1042, %v1275
      %v1277 = vpop.f32.mrb[0].mxu0
      %1278 = vmatprep.mubr.f32.mxu0 0.0
      %1279 = vmatmul.mubr.f32.gmra.mrb[0].mxu0 %v991
      %v1280 = vpop.f32.mrb[0].mxu0
      %v1281 = vadd.f32 %v1042, %v1280
      %v1282 = vpop.f32.mrb[0].mxu0
      %1283 = vmatprep.mubr.f32.mxu0 0.0
      %1284 = vmatmul.mubr.f32.gmra.mrb[0].mxu0 %v992
      %v1285 = vpop.f32.mrb[0].mxu0
      %v1286 = vadd.f32 %v1042, %v1285
      %v1287 = vpop.f32.mrb[0].mxu0
      %1288 = vmatprep.mubr.f32.mxu0 0.0
      %1289 = vmatmul.mubr.f32.gmra.mrb[0].mxu0 %v993
      %v1290 = vpop.f32.mrb[0].mxu0
      %v1291 = vadd.f32 %v1042, %v1290
      %v1292 = vpop.f32.mrb[0].mxu0
      %1293 = vmatprep.mubr.f32.mxu0 0.0
      %1294 = vmatmul.mubr.f32.gmra.mrb[0].mxu0 %v994
      %v1295 = vpop.f32.mrb[0].mxu0
      %v1296 = vadd.f32 %v1042, %v1295
      %v1297 = vpop.f32.mrb[0].mxu0
      %1298 = vmatprep.mubr.f32.mxu0 0.0
      %1299 = vmatmul.mubr.f32.gmra.mrb[0].mxu0 %v995
      %v1300 = vpop.f32.mrb[0].mxu0
      %v1301 = vadd.f32 %v1042, %v1300
      %v1302 = vpop.f32.mrb[0].mxu0
      %1303 = vmatprep.mubr.f32.mxu0 0.0
      %1304 = vmatmul.mubr.f32.gmra.mrb[0].mxu0 %v996
      %v1305 = vpop.f32.mrb[0].mxu0
      %v1306 = vadd.f32 %v1042, %v1305
      %v1307 = vpop.f32.mrb[0].mxu0
      %1308 = vmatprep.mubr.f32.mxu0 0.0
      %1309 = vmatmul.mubr.f32.gmra.mrb[0].mxu0 %v997
      %v1310 = vpop.f32.mrb[0].mxu0
      %v1311 = vadd.f32 %v1042, %v1310
      %v1312 = vpop.f32.mrb[0].mxu0
      %1313 = vmatprep.mubr.f32.mxu0 0.0
      %1314 = vmatmul.mubr.f32.gmra.mrb[0].mxu0 %v998
      %v1315 = vpop.f32.mrb[0].mxu0
      %v1316 = vadd.f32 %v1042, %v1315
      %v1317 = vpop.f32.mrb[0].mxu0
      %1318 = vmatprep.mubr.f32.mxu0 0.0
      %1319 = vmatmul.mubr.f32.gmra.mrb[0].mxu0 %v999
      %v1320 = vpop.f32.mrb[0].mxu0
      %v1321 = vadd.f32 %v1042, %v1320
      %v1322 = vpop.f32.mrb[0].mxu0
      %1323 = vmatprep.mubr.f32.mxu0 0.0
      %1324 = vmatmul.mubr.f32.gmra.mrb[0].mxu0 %v1000
      %v1325 = vpop.f32.mrb[0].mxu0
      %v1326 = vadd.f32 %v1042, %v1325
      %v1327 = vpop.f32.mrb[0].mxu0
      %1328 = vmatprep.mubr.f32.mxu0 0.0
      %1329 = vmatmul.mubr.f32.gmra.mrb[0].mxu0 %v1001
      %v1330 = vpop.f32.mrb[0].mxu0
      %v1331 = vadd.f32 %v1042, %v1330
      %v1332 = vpop.f32.mrb[0].mxu0
      %1333 = vmatprep.mubr.f32.mxu0 0.0
      %1334 = vmatmul.mubr.f32.gmra.mrb[0].mxu0 %v1002
      %v1335 = vpop.f32.mrb[0].mxu0
      %v1336 = vadd.f32 %v1042, %v1335
      %v1337 = vpop.f32.mrb[0].mxu0
      %1338 = vmatprep.mubr.f32.mxu0 0.0
      %1339 = vmatmul.mubr.f32.gmra.mrb[0].mxu0 %v1003
      %v1340 = vpop.f32.mrb[0].mxu0
      %v1341 = vadd.f32 %v1042, %v1340
      %v1342 = vpop.f32.mrb[0].mxu0
      %1343 = vmatprep.mubr.f32.mxu0 0.0
      %1344 = vmatmul.mubr.f32.gmra.mrb[0].mxu0 %v1004
      %v1345 = vpop.f32.mrb[0].mxu0
      %v1346 = vadd.f32 %v1042, %v1345
      %v1347 = vpop.f32.mrb[0].mxu0
      %1348 = vmatprep.mubr.f32.mxu0 0.0
      %1349 = vmatmul.mubr.f32.gmra.mrb[0].mxu0 %v1005
      %v1350 = vpop.f32.mrb[0].mxu0
      %v1351 = vadd.f32 %v1042, %v1350
      %v1352 = vpop.f32.mrb[0].mxu0
      %1353 = vmatprep.mubr.f32.mxu0 0.0
      %1354 = vmatmul.mubr.f32.gmra.mrb[0].mxu0 %v1006
      %v1355 = vpop.f32.mrb[0].mxu0
      %v1356 = vadd.f32 %v1042, %v1355
      %v1357 = vpop.f32.mrb[0].mxu0
      %1358 = vmatprep.mubr.f32.mxu0 0.0
      %1359 = vmatmul.mubr.f32.gmra.mrb[0].mxu0 %v1007
      %v1360 = vpop.f32.mrb[0].mxu0
      %v1361 = vadd.f32 %v1042, %v1360
      %v1362 = vpop.f32.mrb[0].mxu0
      %1363 = vmatprep.mubr.f32.mxu0 0.0
      %1364 = vmatmul.mubr.f32.gmra.mrb[0].mxu0 %v1008
      %v1365 = vpop.f32.mrb[0].mxu0
      %v1366 = vadd.f32 %v1042, %v1365
      %v1367 = vpop.f32.mrb[0].mxu0
      %1368 = vmatprep.mubr.f32.mxu0 0.0
      %1369 = vmatmul.mubr.f32.gmra.mrb[0].mxu0 %v1009
      %v1370 = vpop.f32.mrb[0].mxu0
      %v1371 = vadd.f32 %v1042, %v1370
      %v1372 = vpop.f32.mrb[0].mxu0
      %1373 = vmatprep.mubr.f32.mxu0 0.0
      %1374 = vmatmul.mubr.f32.gmra.mrb[0].mxu0 %v1010
      %v1375 = vpop.f32.mrb[0].mxu0
      %v1376 = vadd.f32 %v1042, %v1375
      %v1377 = vpop.f32.mrb[0].mxu0
      %1378 = vmatprep.mubr.f32.mxu0 0.0
      %1379 = vmatmul.mubr.f32.gmra.mrb[0].mxu0 %v1011
      %v1380 = vpop.f32.mrb[0].mxu0
      %v1381 = vadd.f32 %v1042, %v1380
      %v1382 = vpop.f32.mrb[0].mxu0
      %1383 = vmatprep.mubr.f32.mxu0 0.0
      %1384 = vmatmul.mubr.f32.gmra.mrb[0].mxu0 %v1012
      %v1385 = vpop.f32.mrb[0].mxu0
      %v1386 = vadd.f32 %v1042, %v1385
      %v1387 = vpop.f32.mrb[0].mxu0
      %1388 = vmatprep.mubr.f32.mxu0 0.0
      %1389 = vmatmul.mubr.f32.gmra.mrb[0].mxu0 %v1013
      %v1390 = vpop.f32.mrb[0].mxu0
      %v1391 = vadd.f32 %v1042, %v1390
      %v1392 = vpop.f32.mrb[0].mxu0
      %1393 = vmatprep.mubr.f32.mxu0 0.0
      %1394 = vmatmul.mubr.f32.gmra.mrb[0].mxu0 %v1014
      %v1395 = vpop.f32.mrb[0].mxu0
      %v1396 = vadd.f32 %v1042, %v1395
      %v1397 = vpop.f32.mrb[0].mxu0
      %1398 = vmatprep.mubr.f32.mxu0 0.0
      %1399 = vmatmul.mubr.f32.gmra.mrb[0].mxu0 %v1015
      %v1400 = vpop.f32.mrb[0].mxu0
      %v1401 = vadd.f32 %v1042, %v1400
      %v1402 = vpop.f32.mrb[0].mxu0
      %1403 = vmatprep.mubr.f32.mxu0 0.0
      %1404 = vmatmul.mubr.f32.gmra.mrb[0].mxu0 %v1016
      %v1405 = vpop.f32.mrb[0].mxu0
      %v1406 = vadd.f32 %v1042, %v1405
      %v1407 = vpop.f32.mrb[0].mxu0
      %1408 = vmatprep.mubr.f32.mxu0 0.0
      %1409 = vmatmul.mubr.f32.gmra.mrb[0].mxu0 %v1017
      %v1410 = vpop.f32.mrb[0].mxu0
      %v1411 = vadd.f32 %v1042, %v1410
      %v1412 = vpop.f32.mrb[0].mxu0
      %1413 = vmatprep.mubr.f32.mxu0 0.0
      %1414 = vmatmul.mubr.f32.gmra.mrb[0].mxu0 %v1018
      %v1415 = vpop.f32.mrb[0].mxu0
      %v1416 = vadd.f32 %v1042, %v1415
      %v1417 = vpop.f32.mrb[0].mxu0
      %1418 = vmatprep.mubr.f32.mxu0 0.0
      %1419 = vmatmul.mubr.f32.gmra.mrb[0].mxu0 %v1019
      %v1420 = vpop.f32.mrb[0].mxu0
      %v1421 = vadd.f32 %v1042, %v1420
      %v1422 = vpop.f32.mrb[0].mxu0
      %1423 = vmatprep.mubr.f32.mxu0 0.0
      %1424 = vmatmul.mubr.f32.gmra.mrb[0].mxu0 %v1020
      %v1425 = vpop.f32.mrb[0].mxu0
      %v1426 = vadd.f32 %v1042, %v1425
      %v1427 = vpop.f32.mrb[0].mxu0
      %1428 = vdwg.mxu0
      %v1429 = vld [vmem:[%s296] sm:$0xff]
      %v1430 = vld [vmem:[%s296 + $0x8] sm:$0xff]
      %v1431 = vld [vmem:[%s296 + $0x10] sm:$0xff]
      %v1432 = vld [vmem:[%s296 + $0x18] sm:$0xff]
      %v1433 = vld [vmem:[%s296 + $0x20] sm:$0xff]
      %v1434 = vld [vmem:[%s296 + $0x28] sm:$0xff]
      %v1435 = vld [vmem:[%s296 + $0x30] sm:$0xff]
      %v1436 = vld [vmem:[%s296 + $0x38] sm:$0xff]
      %v1437 = vld [vmem:[%s296 + $0x40] sm:$0xff]
      %v1438 = vld [vmem:[%s296 + $0x48] sm:$0xff]
      %v1439 = vld [vmem:[%s296 + $0x50] sm:$0xff]
      %v1440 = vld [vmem:[%s296 + $0x58] sm:$0xff]
      %v1441 = vld [vmem:[%s296 + $0x60] sm:$0xff]
      %v1442 = vld [vmem:[%s296 + $0x68] sm:$0xff]
      %v1443 = vld [vmem:[%s296 + $0x70] sm:$0xff]
      %v1444 = vld [vmem:[%s296 + $0x78] sm:$0xff]
      %v1445 = vld [vmem:[%s296 + $0x80] sm:$0xff]
      %v1446 = vld [vmem:[%s296 + $0x88] sm:$0xff]
      %v1447 = vld [vmem:[%s296 + $0x90] sm:$0xff]
      %v1448 = vld [vmem:[%s296 + $0x98] sm:$0xff]
      %v1449 = vld [vmem:[%s296 + $0xa0] sm:$0xff]
      %v1450 = vld [vmem:[%s296 + $0xa8] sm:$0xff]
      %v1451 = vld [vmem:[%s296 + $0xb0] sm:$0xff]
      %v1452 = vld [vmem:[%s296 + $0xb8] sm:$0xff]
      %v1453 = vld [vmem:[%s296 + $0xc0] sm:$0xff]
      %v1454 = vld [vmem:[%s296 + $0xc8] sm:$0xff]
      %v1455 = vld [vmem:[%s296 + $0xd0] sm:$0xff]
      %v1456 = vld [vmem:[%s296 + $0xd8] sm:$0xff]
      %v1457 = vld [vmem:[%s296 + $0xe0] sm:$0xff]
      %v1458 = vld [vmem:[%s296 + $0xe8] sm:$0xff]
      %v1459 = vld [vmem:[%s296 + $0xf0] sm:$0xff]
      %v1460 = vld [vmem:[%s296 + $0xf8] sm:$0xff]
      %v1461 = vld [vmem:[%s296 + $0x100] sm:$0xff]
      %v1462 = vld [vmem:[%s296 + $0x108] sm:$0xff]
      %v1463 = vld [vmem:[%s296 + $0x110] sm:$0xff]
      %v1464 = vld [vmem:[%s296 + $0x118] sm:$0xff]
      %v1465 = vld [vmem:[%s296 + $0x120] sm:$0xff]
      %v1466 = vld [vmem:[%s296 + $0x128] sm:$0xff]
      %v1467 = vld [vmem:[%s296 + $0x130] sm:$0xff]
      %v1468 = vld [vmem:[%s296 + $0x138] sm:$0xff]
      %v1469 = vld [vmem:[%s296 + $0x140] sm:$0xff]
      %v1470 = vld [vmem:[%s296 + $0x148] sm:$0xff]
      %v1471 = vld [vmem:[%s296 + $0x150] sm:$0xff]
      %v1472 = vld [vmem:[%s296 + $0x158] sm:$0xff]
      %v1473 = vld [vmem:[%s296 + $0x160] sm:$0xff]
      %v1474 = vld [vmem:[%s296 + $0x168] sm:$0xff]
      %v1475 = vld [vmem:[%s296 + $0x170] sm:$0xff]
      %v1476 = vld [vmem:[%s296 + $0x178] sm:$0xff]
      %v1477 = vld [vmem:[%s296 + $0x180] sm:$0xff]
      %v1478 = vld [vmem:[%s296 + $0x188] sm:$0xff]
      %v1479 = vld [vmem:[%s296 + $0x190] sm:$0xff]
      %v1480 = vld [vmem:[%s296 + $0x198] sm:$0xff]
      %v1481 = vld [vmem:[%s296 + $0x1a0] sm:$0xff]
      %v1482 = vld [vmem:[%s296 + $0x1a8] sm:$0xff]
      %v1483 = vld [vmem:[%s296 + $0x1b0] sm:$0xff]
      %v1484 = vld [vmem:[%s296 + $0x1b8] sm:$0xff]
      %v1485 = vld [vmem:[%s296 + $0x1c0] sm:$0xff]
      %v1486 = vld [vmem:[%s296 + $0x1c8] sm:$0xff]
      %v1487 = vld [vmem:[%s296 + $0x1d0] sm:$0xff]
      %v1488 = vld [vmem:[%s296 + $0x1d8] sm:$0xff]
      %v1489 = vld [vmem:[%s296 + $0x1e0] sm:$0xff]
      %v1490 = vld [vmem:[%s296 + $0x1e8] sm:$0xff]
      %v1491 = vld [vmem:[%s296 + $0x1f0] sm:$0xff]
      %v1492 = vld [vmem:[%s296 + $0x1f8] sm:$0xff]
      %v1493 = vlaneseq
      %v1494 = vand.u32 %v1493, 127
      %v1495 = vand.u32 %v1494, 15
      %1496 = vset.pattern.permute.xlu0 0
      %1497 = vperm.xlu0 %1496, %v1429
      %v1498 = vpop.permute.xlu0 %1497
      %1499 = vset.pattern.permute.xlu0 0
      %1500 = vperm.xlu0 %1499, %v1430
      %v1501 = vpop.permute.xlu0 %1500
      %1502 = vset.pattern.permute.xlu0 0
      %1503 = vperm.xlu0 %1502, %v1431
      %v1504 = vpop.permute.xlu0 %1503
      %1505 = vset.pattern.permute.xlu0 0
      %1506 = vperm.xlu0 %1505, %v1432
      %v1507 = vpop.permute.xlu0 %1506
      %1508 = vset.pattern.permute.xlu0 0
      %1509 = vperm.xlu0 %1508, %v1433
      %v1510 = vpop.permute.xlu0 %1509
      %1511 = vset.pattern.permute.xlu0 0
      %1512 = vperm.xlu0 %1511, %v1434
      %v1513 = vpop.permute.xlu0 %1512
      %1514 = vset.pattern.permute.xlu0 0
      %1515 = vperm.xlu0 %1514, %v1435
      %v1516 = vpop.permute.xlu0 %1515
      %1517 = vset.pattern.permute.xlu0 0
      %1518 = vperm.xlu0 %1517, %v1436
      %v1519 = vpop.permute.xlu0 %1518
      %1520 = vset.pattern.permute.xlu0 0
      %1521 = vperm.xlu0 %1520, %v1437
      %v1522 = vpop.permute.xlu0 %1521
      %1523 = vset.pattern.permute.xlu0 0
      %1524 = vperm.xlu0 %1523, %v1438
      %v1525 = vpop.permute.xlu0 %1524
      %1526 = vset.pattern.permute.xlu0 0
      %1527 = vperm.xlu0 %1526, %v1439
      %v1528 = vpop.permute.xlu0 %1527
      %1529 = vset.pattern.permute.xlu0 0
      %1530 = vperm.xlu0 %1529, %v1440
      %v1531 = vpop.permute.xlu0 %1530
      %1532 = vset.pattern.permute.xlu0 0
      %1533 = vperm.xlu0 %1532, %v1441
      %v1534 = vpop.permute.xlu0 %1533
      %1535 = vset.pattern.permute.xlu0 0
      %1536 = vperm.xlu0 %1535, %v1442
      %v1537 = vpop.permute.xlu0 %1536
      %1538 = vset.pattern.permute.xlu0 0
      %1539 = vperm.xlu0 %1538, %v1443
      %v1540 = vpop.permute.xlu0 %1539
      %1541 = vset.pattern.permute.xlu0 0
      %1542 = vperm.xlu0 %1541, %v1444
      %v1543 = vpop.permute.xlu0 %1542
      %1544 = vset.pattern.permute.xlu0 0
      %1545 = vperm.xlu0 %1544, %v1445
      %v1546 = vpop.permute.xlu0 %1545
      %1547 = vset.pattern.permute.xlu0 0
      %1548 = vperm.xlu0 %1547, %v1446
      %v1549 = vpop.permute.xlu0 %1548
      %1550 = vset.pattern.permute.xlu0 0
      %1551 = vperm.xlu0 %1550, %v1447
      %v1552 = vpop.permute.xlu0 %1551
      %1553 = vset.pattern.permute.xlu0 0
      %1554 = vperm.xlu0 %1553, %v1448
      %v1555 = vpop.permute.xlu0 %1554
      %1556 = vset.pattern.permute.xlu0 0
      %1557 = vperm.xlu0 %1556, %v1449
      %v1558 = vpop.permute.xlu0 %1557
      %1559 = vset.pattern.permute.xlu0 0
      %1560 = vperm.xlu0 %1559, %v1450
      %v1561 = vpop.permute.xlu0 %1560
      %1562 = vset.pattern.permute.xlu0 0
      %1563 = vperm.xlu0 %1562, %v1451
      %v1564 = vpop.permute.xlu0 %1563
      %1565 = vset.pattern.permute.xlu0 0
      %1566 = vperm.xlu0 %1565, %v1452
      %v1567 = vpop.permute.xlu0 %1566
      %1568 = vset.pattern.permute.xlu0 0
      %1569 = vperm.xlu0 %1568, %v1453
      %v1570 = vpop.permute.xlu0 %1569
      %1571 = vset.pattern.permute.xlu0 0
      %1572 = vperm.xlu0 %1571, %v1454
      %v1573 = vpop.permute.xlu0 %1572
      %1574 = vset.pattern.permute.xlu0 0
      %1575 = vperm.xlu0 %1574, %v1455
      %v1576 = vpop.permute.xlu0 %1575
      %1577 = vset.pattern.permute.xlu0 0
      %1578 = vperm.xlu0 %1577, %v1456
      %v1579 = vpop.permute.xlu0 %1578
      %1580 = vset.pattern.permute.xlu0 0
      %1581 = vperm.xlu0 %1580, %v1457
      %v1582 = vpop.permute.xlu0 %1581
      %1583 = vset.pattern.permute.xlu0 0
      %1584 = vperm.xlu0 %1583, %v1458
      %v1585 = vpop.permute.xlu0 %1584
      %1586 = vset.pattern.permute.xlu0 0
      %1587 = vperm.xlu0 %1586, %v1459
      %v1588 = vpop.permute.xlu0 %1587
      %1589 = vset.pattern.permute.xlu0 0
      %1590 = vperm.xlu0 %1589, %v1460
      %v1591 = vpop.permute.xlu0 %1590
      %1592 = vset.pattern.permute.xlu0 0
      %1593 = vperm.xlu0 %1592, %v1461
      %v1594 = vpop.permute.xlu0 %1593
      %1595 = vset.pattern.permute.xlu0 0
      %1596 = vperm.xlu0 %1595, %v1462
      %v1597 = vpop.permute.xlu0 %1596
      %1598 = vset.pattern.permute.xlu0 0
      %1599 = vperm.xlu0 %1598, %v1463
      %v1600 = vpop.permute.xlu0 %1599
      %1601 = vset.pattern.permute.xlu0 0
      %1602 = vperm.xlu0 %1601, %v1464
      %v1603 = vpop.permute.xlu0 %1602
      %1604 = vset.pattern.permute.xlu0 0
      %1605 = vperm.xlu0 %1604, %v1465
      %v1606 = vpop.permute.xlu0 %1605
      %1607 = vset.pattern.permute.xlu0 0
      %1608 = vperm.xlu0 %1607, %v1466
      %v1609 = vpop.permute.xlu0 %1608
      %1610 = vset.pattern.permute.xlu0 0
      %1611 = vperm.xlu0 %1610, %v1467
      %v1612 = vpop.permute.xlu0 %1611
      %1613 = vset.pattern.permute.xlu0 0
      %1614 = vperm.xlu0 %1613, %v1468
      %v1615 = vpop.permute.xlu0 %1614
      %1616 = vset.pattern.permute.xlu0 0
      %1617 = vperm.xlu0 %1616, %v1469
      %v1618 = vpop.permute.xlu0 %1617
      %1619 = vset.pattern.permute.xlu0 0
      %1620 = vperm.xlu0 %1619, %v1470
      %v1621 = vpop.permute.xlu0 %1620
      %1622 = vset.pattern.permute.xlu0 0
      %1623 = vperm.xlu0 %1622, %v1471
      %v1624 = vpop.permute.xlu0 %1623
      %1625 = vset.pattern.permute.xlu0 0
      %1626 = vperm.xlu0 %1625, %v1472
      %v1627 = vpop.permute.xlu0 %1626
      %1628 = vset.pattern.permute.xlu0 0
      %1629 = vperm.xlu0 %1628, %v1473
      %v1630 = vpop.permute.xlu0 %1629
      %1631 = vset.pattern.permute.xlu0 0
      %1632 = vperm.xlu0 %1631, %v1474
      %v1633 = vpop.permute.xlu0 %1632
      %1634 = vset.pattern.permute.xlu0 0
      %1635 = vperm.xlu0 %1634, %v1475
      %v1636 = vpop.permute.xlu0 %1635
      %1637 = vset.pattern.permute.xlu0 0
      %1638 = vperm.xlu0 %1637, %v1476
      %v1639 = vpop.permute.xlu0 %1638
      %1640 = vset.pattern.permute.xlu0 0
      %1641 = vperm.xlu0 %1640, %v1477
      %v1642 = vpop.permute.xlu0 %1641
      %1643 = vset.pattern.permute.xlu0 0
      %1644 = vperm.xlu0 %1643, %v1478
      %v1645 = vpop.permute.xlu0 %1644
      %1646 = vset.pattern.permute.xlu0 0
      %1647 = vperm.xlu0 %1646, %v1479
      %v1648 = vpop.permute.xlu0 %1647
      %1649 = vset.pattern.permute.xlu0 0
      %1650 = vperm.xlu0 %1649, %v1480
      %v1651 = vpop.permute.xlu0 %1650
      %1652 = vset.pattern.permute.xlu0 0
      %1653 = vperm.xlu0 %1652, %v1481
      %v1654 = vpop.permute.xlu0 %1653
      %1655 = vset.pattern.permute.xlu0 0
      %1656 = vperm.xlu0 %1655, %v1482
      %v1657 = vpop.permute.xlu0 %1656
      %1658 = vset.pattern.permute.xlu0 0
      %1659 = vperm.xlu0 %1658, %v1483
      %v1660 = vpop.permute.xlu0 %1659
      %1661 = vset.pattern.permute.xlu0 0
      %1662 = vperm.xlu0 %1661, %v1484
      %v1663 = vpop.permute.xlu0 %1662
      %1664 = vset.pattern.permute.xlu0 0
      %1665 = vperm.xlu0 %1664, %v1485
      %v1666 = vpop.permute.xlu0 %1665
      %1667 = vset.pattern.permute.xlu0 0
      %1668 = vperm.xlu0 %1667, %v1486
      %v1669 = vpop.permute.xlu0 %1668
      %1670 = vset.pattern.permute.xlu0 0
      %1671 = vperm.xlu0 %1670, %v1487
      %v1672 = vpop.permute.xlu0 %1671
      %1673 = vset.pattern.permute.xlu0 0
      %1674 = vperm.xlu0 %1673, %v1488
      %v1675 = vpop.permute.xlu0 %1674
      %1676 = vset.pattern.permute.xlu0 0
      %1677 = vperm.xlu0 %1676, %v1489
      %v1678 = vpop.permute.xlu0 %1677
      %1679 = vset.pattern.permute.xlu0 0
      %1680 = vperm.xlu0 %1679, %v1490
      %v1681 = vpop.permute.xlu0 %1680
      %1682 = vset.pattern.permute.xlu0 0
      %1683 = vperm.xlu0 %1682, %v1491
      %v1684 = vpop.permute.xlu0 %1683
      %1685 = vset.pattern.permute.xlu0 0
      %1686 = vperm.xlu0 %1685, %v1492
      %v1687 = vpop.permute.xlu0 %1686
      %vm1688 = vcmp.eq.s32.totalorder %v1495, %v1498
      %vm1689 = vcmp.eq.s32.totalorder %v1495, %v1501
      %vm1690 = vcmp.eq.s32.totalorder %v1495, %v1504
      %vm1691 = vcmp.eq.s32.totalorder %v1495, %v1507
      %vm1692 = vcmp.eq.s32.totalorder %v1495, %v1510
      %vm1693 = vcmp.eq.s32.totalorder %v1495, %v1513
      %vm1694 = vcmp.eq.s32.totalorder %v1495, %v1516
      %vm1695 = vcmp.eq.s32.totalorder %v1495, %v1519
      %vm1696 = vcmp.eq.s32.totalorder %v1495, %v1522
      %vm1697 = vcmp.eq.s32.totalorder %v1495, %v1525
      %vm1698 = vcmp.eq.s32.totalorder %v1495, %v1528
      %vm1699 = vcmp.eq.s32.totalorder %v1495, %v1531
      %vm1700 = vcmp.eq.s32.totalorder %v1495, %v1534
      %vm1701 = vcmp.eq.s32.totalorder %v1495, %v1537
      %vm1702 = vcmp.eq.s32.totalorder %v1495, %v1540
      %vm1703 = vcmp.eq.s32.totalorder %v1495, %v1543
      %vm1704 = vcmp.eq.s32.totalorder %v1495, %v1546
      %vm1705 = vcmp.eq.s32.totalorder %v1495, %v1549
      %vm1706 = vcmp.eq.s32.totalorder %v1495, %v1552
      %vm1707 = vcmp.eq.s32.totalorder %v1495, %v1555
      %vm1708 = vcmp.eq.s32.totalorder %v1495, %v1558
      %vm1709 = vcmp.eq.s32.totalorder %v1495, %v1561
      %vm1710 = vcmp.eq.s32.totalorder %v1495, %v1564
      %vm1711 = vcmp.eq.s32.totalorder %v1495, %v1567
      %vm1712 = vcmp.eq.s32.totalorder %v1495, %v1570
      %vm1713 = vcmp.eq.s32.totalorder %v1495, %v1573
      %vm1714 = vcmp.eq.s32.totalorder %v1495, %v1576
      %vm1715 = vcmp.eq.s32.totalorder %v1495, %v1579
      %vm1716 = vcmp.eq.s32.totalorder %v1495, %v1582
      %vm1717 = vcmp.eq.s32.totalorder %v1495, %v1585
      %vm1718 = vcmp.eq.s32.totalorder %v1495, %v1588
      %vm1719 = vcmp.eq.s32.totalorder %v1495, %v1591
      %vm1720 = vcmp.eq.s32.totalorder %v1495, %v1594
      %vm1721 = vcmp.eq.s32.totalorder %v1495, %v1597
      %vm1722 = vcmp.eq.s32.totalorder %v1495, %v1600
      %vm1723 = vcmp.eq.s32.totalorder %v1495, %v1603
      %vm1724 = vcmp.eq.s32.totalorder %v1495, %v1606
      %vm1725 = vcmp.eq.s32.totalorder %v1495, %v1609
      %vm1726 = vcmp.eq.s32.totalorder %v1495, %v1612
      %vm1727 = vcmp.eq.s32.totalorder %v1495, %v1615
      %vm1728 = vcmp.eq.s32.totalorder %v1495, %v1618
      %vm1729 = vcmp.eq.s32.totalorder %v1495, %v1621
      %vm1730 = vcmp.eq.s32.totalorder %v1495, %v1624
      %vm1731 = vcmp.eq.s32.totalorder %v1495, %v1627
      %vm1732 = vcmp.eq.s32.totalorder %v1495, %v1630
      %vm1733 = vcmp.eq.s32.totalorder %v1495, %v1633
      %vm1734 = vcmp.eq.s32.totalorder %v1495, %v1636
      %vm1735 = vcmp.eq.s32.totalorder %v1495, %v1639
      %vm1736 = vcmp.eq.s32.totalorder %v1495, %v1642
      %vm1737 = vcmp.eq.s32.totalorder %v1495, %v1645
      %vm1738 = vcmp.eq.s32.totalorder %v1495, %v1648
      %vm1739 = vcmp.eq.s32.totalorder %v1495, %v1651
      %vm1740 = vcmp.eq.s32.totalorder %v1495, %v1654
      %vm1741 = vcmp.eq.s32.totalorder %v1495, %v1657
      %vm1742 = vcmp.eq.s32.totalorder %v1495, %v1660
      %vm1743 = vcmp.eq.s32.totalorder %v1495, %v1663
      %vm1744 = vcmp.eq.s32.totalorder %v1495, %v1666
      %vm1745 = vcmp.eq.s32.totalorder %v1495, %v1669
      %vm1746 = vcmp.eq.s32.totalorder %v1495, %v1672
      %vm1747 = vcmp.eq.s32.totalorder %v1495, %v1675
      %vm1748 = vcmp.eq.s32.totalorder %v1495, %v1678
      %vm1749 = vcmp.eq.s32.totalorder %v1495, %v1681
      %vm1750 = vcmp.eq.s32.totalorder %v1495, %v1684
      %vm1751 = vcmp.eq.s32.totalorder %v1495, %v1687
      %v1752 = vsel %vm1688, %v1111, 0.0
      %v1753 = vsel %vm1689, %v1116, 0.0
      %v1754 = vsel %vm1690, %v1121, 0.0
      %v1755 = vsel %vm1691, %v1126, 0.0
      %v1756 = vsel %vm1692, %v1131, 0.0
      %v1757 = vsel %vm1693, %v1136, 0.0
      %v1758 = vsel %vm1694, %v1141, 0.0
      %v1759 = vsel %vm1695, %v1146, 0.0
      %v1760 = vsel %vm1696, %v1151, 0.0
      %v1761 = vsel %vm1697, %v1156, 0.0
      %v1762 = vsel %vm1698, %v1161, 0.0
      %v1763 = vsel %vm1699, %v1166, 0.0
      %v1764 = vsel %vm1700, %v1171, 0.0
      %v1765 = vsel %vm1701, %v1176, 0.0
      %v1766 = vsel %vm1702, %v1181, 0.0
      %v1767 = vsel %vm1703, %v1186, 0.0
      %v1768 = vsel %vm1704, %v1191, 0.0
      %v1769 = vsel %vm1705, %v1196, 0.0
      %v1770 = vsel %vm1706, %v1201, 0.0
      %v1771 = vsel %vm1707, %v1206, 0.0
      %v1772 = vsel %vm1708, %v1211, 0.0
      %v1773 = vsel %vm1709, %v1216, 0.0
      %v1774 = vsel %vm1710, %v1221, 0.0
      %v1775 = vsel %vm1711, %v1226, 0.0
      %v1776 = vsel %vm1712, %v1231, 0.0
      %v1777 = vsel %vm1713, %v1236, 0.0
      %v1778 = vsel %vm1714, %v1241, 0.0
      %v1779 = vsel %vm1715, %v1246, 0.0
      %v1780 = vsel %vm1716, %v1251, 0.0
      %v1781 = vsel %vm1717, %v1256, 0.0
      %v1782 = vsel %vm1718, %v1261, 0.0
      %v1783 = vsel %vm1719, %v1266, 0.0
      %v1784 = vsel %vm1720, %v1271, 0.0
      %v1785 = vsel %vm1721, %v1276, 0.0
      %v1786 = vsel %vm1722, %v1281, 0.0
      %v1787 = vsel %vm1723, %v1286, 0.0
      %v1788 = vsel %vm1724, %v1291, 0.0
      %v1789 = vsel %vm1725, %v1296, 0.0
      %v1790 = vsel %vm1726, %v1301, 0.0
      %v1791 = vsel %vm1727, %v1306, 0.0
      %v1792 = vsel %vm1728, %v1311, 0.0
      %v1793 = vsel %vm1729, %v1316, 0.0
      %v1794 = vsel %vm1730, %v1321, 0.0
      %v1795 = vsel %vm1731, %v1326, 0.0
      %v1796 = vsel %vm1732, %v1331, 0.0
      %v1797 = vsel %vm1733, %v1336, 0.0
      %v1798 = vsel %vm1734, %v1341, 0.0
      %v1799 = vsel %vm1735, %v1346, 0.0
      %v1800 = vsel %vm1736, %v1351, 0.0
      %v1801 = vsel %vm1737, %v1356, 0.0
      %v1802 = vsel %vm1738, %v1361, 0.0
      %v1803 = vsel %vm1739, %v1366, 0.0
      %v1804 = vsel %vm1740, %v1371, 0.0
      %v1805 = vsel %vm1741, %v1376, 0.0
      %v1806 = vsel %vm1742, %v1381, 0.0
      %v1807 = vsel %vm1743, %v1386, 0.0
      %v1808 = vsel %vm1744, %v1391, 0.0
      %v1809 = vsel %vm1745, %v1396, 0.0
      %v1810 = vsel %vm1746, %v1401, 0.0
      %v1811 = vsel %vm1747, %v1406, 0.0
      %v1812 = vsel %vm1748, %v1411, 0.0
      %v1813 = vsel %vm1749, %v1416, 0.0
      %v1814 = vsel %vm1750, %v1421, 0.0
      %v1815 = vsel %vm1751, %v1426, 0.0
      %v1816 = vld [vmem:[%s6] sm:$0xff]
      %v1817 = vld [vmem:[%s6 + $0x8] sm:$0xff]
      %v1818 = vld [vmem:[%s6 + $0x10] sm:$0xff]
      %v1819 = vld [vmem:[%s6 + $0x18] sm:$0xff]
      %v1820 = vld [vmem:[%s6 + $0x20] sm:$0xff]
      %v1821 = vld [vmem:[%s6 + $0x28] sm:$0xff]
      %v1822 = vld [vmem:[%s6 + $0x30] sm:$0xff]
      %v1823 = vld [vmem:[%s6 + $0x38] sm:$0xff]
      %v1824 = vld [vmem:[%s6 + $0x40] sm:$0xff]
      %v1825 = vld [vmem:[%s6 + $0x48] sm:$0xff]
      %v1826 = vld [vmem:[%s6 + $0x50] sm:$0xff]
      %v1827 = vld [vmem:[%s6 + $0x58] sm:$0xff]
      %v1828 = vld [vmem:[%s6 + $0x60] sm:$0xff]
      %v1829 = vld [vmem:[%s6 + $0x68] sm:$0xff]
      %v1830 = vld [vmem:[%s6 + $0x70] sm:$0xff]
      %v1831 = vld [vmem:[%s6 + $0x78] sm:$0xff]
      %1832 = vset.pattern.permute.xlu0 1
      %1833 = vperm.xlu0 %1832, %v1429
      %v1834 = vpop.permute.xlu0 %1833
      %1835 = vset.pattern.permute.xlu0 1
      %1836 = vperm.xlu0 %1835, %v1430
      %v1837 = vpop.permute.xlu0 %1836
      %1838 = vset.pattern.permute.xlu0 1
      %1839 = vperm.xlu0 %1838, %v1431
      %v1840 = vpop.permute.xlu0 %1839
      %1841 = vset.pattern.permute.xlu0 1
      %1842 = vperm.xlu0 %1841, %v1432
      %v1843 = vpop.permute.xlu0 %1842
      %1844 = vset.pattern.permute.xlu0 1
      %1845 = vperm.xlu0 %1844, %v1433
      %v1846 = vpop.permute.xlu0 %1845
      %1847 = vset.pattern.permute.xlu0 1
      %1848 = vperm.xlu0 %1847, %v1434
      %v1849 = vpop.permute.xlu0 %1848
      %1850 = vset.pattern.permute.xlu0 1
      %1851 = vperm.xlu0 %1850, %v1435
      %v1852 = vpop.permute.xlu0 %1851
      %1853 = vset.pattern.permute.xlu0 1
      %1854 = vperm.xlu0 %1853, %v1436
      %v1855 = vpop.permute.xlu0 %1854
      %1856 = vset.pattern.permute.xlu0 1
      %1857 = vperm.xlu0 %1856, %v1437
      %v1858 = vpop.permute.xlu0 %1857
      %1859 = vset.pattern.permute.xlu0 1
      %1860 = vperm.xlu0 %1859, %v1438
      %v1861 = vpop.permute.xlu0 %1860
      %1862 = vset.pattern.permute.xlu0 1
      %1863 = vperm.xlu0 %1862, %v1439
      %v1864 = vpop.permute.xlu0 %1863
      %1865 = vset.pattern.permute.xlu0 1
      %1866 = vperm.xlu0 %1865, %v1440
      %v1867 = vpop.permute.xlu0 %1866
      %1868 = vset.pattern.permute.xlu0 1
      %1869 = vperm.xlu0 %1868, %v1441
      %v1870 = vpop.permute.xlu0 %1869
      %1871 = vset.pattern.permute.xlu0 1
      %1872 = vperm.xlu0 %1871, %v1442
      %v1873 = vpop.permute.xlu0 %1872
      %1874 = vset.pattern.permute.xlu0 1
      %1875 = vperm.xlu0 %1874, %v1443
      %v1876 = vpop.permute.xlu0 %1875
      %1877 = vset.pattern.permute.xlu0 1
      %1878 = vperm.xlu0 %1877, %v1444
      %v1879 = vpop.permute.xlu0 %1878
      %1880 = vset.pattern.permute.xlu0 1
      %1881 = vperm.xlu0 %1880, %v1445
      %v1882 = vpop.permute.xlu0 %1881
      %1883 = vset.pattern.permute.xlu0 1
      %1884 = vperm.xlu0 %1883, %v1446
      %v1885 = vpop.permute.xlu0 %1884
      %1886 = vset.pattern.permute.xlu0 1
      %1887 = vperm.xlu0 %1886, %v1447
      %v1888 = vpop.permute.xlu0 %1887
      %1889 = vset.pattern.permute.xlu0 1
      %1890 = vperm.xlu0 %1889, %v1448
      %v1891 = vpop.permute.xlu0 %1890
      %1892 = vset.pattern.permute.xlu0 1
      %1893 = vperm.xlu0 %1892, %v1449
      %v1894 = vpop.permute.xlu0 %1893
      %1895 = vset.pattern.permute.xlu0 1
      %1896 = vperm.xlu0 %1895, %v1450
      %v1897 = vpop.permute.xlu0 %1896
      %1898 = vset.pattern.permute.xlu0 1
      %1899 = vperm.xlu0 %1898, %v1451
      %v1900 = vpop.permute.xlu0 %1899
      %1901 = vset.pattern.permute.xlu0 1
      %1902 = vperm.xlu0 %1901, %v1452
      %v1903 = vpop.permute.xlu0 %1902
      %1904 = vset.pattern.permute.xlu0 1
      %1905 = vperm.xlu0 %1904, %v1453
      %v1906 = vpop.permute.xlu0 %1905
      %1907 = vset.pattern.permute.xlu0 1
      %1908 = vperm.xlu0 %1907, %v1454
      %v1909 = vpop.permute.xlu0 %1908
      %1910 = vset.pattern.permute.xlu0 1
      %1911 = vperm.xlu0 %1910, %v1455
      %v1912 = vpop.permute.xlu0 %1911
      %1913 = vset.pattern.permute.xlu0 1
      %1914 = vperm.xlu0 %1913, %v1456
      %v1915 = vpop.permute.xlu0 %1914
      %1916 = vset.pattern.permute.xlu0 1
      %1917 = vperm.xlu0 %1916, %v1457
      %v1918 = vpop.permute.xlu0 %1917
      %1919 = vset.pattern.permute.xlu0 1
      %1920 = vperm.xlu0 %1919, %v1458
      %v1921 = vpop.permute.xlu0 %1920
      %1922 = vset.pattern.permute.xlu0 1
      %1923 = vperm.xlu0 %1922, %v1459
      %v1924 = vpop.permute.xlu0 %1923
      %1925 = vset.pattern.permute.xlu0 1
      %1926 = vperm.xlu0 %1925, %v1460
      %v1927 = vpop.permute.xlu0 %1926
      %1928 = vset.pattern.permute.xlu0 1
      %1929 = vperm.xlu0 %1928, %v1461
      %v1930 = vpop.permute.xlu0 %1929
      %1931 = vset.pattern.permute.xlu0 1
      %1932 = vperm.xlu0 %1931, %v1462
      %v1933 = vpop.permute.xlu0 %1932
      %1934 = vset.pattern.permute.xlu0 1
      %1935 = vperm.xlu0 %1934, %v1463
      %v1936 = vpop.permute.xlu0 %1935
      %1937 = vset.pattern.permute.xlu0 1
      %1938 = vperm.xlu0 %1937, %v1464
      %v1939 = vpop.permute.xlu0 %1938
      %1940 = vset.pattern.permute.xlu0 1
      %1941 = vperm.xlu0 %1940, %v1465
      %v1942 = vpop.permute.xlu0 %1941
      %1943 = vset.pattern.permute.xlu0 1
      %1944 = vperm.xlu0 %1943, %v1466
      %v1945 = vpop.permute.xlu0 %1944
      %1946 = vset.pattern.permute.xlu0 1
      %1947 = vperm.xlu0 %1946, %v1467
      %v1948 = vpop.permute.xlu0 %1947
      %1949 = vset.pattern.permute.xlu0 1
      %1950 = vperm.xlu0 %1949, %v1468
      %v1951 = vpop.permute.xlu0 %1950
      %1952 = vset.pattern.permute.xlu0 1
      %1953 = vperm.xlu0 %1952, %v1469
      %v1954 = vpop.permute.xlu0 %1953
      %1955 = vset.pattern.permute.xlu0 1
      %1956 = vperm.xlu0 %1955, %v1470
      %v1957 = vpop.permute.xlu0 %1956
      %1958 = vset.pattern.permute.xlu0 1
      %1959 = vperm.xlu0 %1958, %v1471
      %v1960 = vpop.permute.xlu0 %1959
      %1961 = vset.pattern.permute.xlu0 1
      %1962 = vperm.xlu0 %1961, %v1472
      %v1963 = vpop.permute.xlu0 %1962
      %1964 = vset.pattern.permute.xlu0 1
      %1965 = vperm.xlu0 %1964, %v1473
      %v1966 = vpop.permute.xlu0 %1965
      %1967 = vset.pattern.permute.xlu0 1
      %1968 = vperm.xlu0 %1967, %v1474
      %v1969 = vpop.permute.xlu0 %1968
      %1970 = vset.pattern.permute.xlu0 1
      %1971 = vperm.xlu0 %1970, %v1475
      %v1972 = vpop.permute.xlu0 %1971
      %1973 = vset.pattern.permute.xlu0 1
      %1974 = vperm.xlu0 %1973, %v1476
      %v1975 = vpop.permute.xlu0 %1974
      %1976 = vset.pattern.permute.xlu0 1
      %1977 = vperm.xlu0 %1976, %v1477
      %v1978 = vpop.permute.xlu0 %1977
      %1979 = vset.pattern.permute.xlu0 1
      %1980 = vperm.xlu0 %1979, %v1478
      %v1981 = vpop.permute.xlu0 %1980
      %1982 = vset.pattern.permute.xlu0 1
      %1983 = vperm.xlu0 %1982, %v1479
      %v1984 = vpop.permute.xlu0 %1983
      %1985 = vset.pattern.permute.xlu0 1
      %1986 = vperm.xlu0 %1985, %v1480
      %v1987 = vpop.permute.xlu0 %1986
      %1988 = vset.pattern.permute.xlu0 1
      %1989 = vperm.xlu0 %1988, %v1481
      %v1990 = vpop.permute.xlu0 %1989
      %1991 = vset.pattern.permute.xlu0 1
      %1992 = vperm.xlu0 %1991, %v1482
      %v1993 = vpop.permute.xlu0 %1992
      %1994 = vset.pattern.permute.xlu0 1
      %1995 = vperm.xlu0 %1994, %v1483
      %v1996 = vpop.permute.xlu0 %1995
      %1997 = vset.pattern.permute.xlu0 1
      %1998 = vperm.xlu0 %1997, %v1484
      %v1999 = vpop.permute.xlu0 %1998
      %2000 = vset.pattern.permute.xlu0 1
      %2001 = vperm.xlu0 %2000, %v1485
      %v2002 = vpop.permute.xlu0 %2001
      %2003 = vset.pattern.permute.xlu0 1
      %2004 = vperm.xlu0 %2003, %v1486
      %v2005 = vpop.permute.xlu0 %2004
      %2006 = vset.pattern.permute.xlu0 1
      %2007 = vperm.xlu0 %2006, %v1487
      %v2008 = vpop.permute.xlu0 %2007
      %2009 = vset.pattern.permute.xlu0 1
      %2010 = vperm.xlu0 %2009, %v1488
      %v2011 = vpop.permute.xlu0 %2010
      %2012 = vset.pattern.permute.xlu0 1
      %2013 = vperm.xlu0 %2012, %v1489
      %v2014 = vpop.permute.xlu0 %2013
      %2015 = vset.pattern.permute.xlu0 1
      %2016 = vperm.xlu0 %2015, %v1490
      %v2017 = vpop.permute.xlu0 %2016
      %2018 = vset.pattern.permute.xlu0 1
      %2019 = vperm.xlu0 %2018, %v1491
      %v2020 = vpop.permute.xlu0 %2019
      %2021 = vset.pattern.permute.xlu0 1
      %2022 = vperm.xlu0 %2021, %v1492
      %v2023 = vpop.permute.xlu0 %2022
      %vm2024 = vcmp.eq.s32.totalorder %v1495, %v1834
      %vm2025 = vcmp.eq.s32.totalorder %v1495, %v1837
      %vm2026 = vcmp.eq.s32.totalorder %v1495, %v1840
      %vm2027 = vcmp.eq.s32.totalorder %v1495, %v1843
      %vm2028 = vcmp.eq.s32.totalorder %v1495, %v1846
      %vm2029 = vcmp.eq.s32.totalorder %v1495, %v1849
      %vm2030 = vcmp.eq.s32.totalorder %v1495, %v1852
      %vm2031 = vcmp.eq.s32.totalorder %v1495, %v1855
      %vm2032 = vcmp.eq.s32.totalorder %v1495, %v1858
      %vm2033 = vcmp.eq.s32.totalorder %v1495, %v1861
      %vm2034 = vcmp.eq.s32.totalorder %v1495, %v1864
      %vm2035 = vcmp.eq.s32.totalorder %v1495, %v1867
      %vm2036 = vcmp.eq.s32.totalorder %v1495, %v1870
      %vm2037 = vcmp.eq.s32.totalorder %v1495, %v1873
      %vm2038 = vcmp.eq.s32.totalorder %v1495, %v1876
      %vm2039 = vcmp.eq.s32.totalorder %v1495, %v1879
      %vm2040 = vcmp.eq.s32.totalorder %v1495, %v1882
      %vm2041 = vcmp.eq.s32.totalorder %v1495, %v1885
      %vm2042 = vcmp.eq.s32.totalorder %v1495, %v1888
      %vm2043 = vcmp.eq.s32.totalorder %v1495, %v1891
      %vm2044 = vcmp.eq.s32.totalorder %v1495, %v1894
      %vm2045 = vcmp.eq.s32.totalorder %v1495, %v1897
      %vm2046 = vcmp.eq.s32.totalorder %v1495, %v1900
      %vm2047 = vcmp.eq.s32.totalorder %v1495, %v1903
      %vm2048 = vcmp.eq.s32.totalorder %v1495, %v1906
      %vm2049 = vcmp.eq.s32.totalorder %v1495, %v1909
      %vm2050 = vcmp.eq.s32.totalorder %v1495, %v1912
      %vm2051 = vcmp.eq.s32.totalorder %v1495, %v1915
      %vm2052 = vcmp.eq.s32.totalorder %v1495, %v1918
      %vm2053 = vcmp.eq.s32.totalorder %v1495, %v1921
      %vm2054 = vcmp.eq.s32.totalorder %v1495, %v1924
      %vm2055 = vcmp.eq.s32.totalorder %v1495, %v1927
      %vm2056 = vcmp.eq.s32.totalorder %v1495, %v1930
      %vm2057 = vcmp.eq.s32.totalorder %v1495, %v1933
      %vm2058 = vcmp.eq.s32.totalorder %v1495, %v1936
      %vm2059 = vcmp.eq.s32.totalorder %v1495, %v1939
      %vm2060 = vcmp.eq.s32.totalorder %v1495, %v1942
      %vm2061 = vcmp.eq.s32.totalorder %v1495, %v1945
      %vm2062 = vcmp.eq.s32.totalorder %v1495, %v1948
      %vm2063 = vcmp.eq.s32.totalorder %v1495, %v1951
      %vm2064 = vcmp.eq.s32.totalorder %v1495, %v1954
      %vm2065 = vcmp.eq.s32.totalorder %v1495, %v1957
      %vm2066 = vcmp.eq.s32.totalorder %v1495, %v1960
      %vm2067 = vcmp.eq.s32.totalorder %v1495, %v1963
      %vm2068 = vcmp.eq.s32.totalorder %v1495, %v1966
      %vm2069 = vcmp.eq.s32.totalorder %v1495, %v1969
      %vm2070 = vcmp.eq.s32.totalorder %v1495, %v1972
      %vm2071 = vcmp.eq.s32.totalorder %v1495, %v1975
      %vm2072 = vcmp.eq.s32.totalorder %v1495, %v1978
      %vm2073 = vcmp.eq.s32.totalorder %v1495, %v1981
      %vm2074 = vcmp.eq.s32.totalorder %v1495, %v1984
      %vm2075 = vcmp.eq.s32.totalorder %v1495, %v1987
      %vm2076 = vcmp.eq.s32.totalorder %v1495, %v1990
      %vm2077 = vcmp.eq.s32.totalorder %v1495, %v1993
      %vm2078 = vcmp.eq.s32.totalorder %v1495, %v1996
      %vm2079 = vcmp.eq.s32.totalorder %v1495, %v1999
      %vm2080 = vcmp.eq.s32.totalorder %v1495, %v2002
      %vm2081 = vcmp.eq.s32.totalorder %v1495, %v2005
      %vm2082 = vcmp.eq.s32.totalorder %v1495, %v2008
      %vm2083 = vcmp.eq.s32.totalorder %v1495, %v2011
      %vm2084 = vcmp.eq.s32.totalorder %v1495, %v2014
      %vm2085 = vcmp.eq.s32.totalorder %v1495, %v2017
      %vm2086 = vcmp.eq.s32.totalorder %v1495, %v2020
      %vm2087 = vcmp.eq.s32.totalorder %v1495, %v2023
      %v2088 = vsel %vm2024, %v1111, 0.0
      %v2089 = vsel %vm2025, %v1116, 0.0
      %v2090 = vsel %vm2026, %v1121, 0.0
      %v2091 = vsel %vm2027, %v1126, 0.0
      %v2092 = vsel %vm2028, %v1131, 0.0
      %v2093 = vsel %vm2029, %v1136, 0.0
      %v2094 = vsel %vm2030, %v1141, 0.0
      %v2095 = vsel %vm2031, %v1146, 0.0
      %v2096 = vsel %vm2032, %v1151, 0.0
      %v2097 = vsel %vm2033, %v1156, 0.0
      %v2098 = vsel %vm2034, %v1161, 0.0
      %v2099 = vsel %vm2035, %v1166, 0.0
      %v2100 = vsel %vm2036, %v1171, 0.0
      %v2101 = vsel %vm2037, %v1176, 0.0
      %v2102 = vsel %vm2038, %v1181, 0.0
      %v2103 = vsel %vm2039, %v1186, 0.0
      %v2104 = vsel %vm2040, %v1191, 0.0
      %v2105 = vsel %vm2041, %v1196, 0.0
      %v2106 = vsel %vm2042, %v1201, 0.0
      %v2107 = vsel %vm2043, %v1206, 0.0
      %v2108 = vsel %vm2044, %v1211, 0.0
      %v2109 = vsel %vm2045, %v1216, 0.0
      %v2110 = vsel %vm2046, %v1221, 0.0
      %v2111 = vsel %vm2047, %v1226, 0.0
      %v2112 = vsel %vm2048, %v1231, 0.0
      %v2113 = vsel %vm2049, %v1236, 0.0
      %v2114 = vsel %vm2050, %v1241, 0.0
      %v2115 = vsel %vm2051, %v1246, 0.0
      %v2116 = vsel %vm2052, %v1251, 0.0
      %v2117 = vsel %vm2053, %v1256, 0.0
      %v2118 = vsel %vm2054, %v1261, 0.0
      %v2119 = vsel %vm2055, %v1266, 0.0
      %v2120 = vsel %vm2056, %v1271, 0.0
      %v2121 = vsel %vm2057, %v1276, 0.0
      %v2122 = vsel %vm2058, %v1281, 0.0
      %v2123 = vsel %vm2059, %v1286, 0.0
      %v2124 = vsel %vm2060, %v1291, 0.0
      %v2125 = vsel %vm2061, %v1296, 0.0
      %v2126 = vsel %vm2062, %v1301, 0.0
      %v2127 = vsel %vm2063, %v1306, 0.0
      %v2128 = vsel %vm2064, %v1311, 0.0
      %v2129 = vsel %vm2065, %v1316, 0.0
      %v2130 = vsel %vm2066, %v1321, 0.0
      %v2131 = vsel %vm2067, %v1326, 0.0
      %v2132 = vsel %vm2068, %v1331, 0.0
      %v2133 = vsel %vm2069, %v1336, 0.0
      %v2134 = vsel %vm2070, %v1341, 0.0
      %v2135 = vsel %vm2071, %v1346, 0.0
      %v2136 = vsel %vm2072, %v1351, 0.0
      %v2137 = vsel %vm2073, %v1356, 0.0
      %v2138 = vsel %vm2074, %v1361, 0.0
      %v2139 = vsel %vm2075, %v1366, 0.0
      %v2140 = vsel %vm2076, %v1371, 0.0
      %v2141 = vsel %vm2077, %v1376, 0.0
      %v2142 = vsel %vm2078, %v1381, 0.0
      %v2143 = vsel %vm2079, %v1386, 0.0
      %v2144 = vsel %vm2080, %v1391, 0.0
      %v2145 = vsel %vm2081, %v1396, 0.0
      %v2146 = vsel %vm2082, %v1401, 0.0
      %v2147 = vsel %vm2083, %v1406, 0.0
      %v2148 = vsel %vm2084, %v1411, 0.0
      %v2149 = vsel %vm2085, %v1416, 0.0
      %v2150 = vsel %vm2086, %v1421, 0.0
      %v2151 = vsel %vm2087, %v1426, 0.0
      %s2152 = scalar_lea.vmem %s6, 128
      %v2153 = vld [vmem:[%s2152] sm:$0xff]
      %v2154 = vld [vmem:[%s2152 + $0x8] sm:$0xff]
      %v2155 = vld [vmem:[%s2152 + $0x10] sm:$0xff]
      %v2156 = vld [vmem:[%s2152 + $0x18] sm:$0xff]
      %v2157 = vld [vmem:[%s2152 + $0x20] sm:$0xff]
      %v2158 = vld [vmem:[%s2152 + $0x28] sm:$0xff]
      %v2159 = vld [vmem:[%s2152 + $0x30] sm:$0xff]
      %v2160 = vld [vmem:[%s2152 + $0x38] sm:$0xff]
      %v2161 = vld [vmem:[%s2152 + $0x40] sm:$0xff]
      %v2162 = vld [vmem:[%s2152 + $0x48] sm:$0xff]
      %v2163 = vld [vmem:[%s2152 + $0x50] sm:$0xff]
      %v2164 = vld [vmem:[%s2152 + $0x58] sm:$0xff]
      %v2165 = vld [vmem:[%s2152 + $0x60] sm:$0xff]
      %v2166 = vld [vmem:[%s2152 + $0x68] sm:$0xff]
      %v2167 = vld [vmem:[%s2152 + $0x70] sm:$0xff]
      %v2168 = vld [vmem:[%s2152 + $0x78] sm:$0xff]
      %2169 = vmatprep.subr.mxu0 0.0
      %2170 = vmatpush1.msra.mxu0 %v2153
      %2171 = vmatprep.subr.mxu0 0.0
      %2172 = vmatpush1.msra.mxu0 %v2154
      %2173 = vmatprep.subr.mxu0 0.0
      %2174 = vmatpush1.msra.mxu0 %v2155
      %2175 = vmatprep.subr.mxu0 0.0
      %2176 = vmatpush1.msra.mxu0 %v2156
      %2177 = vmatprep.subr.mxu0 0.0
      %2178 = vmatpush1.msra.mxu0 %v2157
      %2179 = vmatprep.subr.mxu0 0.0
      %2180 = vmatpush1.msra.mxu0 %v2158
      %2181 = vmatprep.subr.mxu0 0.0
      %2182 = vmatpush1.msra.mxu0 %v2159
      %2183 = vmatprep.subr.mxu0 0.0
      %2184 = vmatpush1.msra.mxu0 %v2160
      %2185 = vmatprep.subr.mxu0 0.0
      %2186 = vmatpush1.msra.mxu0 %v2161
      %2187 = vmatprep.subr.mxu0 0.0
      %2188 = vmatpush1.msra.mxu0 %v2162
      %2189 = vmatprep.subr.mxu0 0.0
      %2190 = vmatpush1.msra.mxu0 %v2163
      %2191 = vmatprep.subr.mxu0 0.0
      %2192 = vmatpush1.msra.mxu0 %v2164
      %2193 = vmatprep.subr.mxu0 0.0
      %2194 = vmatpush1.msra.mxu0 %v2165
      %2195 = vmatprep.subr.mxu0 0.0
      %2196 = vmatpush1.msra.mxu0 %v2166
      %2197 = vmatprep.subr.mxu0 0.0
      %2198 = vmatpush1.msra.mxu0 %v2167
      %2199 = vmatprep.subr.mxu0 0.0
      %2200 = vmatpush1.msra.mxu0 %v2168
      %2201 = vmatprep.subr.mxu0 0.0
      %2202 = vmatpush1.msra.mxu0 0.0
      %2203 = vmatprep.subr.mxu0 0.0
      %2204 = vmatpush1.msra.mxu0 0.0
      %2205 = vmatprep.subr.mxu0 0.0
      %2206 = vmatpush1.msra.mxu0 0.0
      %2207 = vmatprep.subr.mxu0 0.0
      %2208 = vmatpush1.msra.mxu0 0.0
      %2209 = vmatprep.subr.mxu0 0.0
      %2210 = vmatpush1.msra.mxu0 0.0
      %2211 = vmatprep.subr.mxu0 0.0
      %2212 = vmatpush1.msra.mxu0 0.0
      %2213 = vmatprep.subr.mxu0 0.0
      %2214 = vmatpush1.msra.mxu0 0.0
      %2215 = vmatprep.subr.mxu0 0.0
      %2216 = vmatpush1.msra.mxu0 0.0
      %2217 = vmatprep.subr.mxu0 0.0
      %2218 = vmatpush1.msra.mxu0 0.0
      %2219 = vmatprep.subr.mxu0 0.0
      %2220 = vmatpush1.msra.mxu0 0.0
      %2221 = vmatprep.subr.mxu0 0.0
      %2222 = vmatpush1.msra.mxu0 0.0
      %2223 = vmatprep.subr.mxu0 0.0
      %2224 = vmatpush1.msra.mxu0 0.0
      %2225 = vmatprep.subr.mxu0 0.0
      %2226 = vmatpush1.msra.mxu0 0.0
      %2227 = vmatprep.subr.mxu0 0.0
      %2228 = vmatpush1.msra.mxu0 0.0
      %2229 = vmatprep.subr.mxu0 0.0
      %2230 = vmatpush1.msra.mxu0 0.0
      %2231 = vmatprep.subr.mxu0 0.0
      %2232 = vmatpush1.msra.mxu0 0.0
      %2233 = vmatprep.mubr.f32.mxu0 0.0
      %2234 = vmatmul.mubr.f32.gmra.mrb[0].mxu0 %v2088
      %v2235 = vpop.f32.mrb[0].mxu0
      %v2236 = vadd.f32 0.0, %v2235
      %v2237 = vpop.f32.mrb[0].mxu0
      %2238 = vmatprep.mubr.f32.mxu0 0.0
      %2239 = vmatmul.mubr.f32.gmra.mrb[0].mxu0 %v2089
      %v2240 = vpop.f32.mrb[0].mxu0
      %v2241 = vadd.f32 0.0, %v2240
      %v2242 = vpop.f32.mrb[0].mxu0
      %2243 = vmatprep.mubr.f32.mxu0 0.0
      %2244 = vmatmul.mubr.f32.gmra.mrb[0].mxu0 %v2090
      %v2245 = vpop.f32.mrb[0].mxu0
      %v2246 = vadd.f32 0.0, %v2245
      %v2247 = vpop.f32.mrb[0].mxu0
      %2248 = vmatprep.mubr.f32.mxu0 0.0
      %2249 = vmatmul.mubr.f32.gmra.mrb[0].mxu0 %v2091
      %v2250 = vpop.f32.mrb[0].mxu0
      %v2251 = vadd.f32 0.0, %v2250
      %v2252 = vpop.f32.mrb[0].mxu0
      %2253 = vmatprep.mubr.f32.mxu0 0.0
      %2254 = vmatmul.mubr.f32.gmra.mrb[0].mxu0 %v2092
      %v2255 = vpop.f32.mrb[0].mxu0
      %v2256 = vadd.f32 0.0, %v2255
      %v2257 = vpop.f32.mrb[0].mxu0
      %2258 = vmatprep.mubr.f32.mxu0 0.0
      %2259 = vmatmul.mubr.f32.gmra.mrb[0].mxu0 %v2093
      %v2260 = vpop.f32.mrb[0].mxu0
      %v2261 = vadd.f32 0.0, %v2260
      %v2262 = vpop.f32.mrb[0].mxu0
      %2263 = vmatprep.mubr.f32.mxu0 0.0
      %2264 = vmatmul.mubr.f32.gmra.mrb[0].mxu0 %v2094
      %v2265 = vpop.f32.mrb[0].mxu0
      %v2266 = vadd.f32 0.0, %v2265
      %v2267 = vpop.f32.mrb[0].mxu0
      %2268 = vmatprep.mubr.f32.mxu0 0.0
      %2269 = vmatmul.mubr.f32.gmra.mrb[0].mxu0 %v2095
      %v2270 = vpop.f32.mrb[0].mxu0
      %v2271 = vadd.f32 0.0, %v2270
      %v2272 = vpop.f32.mrb[0].mxu0
      %2273 = vmatprep.mubr.f32.mxu0 0.0
      %2274 = vmatmul.mubr.f32.gmra.mrb[0].mxu0 %v2096
      %v2275 = vpop.f32.mrb[0].mxu0
      %v2276 = vadd.f32 0.0, %v2275
      %v2277 = vpop.f32.mrb[0].mxu0
      %2278 = vmatprep.mubr.f32.mxu0 0.0
      %2279 = vmatmul.mubr.f32.gmra.mrb[0].mxu0 %v2097
      %v2280 = vpop.f32.mrb[0].mxu0
      %v2281 = vadd.f32 0.0, %v2280
      %v2282 = vpop.f32.mrb[0].mxu0
      %2283 = vmatprep.mubr.f32.mxu0 0.0
      %2284 = vmatmul.mubr.f32.gmra.mrb[0].mxu0 %v2098
      %v2285 = vpop.f32.mrb[0].mxu0
      %v2286 = vadd.f32 0.0, %v2285
      %v2287 = vpop.f32.mrb[0].mxu0
      %2288 = vmatprep.mubr.f32.mxu0 0.0
      %2289 = vmatmul.mubr.f32.gmra.mrb[0].mxu0 %v2099
      %v2290 = vpop.f32.mrb[0].mxu0
      %v2291 = vadd.f32 0.0, %v2290
      %v2292 = vpop.f32.mrb[0].mxu0
      %2293 = vmatprep.mubr.f32.mxu0 0.0
      %2294 = vmatmul.mubr.f32.gmra.mrb[0].mxu0 %v2100
      %v2295 = vpop.f32.mrb[0].mxu0
      %v2296 = vadd.f32 0.0, %v2295
      %v2297 = vpop.f32.mrb[0].mxu0
      %2298 = vmatprep.mubr.f32.mxu0 0.0
      %2299 = vmatmul.mubr.f32.gmra.mrb[0].mxu0 %v2101
      %v2300 = vpop.f32.mrb[0].mxu0
      %v2301 = vadd.f32 0.0, %v2300
      %v2302 = vpop.f32.mrb[0].mxu0
      %2303 = vmatprep.mubr.f32.mxu0 0.0
      %2304 = vmatmul.mubr.f32.gmra.mrb[0].mxu0 %v2102
      %v2305 = vpop.f32.mrb[0].mxu0
      %v2306 = vadd.f32 0.0, %v2305
      %v2307 = vpop.f32.mrb[0].mxu0
      %2308 = vmatprep.mubr.f32.mxu0 0.0
      %2309 = vmatmul.mubr.f32.gmra.mrb[0].mxu0 %v2103
      %v2310 = vpop.f32.mrb[0].mxu0
      %v2311 = vadd.f32 0.0, %v2310
      %v2312 = vpop.f32.mrb[0].mxu0
      %2313 = vmatprep.mubr.f32.mxu0 0.0
      %2314 = vmatmul.mubr.f32.gmra.mrb[0].mxu0 %v2104
      %v2315 = vpop.f32.mrb[0].mxu0
      %v2316 = vadd.f32 0.0, %v2315
      %v2317 = vpop.f32.mrb[0].mxu0
      %2318 = vmatprep.mubr.f32.mxu0 0.0
      %2319 = vmatmul.mubr.f32.gmra.mrb[0].mxu0 %v2105
      %v2320 = vpop.f32.mrb[0].mxu0
      %v2321 = vadd.f32 0.0, %v2320
      %v2322 = vpop.f32.mrb[0].mxu0
      %2323 = vmatprep.mubr.f32.mxu0 0.0
      %2324 = vmatmul.mubr.f32.gmra.mrb[0].mxu0 %v2106
      %v2325 = vpop.f32.mrb[0].mxu0
      %v2326 = vadd.f32 0.0, %v2325
      %v2327 = vpop.f32.mrb[0].mxu0
      %2328 = vmatprep.mubr.f32.mxu0 0.0
      %2329 = vmatmul.mubr.f32.gmra.mrb[0].mxu0 %v2107
      %v2330 = vpop.f32.mrb[0].mxu0
      %v2331 = vadd.f32 0.0, %v2330
      %v2332 = vpop.f32.mrb[0].mxu0
      %2333 = vmatprep.mubr.f32.mxu0 0.0
      %2334 = vmatmul.mubr.f32.gmra.mrb[0].mxu0 %v2108
      %v2335 = vpop.f32.mrb[0].mxu0
      %v2336 = vadd.f32 0.0, %v2335
      %v2337 = vpop.f32.mrb[0].mxu0
      %2338 = vmatprep.mubr.f32.mxu0 0.0
      %2339 = vmatmul.mubr.f32.gmra.mrb[0].mxu0 %v2109
      %v2340 = vpop.f32.mrb[0].mxu0
      %v2341 = vadd.f32 0.0, %v2340
      %v2342 = vpop.f32.mrb[0].mxu0
      %2343 = vmatprep.mubr.f32.mxu0 0.0
      %2344 = vmatmul.mubr.f32.gmra.mrb[0].mxu0 %v2110
      %v2345 = vpop.f32.mrb[0].mxu0
      %v2346 = vadd.f32 0.0, %v2345
      %v2347 = vpop.f32.mrb[0].mxu0
      %2348 = vmatprep.mubr.f32.mxu0 0.0
      %2349 = vmatmul.mubr.f32.gmra.mrb[0].mxu0 %v2111
      %v2350 = vpop.f32.mrb[0].mxu0
      %v2351 = vadd.f32 0.0, %v2350
      %v2352 = vpop.f32.mrb[0].mxu0
      %2353 = vmatprep.mubr.f32.mxu0 0.0
      %2354 = vmatmul.mubr.f32.gmra.mrb[0].mxu0 %v2112
      %v2355 = vpop.f32.mrb[0].mxu0
      %v2356 = vadd.f32 0.0, %v2355
      %v2357 = vpop.f32.mrb[0].mxu0
      %2358 = vmatprep.mubr.f32.mxu0 0.0
      %2359 = vmatmul.mubr.f32.gmra.mrb[0].mxu0 %v2113
      %v2360 = vpop.f32.mrb[0].mxu0
      %v2361 = vadd.f32 0.0, %v2360
      %v2362 = vpop.f32.mrb[0].mxu0
      %2363 = vmatprep.mubr.f32.mxu0 0.0
      %2364 = vmatmul.mubr.f32.gmra.mrb[0].mxu0 %v2114
      %v2365 = vpop.f32.mrb[0].mxu0
      %v2366 = vadd.f32 0.0, %v2365
      %v2367 = vpop.f32.mrb[0].mxu0
      %2368 = vmatprep.mubr.f32.mxu0 0.0
      %2369 = vmatmul.mubr.f32.gmra.mrb[0].mxu0 %v2115
      %v2370 = vpop.f32.mrb[0].mxu0
      %v2371 = vadd.f32 0.0, %v2370
      %v2372 = vpop.f32.mrb[0].mxu0
      %2373 = vmatprep.mubr.f32.mxu0 0.0
      %2374 = vmatmul.mubr.f32.gmra.mrb[0].mxu0 %v2116
      %v2375 = vpop.f32.mrb[0].mxu0
      %v2376 = vadd.f32 0.0, %v2375
      %v2377 = vpop.f32.mrb[0].mxu0
      %2378 = vmatprep.mubr.f32.mxu0 0.0
      %2379 = vmatmul.mubr.f32.gmra.mrb[0].mxu0 %v2117
      %v2380 = vpop.f32.mrb[0].mxu0
      %v2381 = vadd.f32 0.0, %v2380
      %v2382 = vpop.f32.mrb[0].mxu0
      %2383 = vmatprep.mubr.f32.mxu0 0.0
      %2384 = vmatmul.mubr.f32.gmra.mrb[0].mxu0 %v2118
      %v2385 = vpop.f32.mrb[0].mxu0
      %v2386 = vadd.f32 0.0, %v2385
      %v2387 = vpop.f32.mrb[0].mxu0
      %2388 = vmatprep.mubr.f32.mxu0 0.0
      %2389 = vmatmul.mubr.f32.gmra.mrb[0].mxu0 %v2119
      %v2390 = vpop.f32.mrb[0].mxu0
      %v2391 = vadd.f32 0.0, %v2390
      %v2392 = vpop.f32.mrb[0].mxu0
      %2393 = vmatprep.mubr.f32.mxu0 0.0
      %2394 = vmatmul.mubr.f32.gmra.mrb[0].mxu0 %v2120
      %v2395 = vpop.f32.mrb[0].mxu0
      %v2396 = vadd.f32 0.0, %v2395
      %v2397 = vpop.f32.mrb[0].mxu0
      %2398 = vmatprep.mubr.f32.mxu0 0.0
      %2399 = vmatmul.mubr.f32.gmra.mrb[0].mxu0 %v2121
      %v2400 = vpop.f32.mrb[0].mxu0
      %v2401 = vadd.f32 0.0, %v2400
      %v2402 = vpop.f32.mrb[0].mxu0
      %2403 = vmatprep.mubr.f32.mxu0 0.0
      %2404 = vmatmul.mubr.f32.gmra.mrb[0].mxu0 %v2122
      %v2405 = vpop.f32.mrb[0].mxu0
      %v2406 = vadd.f32 0.0, %v2405
      %v2407 = vpop.f32.mrb[0].mxu0
      %2408 = vmatprep.mubr.f32.mxu0 0.0
      %2409 = vmatmul.mubr.f32.gmra.mrb[0].mxu0 %v2123
      %v2410 = vpop.f32.mrb[0].mxu0
      %v2411 = vadd.f32 0.0, %v2410
      %v2412 = vpop.f32.mrb[0].mxu0
      %2413 = vmatprep.mubr.f32.mxu0 0.0
      %2414 = vmatmul.mubr.f32.gmra.mrb[0].mxu0 %v2124
      %v2415 = vpop.f32.mrb[0].mxu0
      %v2416 = vadd.f32 0.0, %v2415
      %v2417 = vpop.f32.mrb[0].mxu0
      %2418 = vmatprep.mubr.f32.mxu0 0.0
      %2419 = vmatmul.mubr.f32.gmra.mrb[0].mxu0 %v2125
      %v2420 = vpop.f32.mrb[0].mxu0
      %v2421 = vadd.f32 0.0, %v2420
      %v2422 = vpop.f32.mrb[0].mxu0
      %2423 = vmatprep.mubr.f32.mxu0 0.0
      %2424 = vmatmul.mubr.f32.gmra.mrb[0].mxu0 %v2126
      %v2425 = vpop.f32.mrb[0].mxu0
      %v2426 = vadd.f32 0.0, %v2425
      %v2427 = vpop.f32.mrb[0].mxu0
      %2428 = vmatprep.mubr.f32.mxu0 0.0
      %2429 = vmatmul.mubr.f32.gmra.mrb[0].mxu0 %v2127
      %v2430 = vpop.f32.mrb[0].mxu0
      %v2431 = vadd.f32 0.0, %v2430
      %v2432 = vpop.f32.mrb[0].mxu0
      %2433 = vmatprep.mubr.f32.mxu0 0.0
      %2434 = vmatmul.mubr.f32.gmra.mrb[0].mxu0 %v2128
      %v2435 = vpop.f32.mrb[0].mxu0
      %v2436 = vadd.f32 0.0, %v2435
      %v2437 = vpop.f32.mrb[0].mxu0
      %2438 = vmatprep.mubr.f32.mxu0 0.0
      %2439 = vmatmul.mubr.f32.gmra.mrb[0].mxu0 %v2129
      %v2440 = vpop.f32.mrb[0].mxu0
      %v2441 = vadd.f32 0.0, %v2440
      %v2442 = vpop.f32.mrb[0].mxu0
      %2443 = vmatprep.mubr.f32.mxu0 0.0
      %2444 = vmatmul.mubr.f32.gmra.mrb[0].mxu0 %v2130
      %v2445 = vpop.f32.mrb[0].mxu0
      %v2446 = vadd.f32 0.0, %v2445
      %v2447 = vpop.f32.mrb[0].mxu0
      %2448 = vmatprep.mubr.f32.mxu0 0.0
      %2449 = vmatmul.mubr.f32.gmra.mrb[0].mxu0 %v2131
      %v2450 = vpop.f32.mrb[0].mxu0
      %v2451 = vadd.f32 0.0, %v2450
      %v2452 = vpop.f32.mrb[0].mxu0
      %2453 = vmatprep.mubr.f32.mxu0 0.0
      %2454 = vmatmul.mubr.f32.gmra.mrb[0].mxu0 %v2132
      %v2455 = vpop.f32.mrb[0].mxu0
      %v2456 = vadd.f32 0.0, %v2455
      %v2457 = vpop.f32.mrb[0].mxu0
      %2458 = vmatprep.mubr.f32.mxu0 0.0
      %2459 = vmatmul.mubr.f32.gmra.mrb[0].mxu0 %v2133
      %v2460 = vpop.f32.mrb[0].mxu0
      %v2461 = vadd.f32 0.0, %v2460
      %v2462 = vpop.f32.mrb[0].mxu0
      %2463 = vmatprep.mubr.f32.mxu0 0.0
      %2464 = vmatmul.mubr.f32.gmra.mrb[0].mxu0 %v2134
      %v2465 = vpop.f32.mrb[0].mxu0
      %v2466 = vadd.f32 0.0, %v2465
      %v2467 = vpop.f32.mrb[0].mxu0
      %2468 = vmatprep.mubr.f32.mxu0 0.0
      %2469 = vmatmul.mubr.f32.gmra.mrb[0].mxu0 %v2135
      %v2470 = vpop.f32.mrb[0].mxu0
      %v2471 = vadd.f32 0.0, %v2470
      %v2472 = vpop.f32.mrb[0].mxu0
      %2473 = vmatprep.mubr.f32.mxu0 0.0
      %2474 = vmatmul.mubr.f32.gmra.mrb[0].mxu0 %v2136
      %v2475 = vpop.f32.mrb[0].mxu0
      %v2476 = vadd.f32 0.0, %v2475
      %v2477 = vpop.f32.mrb[0].mxu0
      %2478 = vmatprep.mubr.f32.mxu0 0.0
      %2479 = vmatmul.mubr.f32.gmra.mrb[0].mxu0 %v2137
      %v2480 = vpop.f32.mrb[0].mxu0
      %v2481 = vadd.f32 0.0, %v2480
      %v2482 = vpop.f32.mrb[0].mxu0
      %2483 = vmatprep.mubr.f32.mxu0 0.0
      %2484 = vmatmul.mubr.f32.gmra.mrb[0].mxu0 %v2138
      %v2485 = vpop.f32.mrb[0].mxu0
      %v2486 = vadd.f32 0.0, %v2485
      %v2487 = vpop.f32.mrb[0].mxu0
      %2488 = vmatprep.mubr.f32.mxu0 0.0
      %2489 = vmatmul.mubr.f32.gmra.mrb[0].mxu0 %v2139
      %v2490 = vpop.f32.mrb[0].mxu0
      %v2491 = vadd.f32 0.0, %v2490
      %v2492 = vpop.f32.mrb[0].mxu0
      %2493 = vmatprep.mubr.f32.mxu0 0.0
      %2494 = vmatmul.mubr.f32.gmra.mrb[0].mxu0 %v2140
      %v2495 = vpop.f32.mrb[0].mxu0
      %v2496 = vadd.f32 0.0, %v2495
      %v2497 = vpop.f32.mrb[0].mxu0
      %2498 = vmatprep.mubr.f32.mxu0 0.0
      %2499 = vmatmul.mubr.f32.gmra.mrb[0].mxu0 %v2141
      %v2500 = vpop.f32.mrb[0].mxu0
      %v2501 = vadd.f32 0.0, %v2500
      %v2502 = vpop.f32.mrb[0].mxu0
      %2503 = vmatprep.mubr.f32.mxu0 0.0
      %2504 = vmatmul.mubr.f32.gmra.mrb[0].mxu0 %v2142
      %v2505 = vpop.f32.mrb[0].mxu0
      %v2506 = vadd.f32 0.0, %v2505
      %v2507 = vpop.f32.mrb[0].mxu0
      %2508 = vmatprep.mubr.f32.mxu0 0.0
      %2509 = vmatmul.mubr.f32.gmra.mrb[0].mxu0 %v2143
      %v2510 = vpop.f32.mrb[0].mxu0
      %v2511 = vadd.f32 0.0, %v2510
      %v2512 = vpop.f32.mrb[0].mxu0
      %2513 = vmatprep.mubr.f32.mxu0 0.0
      %2514 = vmatmul.mubr.f32.gmra.mrb[0].mxu0 %v2144
      %v2515 = vpop.f32.mrb[0].mxu0
      %v2516 = vadd.f32 0.0, %v2515
      %v2517 = vpop.f32.mrb[0].mxu0
      %2518 = vmatprep.mubr.f32.mxu0 0.0
      %2519 = vmatmul.mubr.f32.gmra.mrb[0].mxu0 %v2145
      %v2520 = vpop.f32.mrb[0].mxu0
      %v2521 = vadd.f32 0.0, %v2520
      %v2522 = vpop.f32.mrb[0].mxu0
      %2523 = vmatprep.mubr.f32.mxu0 0.0
      %2524 = vmatmul.mubr.f32.gmra.mrb[0].mxu0 %v2146
      %v2525 = vpop.f32.mrb[0].mxu0
      %v2526 = vadd.f32 0.0, %v2525
      %v2527 = vpop.f32.mrb[0].mxu0
      %2528 = vmatprep.mubr.f32.mxu0 0.0
      %2529 = vmatmul.mubr.f32.gmra.mrb[0].mxu0 %v2147
      %v2530 = vpop.f32.mrb[0].mxu0
      %v2531 = vadd.f32 0.0, %v2530
      %v2532 = vpop.f32.mrb[0].mxu0
      %2533 = vmatprep.mubr.f32.mxu0 0.0
      %2534 = vmatmul.mubr.f32.gmra.mrb[0].mxu0 %v2148
      %v2535 = vpop.f32.mrb[0].mxu0
      %v2536 = vadd.f32 0.0, %v2535
      %v2537 = vpop.f32.mrb[0].mxu0
      %2538 = vmatprep.mubr.f32.mxu0 0.0
      %2539 = vmatmul.mubr.f32.gmra.mrb[0].mxu0 %v2149
      %v2540 = vpop.f32.mrb[0].mxu0
      %v2541 = vadd.f32 0.0, %v2540
      %v2542 = vpop.f32.mrb[0].mxu0
      %2543 = vmatprep.mubr.f32.mxu0 0.0
      %2544 = vmatmul.mubr.f32.gmra.mrb[0].mxu0 %v2150
      %v2545 = vpop.f32.mrb[0].mxu0
      %v2546 = vadd.f32 0.0, %v2545
      %v2547 = vpop.f32.mrb[0].mxu0
      %2548 = vmatprep.mubr.f32.mxu0 0.0
      %2549 = vmatmul.mubr.f32.gmra.mrb[0].mxu0 %v2151
      %v2550 = vpop.f32.mrb[0].mxu0
      %v2551 = vadd.f32 0.0, %v2550
      %v2552 = vpop.f32.mrb[0].mxu0
      %2553 = vdwg.mxu0
      %2554 = vmatprep.subr.mxu0 0.0
      %2555 = vmatpush1.msra.mxu0 %v1816
      %2556 = vmatprep.subr.mxu0 0.0
      %2557 = vmatpush1.msra.mxu0 %v1817
      %2558 = vmatprep.subr.mxu0 0.0
      %2559 = vmatpush1.msra.mxu0 %v1818
      %2560 = vmatprep.subr.mxu0 0.0
      %2561 = vmatpush1.msra.mxu0 %v1819
      %2562 = vmatprep.subr.mxu0 0.0
      %2563 = vmatpush1.msra.mxu0 %v1820
      %2564 = vmatprep.subr.mxu0 0.0
      %2565 = vmatpush1.msra.mxu0 %v1821
      %2566 = vmatprep.subr.mxu0 0.0
      %2567 = vmatpush1.msra.mxu0 %v1822
      %2568 = vmatprep.subr.mxu0 0.0
      %2569 = vmatpush1.msra.mxu0 %v1823
      %2570 = vmatprep.subr.mxu0 0.0
      %2571 = vmatpush1.msra.mxu0 %v1824
      %2572 = vmatprep.subr.mxu0 0.0
      %2573 = vmatpush1.msra.mxu0 %v1825
      %2574 = vmatprep.subr.mxu0 0.0
      %2575 = vmatpush1.msra.mxu0 %v1826
      %2576 = vmatprep.subr.mxu0 0.0
      %2577 = vmatpush1.msra.mxu0 %v1827
      %2578 = vmatprep.subr.mxu0 0.0
      %2579 = vmatpush1.msra.mxu0 %v1828
      %2580 = vmatprep.subr.mxu0 0.0
      %2581 = vmatpush1.msra.mxu0 %v1829
      %2582 = vmatprep.subr.mxu0 0.0
      %2583 = vmatpush1.msra.mxu0 %v1830
      %2584 = vmatprep.subr.mxu0 0.0
      %2585 = vmatpush1.msra.mxu0 %v1831
      %2586 = vmatprep.subr.mxu0 0.0
      %2587 = vmatpush1.msra.mxu0 0.0
      %2588 = vmatprep.subr.mxu0 0.0
      %2589 = vmatpush1.msra.mxu0 0.0
      %2590 = vmatprep.subr.mxu0 0.0
      %2591 = vmatpush1.msra.mxu0 0.0
      %2592 = vmatprep.subr.mxu0 0.0
      %2593 = vmatpush1.msra.mxu0 0.0
      %2594 = vmatprep.subr.mxu0 0.0
      %2595 = vmatpush1.msra.mxu0 0.0
      %2596 = vmatprep.subr.mxu0 0.0
      %2597 = vmatpush1.msra.mxu0 0.0
      %2598 = vmatprep.subr.mxu0 0.0
      %2599 = vmatpush1.msra.mxu0 0.0
      %2600 = vmatprep.subr.mxu0 0.0
      %2601 = vmatpush1.msra.mxu0 0.0
      %2602 = vmatprep.subr.mxu0 0.0
      %2603 = vmatpush1.msra.mxu0 0.0
      %2604 = vmatprep.subr.mxu0 0.0
      %2605 = vmatpush1.msra.mxu0 0.0
      %2606 = vmatprep.subr.mxu0 0.0
      %2607 = vmatpush1.msra.mxu0 0.0
      %2608 = vmatprep.subr.mxu0 0.0
      %2609 = vmatpush1.msra.mxu0 0.0
      %2610 = vmatprep.subr.mxu0 0.0
      %2611 = vmatpush1.msra.mxu0 0.0
      %2612 = vmatprep.subr.mxu0 0.0
      %2613 = vmatpush1.msra.mxu0 0.0
      %2614 = vmatprep.subr.mxu0 0.0
      %2615 = vmatpush1.msra.mxu0 0.0
      %2616 = vmatprep.subr.mxu0 0.0
      %2617 = vmatpush1.msra.mxu0 0.0
      %2618 = vmatprep.mubr.f32.mxu0 0.0
      %2619 = vmatmul.mubr.f32.gmra.mrb[0].mxu0 %v1752
      %v2620 = vpop.f32.mrb[0].mxu0
      %v2621 = vadd.f32 %v2236, %v2620
      %v2622 = vpop.f32.mrb[0].mxu0
      %2623 = vmatprep.mubr.f32.mxu0 0.0
      %2624 = vmatmul.mubr.f32.gmra.mrb[0].mxu0 %v1753
      %v2625 = vpop.f32.mrb[0].mxu0
      %v2626 = vadd.f32 %v2241, %v2625
      %v2627 = vpop.f32.mrb[0].mxu0
      %2628 = vmatprep.mubr.f32.mxu0 0.0
      %2629 = vmatmul.mubr.f32.gmra.mrb[0].mxu0 %v1754
      %v2630 = vpop.f32.mrb[0].mxu0
      %v2631 = vadd.f32 %v2246, %v2630
      %v2632 = vpop.f32.mrb[0].mxu0
      %2633 = vmatprep.mubr.f32.mxu0 0.0
      %2634 = vmatmul.mubr.f32.gmra.mrb[0].mxu0 %v1755
      %v2635 = vpop.f32.mrb[0].mxu0
      %v2636 = vadd.f32 %v2251, %v2635
      %v2637 = vpop.f32.mrb[0].mxu0
      %2638 = vmatprep.mubr.f32.mxu0 0.0
      %2639 = vmatmul.mubr.f32.gmra.mrb[0].mxu0 %v1756
      %v2640 = vpop.f32.mrb[0].mxu0
      %v2641 = vadd.f32 %v2256, %v2640
      %v2642 = vpop.f32.mrb[0].mxu0
      %2643 = vmatprep.mubr.f32.mxu0 0.0
      %2644 = vmatmul.mubr.f32.gmra.mrb[0].mxu0 %v1757
      %v2645 = vpop.f32.mrb[0].mxu0
      %v2646 = vadd.f32 %v2261, %v2645
      %v2647 = vpop.f32.mrb[0].mxu0
      %2648 = vmatprep.mubr.f32.mxu0 0.0
      %2649 = vmatmul.mubr.f32.gmra.mrb[0].mxu0 %v1758
      %v2650 = vpop.f32.mrb[0].mxu0
      %v2651 = vadd.f32 %v2266, %v2650
      %v2652 = vpop.f32.mrb[0].mxu0
      %2653 = vmatprep.mubr.f32.mxu0 0.0
      %2654 = vmatmul.mubr.f32.gmra.mrb[0].mxu0 %v1759
      %v2655 = vpop.f32.mrb[0].mxu0
      %v2656 = vadd.f32 %v2271, %v2655
      %v2657 = vpop.f32.mrb[0].mxu0
      %2658 = vmatprep.mubr.f32.mxu0 0.0
      %2659 = vmatmul.mubr.f32.gmra.mrb[0].mxu0 %v1760
      %v2660 = vpop.f32.mrb[0].mxu0
      %v2661 = vadd.f32 %v2276, %v2660
      %v2662 = vpop.f32.mrb[0].mxu0
      %2663 = vmatprep.mubr.f32.mxu0 0.0
      %2664 = vmatmul.mubr.f32.gmra.mrb[0].mxu0 %v1761
      %v2665 = vpop.f32.mrb[0].mxu0
      %v2666 = vadd.f32 %v2281, %v2665
      %v2667 = vpop.f32.mrb[0].mxu0
      %2668 = vmatprep.mubr.f32.mxu0 0.0
      %2669 = vmatmul.mubr.f32.gmra.mrb[0].mxu0 %v1762
      %v2670 = vpop.f32.mrb[0].mxu0
      %v2671 = vadd.f32 %v2286, %v2670
      %v2672 = vpop.f32.mrb[0].mxu0
      %2673 = vmatprep.mubr.f32.mxu0 0.0
      %2674 = vmatmul.mubr.f32.gmra.mrb[0].mxu0 %v1763
      %v2675 = vpop.f32.mrb[0].mxu0
      %v2676 = vadd.f32 %v2291, %v2675
      %v2677 = vpop.f32.mrb[0].mxu0
      %2678 = vmatprep.mubr.f32.mxu0 0.0
      %2679 = vmatmul.mubr.f32.gmra.mrb[0].mxu0 %v1764
      %v2680 = vpop.f32.mrb[0].mxu0
      %v2681 = vadd.f32 %v2296, %v2680
      %v2682 = vpop.f32.mrb[0].mxu0
      %2683 = vmatprep.mubr.f32.mxu0 0.0
      %2684 = vmatmul.mubr.f32.gmra.mrb[0].mxu0 %v1765
      %v2685 = vpop.f32.mrb[0].mxu0
      %v2686 = vadd.f32 %v2301, %v2685
      %v2687 = vpop.f32.mrb[0].mxu0
      %2688 = vmatprep.mubr.f32.mxu0 0.0
      %2689 = vmatmul.mubr.f32.gmra.mrb[0].mxu0 %v1766
      %v2690 = vpop.f32.mrb[0].mxu0
      %v2691 = vadd.f32 %v2306, %v2690
      %v2692 = vpop.f32.mrb[0].mxu0
      %2693 = vmatprep.mubr.f32.mxu0 0.0
      %2694 = vmatmul.mubr.f32.gmra.mrb[0].mxu0 %v1767
      %v2695 = vpop.f32.mrb[0].mxu0
      %v2696 = vadd.f32 %v2311, %v2695
      %v2697 = vpop.f32.mrb[0].mxu0
      %2698 = vmatprep.mubr.f32.mxu0 0.0
      %2699 = vmatmul.mubr.f32.gmra.mrb[0].mxu0 %v1768
      %v2700 = vpop.f32.mrb[0].mxu0
      %v2701 = vadd.f32 %v2316, %v2700
      %v2702 = vpop.f32.mrb[0].mxu0
      %2703 = vmatprep.mubr.f32.mxu0 0.0
      %2704 = vmatmul.mubr.f32.gmra.mrb[0].mxu0 %v1769
      %v2705 = vpop.f32.mrb[0].mxu0
      %v2706 = vadd.f32 %v2321, %v2705
      %v2707 = vpop.f32.mrb[0].mxu0
      %2708 = vmatprep.mubr.f32.mxu0 0.0
      %2709 = vmatmul.mubr.f32.gmra.mrb[0].mxu0 %v1770
      %v2710 = vpop.f32.mrb[0].mxu0
      %v2711 = vadd.f32 %v2326, %v2710
      %v2712 = vpop.f32.mrb[0].mxu0
      %2713 = vmatprep.mubr.f32.mxu0 0.0
      %2714 = vmatmul.mubr.f32.gmra.mrb[0].mxu0 %v1771
      %v2715 = vpop.f32.mrb[0].mxu0
      %v2716 = vadd.f32 %v2331, %v2715
      %v2717 = vpop.f32.mrb[0].mxu0
      %2718 = vmatprep.mubr.f32.mxu0 0.0
      %2719 = vmatmul.mubr.f32.gmra.mrb[0].mxu0 %v1772
      %v2720 = vpop.f32.mrb[0].mxu0
      %v2721 = vadd.f32 %v2336, %v2720
      %v2722 = vpop.f32.mrb[0].mxu0
      %2723 = vmatprep.mubr.f32.mxu0 0.0
      %2724 = vmatmul.mubr.f32.gmra.mrb[0].mxu0 %v1773
      %v2725 = vpop.f32.mrb[0].mxu0
      %v2726 = vadd.f32 %v2341, %v2725
      %v2727 = vpop.f32.mrb[0].mxu0
      %2728 = vmatprep.mubr.f32.mxu0 0.0
      %2729 = vmatmul.mubr.f32.gmra.mrb[0].mxu0 %v1774
      %v2730 = vpop.f32.mrb[0].mxu0
      %v2731 = vadd.f32 %v2346, %v2730
      %v2732 = vpop.f32.mrb[0].mxu0
      %2733 = vmatprep.mubr.f32.mxu0 0.0
      %2734 = vmatmul.mubr.f32.gmra.mrb[0].mxu0 %v1775
      %v2735 = vpop.f32.mrb[0].mxu0
      %v2736 = vadd.f32 %v2351, %v2735
      %v2737 = vpop.f32.mrb[0].mxu0
      %2738 = vmatprep.mubr.f32.mxu0 0.0
      %2739 = vmatmul.mubr.f32.gmra.mrb[0].mxu0 %v1776
      %v2740 = vpop.f32.mrb[0].mxu0
      %v2741 = vadd.f32 %v2356, %v2740
      %v2742 = vpop.f32.mrb[0].mxu0
      %2743 = vmatprep.mubr.f32.mxu0 0.0
      %2744 = vmatmul.mubr.f32.gmra.mrb[0].mxu0 %v1777
      %v2745 = vpop.f32.mrb[0].mxu0
      %v2746 = vadd.f32 %v2361, %v2745
      %v2747 = vpop.f32.mrb[0].mxu0
      %2748 = vmatprep.mubr.f32.mxu0 0.0
      %2749 = vmatmul.mubr.f32.gmra.mrb[0].mxu0 %v1778
      %v2750 = vpop.f32.mrb[0].mxu0
      %v2751 = vadd.f32 %v2366, %v2750
      %v2752 = vpop.f32.mrb[0].mxu0
      %2753 = vmatprep.mubr.f32.mxu0 0.0
      %2754 = vmatmul.mubr.f32.gmra.mrb[0].mxu0 %v1779
      %v2755 = vpop.f32.mrb[0].mxu0
      %v2756 = vadd.f32 %v2371, %v2755
      %v2757 = vpop.f32.mrb[0].mxu0
      %2758 = vmatprep.mubr.f32.mxu0 0.0
      %2759 = vmatmul.mubr.f32.gmra.mrb[0].mxu0 %v1780
      %v2760 = vpop.f32.mrb[0].mxu0
      %v2761 = vadd.f32 %v2376, %v2760
      %v2762 = vpop.f32.mrb[0].mxu0
      %2763 = vmatprep.mubr.f32.mxu0 0.0
      %2764 = vmatmul.mubr.f32.gmra.mrb[0].mxu0 %v1781
      %v2765 = vpop.f32.mrb[0].mxu0
      %v2766 = vadd.f32 %v2381, %v2765
      %v2767 = vpop.f32.mrb[0].mxu0
      %2768 = vmatprep.mubr.f32.mxu0 0.0
      %2769 = vmatmul.mubr.f32.gmra.mrb[0].mxu0 %v1782
      %v2770 = vpop.f32.mrb[0].mxu0
      %v2771 = vadd.f32 %v2386, %v2770
      %v2772 = vpop.f32.mrb[0].mxu0
      %2773 = vmatprep.mubr.f32.mxu0 0.0
      %2774 = vmatmul.mubr.f32.gmra.mrb[0].mxu0 %v1783
      %v2775 = vpop.f32.mrb[0].mxu0
      %v2776 = vadd.f32 %v2391, %v2775
      %v2777 = vpop.f32.mrb[0].mxu0
      %2778 = vmatprep.mubr.f32.mxu0 0.0
      %2779 = vmatmul.mubr.f32.gmra.mrb[0].mxu0 %v1784
      %v2780 = vpop.f32.mrb[0].mxu0
      %v2781 = vadd.f32 %v2396, %v2780
      %v2782 = vpop.f32.mrb[0].mxu0
      %2783 = vmatprep.mubr.f32.mxu0 0.0
      %2784 = vmatmul.mubr.f32.gmra.mrb[0].mxu0 %v1785
      %v2785 = vpop.f32.mrb[0].mxu0
      %v2786 = vadd.f32 %v2401, %v2785
      %v2787 = vpop.f32.mrb[0].mxu0
      %2788 = vmatprep.mubr.f32.mxu0 0.0
      %2789 = vmatmul.mubr.f32.gmra.mrb[0].mxu0 %v1786
      %v2790 = vpop.f32.mrb[0].mxu0
      %v2791 = vadd.f32 %v2406, %v2790
      %v2792 = vpop.f32.mrb[0].mxu0
      %2793 = vmatprep.mubr.f32.mxu0 0.0
      %2794 = vmatmul.mubr.f32.gmra.mrb[0].mxu0 %v1787
      %v2795 = vpop.f32.mrb[0].mxu0
      %v2796 = vadd.f32 %v2411, %v2795
      %v2797 = vpop.f32.mrb[0].mxu0
      %2798 = vmatprep.mubr.f32.mxu0 0.0
      %2799 = vmatmul.mubr.f32.gmra.mrb[0].mxu0 %v1788
      %v2800 = vpop.f32.mrb[0].mxu0
      %v2801 = vadd.f32 %v2416, %v2800
      %v2802 = vpop.f32.mrb[0].mxu0
      %2803 = vmatprep.mubr.f32.mxu0 0.0
      %2804 = vmatmul.mubr.f32.gmra.mrb[0].mxu0 %v1789
      %v2805 = vpop.f32.mrb[0].mxu0
      %v2806 = vadd.f32 %v2421, %v2805
      %v2807 = vpop.f32.mrb[0].mxu0
      %2808 = vmatprep.mubr.f32.mxu0 0.0
      %2809 = vmatmul.mubr.f32.gmra.mrb[0].mxu0 %v1790
      %v2810 = vpop.f32.mrb[0].mxu0
      %v2811 = vadd.f32 %v2426, %v2810
      %v2812 = vpop.f32.mrb[0].mxu0
      %2813 = vmatprep.mubr.f32.mxu0 0.0
      %2814 = vmatmul.mubr.f32.gmra.mrb[0].mxu0 %v1791
      %v2815 = vpop.f32.mrb[0].mxu0
      %v2816 = vadd.f32 %v2431, %v2815
      %v2817 = vpop.f32.mrb[0].mxu0
      %2818 = vmatprep.mubr.f32.mxu0 0.0
      %2819 = vmatmul.mubr.f32.gmra.mrb[0].mxu0 %v1792
      %v2820 = vpop.f32.mrb[0].mxu0
      %v2821 = vadd.f32 %v2436, %v2820
      %v2822 = vpop.f32.mrb[0].mxu0
      %2823 = vmatprep.mubr.f32.mxu0 0.0
      %2824 = vmatmul.mubr.f32.gmra.mrb[0].mxu0 %v1793
      %v2825 = vpop.f32.mrb[0].mxu0
      %v2826 = vadd.f32 %v2441, %v2825
      %v2827 = vpop.f32.mrb[0].mxu0
      %2828 = vmatprep.mubr.f32.mxu0 0.0
      %2829 = vmatmul.mubr.f32.gmra.mrb[0].mxu0 %v1794
      %v2830 = vpop.f32.mrb[0].mxu0
      %v2831 = vadd.f32 %v2446, %v2830
      %v2832 = vpop.f32.mrb[0].mxu0
      %2833 = vmatprep.mubr.f32.mxu0 0.0
      %2834 = vmatmul.mubr.f32.gmra.mrb[0].mxu0 %v1795
      %v2835 = vpop.f32.mrb[0].mxu0
      %v2836 = vadd.f32 %v2451, %v2835
      %v2837 = vpop.f32.mrb[0].mxu0
      %2838 = vmatprep.mubr.f32.mxu0 0.0
      %2839 = vmatmul.mubr.f32.gmra.mrb[0].mxu0 %v1796
      %v2840 = vpop.f32.mrb[0].mxu0
      %v2841 = vadd.f32 %v2456, %v2840
      %v2842 = vpop.f32.mrb[0].mxu0
      %2843 = vmatprep.mubr.f32.mxu0 0.0
      %2844 = vmatmul.mubr.f32.gmra.mrb[0].mxu0 %v1797
      %v2845 = vpop.f32.mrb[0].mxu0
      %v2846 = vadd.f32 %v2461, %v2845
      %v2847 = vpop.f32.mrb[0].mxu0
      %2848 = vmatprep.mubr.f32.mxu0 0.0
      %2849 = vmatmul.mubr.f32.gmra.mrb[0].mxu0 %v1798
      %v2850 = vpop.f32.mrb[0].mxu0
      %v2851 = vadd.f32 %v2466, %v2850
      %v2852 = vpop.f32.mrb[0].mxu0
      %2853 = vmatprep.mubr.f32.mxu0 0.0
      %2854 = vmatmul.mubr.f32.gmra.mrb[0].mxu0 %v1799
      %v2855 = vpop.f32.mrb[0].mxu0
      %v2856 = vadd.f32 %v2471, %v2855
      %v2857 = vpop.f32.mrb[0].mxu0
      %2858 = vmatprep.mubr.f32.mxu0 0.0
      %2859 = vmatmul.mubr.f32.gmra.mrb[0].mxu0 %v1800
      %v2860 = vpop.f32.mrb[0].mxu0
      %v2861 = vadd.f32 %v2476, %v2860
      %v2862 = vpop.f32.mrb[0].mxu0
      %2863 = vmatprep.mubr.f32.mxu0 0.0
      %2864 = vmatmul.mubr.f32.gmra.mrb[0].mxu0 %v1801
      %v2865 = vpop.f32.mrb[0].mxu0
      %v2866 = vadd.f32 %v2481, %v2865
      %v2867 = vpop.f32.mrb[0].mxu0
      %2868 = vmatprep.mubr.f32.mxu0 0.0
      %2869 = vmatmul.mubr.f32.gmra.mrb[0].mxu0 %v1802
      %v2870 = vpop.f32.mrb[0].mxu0
      %v2871 = vadd.f32 %v2486, %v2870
      %v2872 = vpop.f32.mrb[0].mxu0
      %2873 = vmatprep.mubr.f32.mxu0 0.0
      %2874 = vmatmul.mubr.f32.gmra.mrb[0].mxu0 %v1803
      %v2875 = vpop.f32.mrb[0].mxu0
      %v2876 = vadd.f32 %v2491, %v2875
      %v2877 = vpop.f32.mrb[0].mxu0
      %2878 = vmatprep.mubr.f32.mxu0 0.0
      %2879 = vmatmul.mubr.f32.gmra.mrb[0].mxu0 %v1804
      %v2880 = vpop.f32.mrb[0].mxu0
      %v2881 = vadd.f32 %v2496, %v2880
      %v2882 = vpop.f32.mrb[0].mxu0
      %2883 = vmatprep.mubr.f32.mxu0 0.0
      %2884 = vmatmul.mubr.f32.gmra.mrb[0].mxu0 %v1805
      %v2885 = vpop.f32.mrb[0].mxu0
      %v2886 = vadd.f32 %v2501, %v2885
      %v2887 = vpop.f32.mrb[0].mxu0
      %2888 = vmatprep.mubr.f32.mxu0 0.0
      %2889 = vmatmul.mubr.f32.gmra.mrb[0].mxu0 %v1806
      %v2890 = vpop.f32.mrb[0].mxu0
      %v2891 = vadd.f32 %v2506, %v2890
      %v2892 = vpop.f32.mrb[0].mxu0
      %2893 = vmatprep.mubr.f32.mxu0 0.0
      %2894 = vmatmul.mubr.f32.gmra.mrb[0].mxu0 %v1807
      %v2895 = vpop.f32.mrb[0].mxu0
      %v2896 = vadd.f32 %v2511, %v2895
      %v2897 = vpop.f32.mrb[0].mxu0
      %2898 = vmatprep.mubr.f32.mxu0 0.0
      %2899 = vmatmul.mubr.f32.gmra.mrb[0].mxu0 %v1808
      %v2900 = vpop.f32.mrb[0].mxu0
      %v2901 = vadd.f32 %v2516, %v2900
      %v2902 = vpop.f32.mrb[0].mxu0
      %2903 = vmatprep.mubr.f32.mxu0 0.0
      %2904 = vmatmul.mubr.f32.gmra.mrb[0].mxu0 %v1809
      %v2905 = vpop.f32.mrb[0].mxu0
      %v2906 = vadd.f32 %v2521, %v2905
      %v2907 = vpop.f32.mrb[0].mxu0
      %2908 = vmatprep.mubr.f32.mxu0 0.0
      %2909 = vmatmul.mubr.f32.gmra.mrb[0].mxu0 %v1810
      %v2910 = vpop.f32.mrb[0].mxu0
      %v2911 = vadd.f32 %v2526, %v2910
      %v2912 = vpop.f32.mrb[0].mxu0
      %2913 = vmatprep.mubr.f32.mxu0 0.0
      %2914 = vmatmul.mubr.f32.gmra.mrb[0].mxu0 %v1811
      %v2915 = vpop.f32.mrb[0].mxu0
      %v2916 = vadd.f32 %v2531, %v2915
      %v2917 = vpop.f32.mrb[0].mxu0
      %2918 = vmatprep.mubr.f32.mxu0 0.0
      %2919 = vmatmul.mubr.f32.gmra.mrb[0].mxu0 %v1812
      %v2920 = vpop.f32.mrb[0].mxu0
      %v2921 = vadd.f32 %v2536, %v2920
      %v2922 = vpop.f32.mrb[0].mxu0
      %2923 = vmatprep.mubr.f32.mxu0 0.0
      %2924 = vmatmul.mubr.f32.gmra.mrb[0].mxu0 %v1813
      %v2925 = vpop.f32.mrb[0].mxu0
      %v2926 = vadd.f32 %v2541, %v2925
      %v2927 = vpop.f32.mrb[0].mxu0
      %2928 = vmatprep.mubr.f32.mxu0 0.0
      %2929 = vmatmul.mubr.f32.gmra.mrb[0].mxu0 %v1814
      %v2930 = vpop.f32.mrb[0].mxu0
      %v2931 = vadd.f32 %v2546, %v2930
      %v2932 = vpop.f32.mrb[0].mxu0
      %2933 = vmatprep.mubr.f32.mxu0 0.0
      %2934 = vmatmul.mubr.f32.gmra.mrb[0].mxu0 %v1815
      %v2935 = vpop.f32.mrb[0].mxu0
      %v2936 = vadd.f32 %v2551, %v2935
      %v2937 = vpop.f32.mrb[0].mxu0
      %2938 = vdwg.mxu0
      %2939 = vset.pattern.permute.xlu0 2
      %2940 = vperm.xlu0 %2939, %v1429
      %v2941 = vpop.permute.xlu0 %2940
      %2942 = vset.pattern.permute.xlu0 2
      %2943 = vperm.xlu0 %2942, %v1430
      %v2944 = vpop.permute.xlu0 %2943
      %2945 = vset.pattern.permute.xlu0 2
      %2946 = vperm.xlu0 %2945, %v1431
      %v2947 = vpop.permute.xlu0 %2946
      %2948 = vset.pattern.permute.xlu0 2
      %2949 = vperm.xlu0 %2948, %v1432
      %v2950 = vpop.permute.xlu0 %2949
      %2951 = vset.pattern.permute.xlu0 2
      %2952 = vperm.xlu0 %2951, %v1433
      %v2953 = vpop.permute.xlu0 %2952
      %2954 = vset.pattern.permute.xlu0 2
      %2955 = vperm.xlu0 %2954, %v1434
      %v2956 = vpop.permute.xlu0 %2955
      %2957 = vset.pattern.permute.xlu0 2
      %2958 = vperm.xlu0 %2957, %v1435
      %v2959 = vpop.permute.xlu0 %2958
      %2960 = vset.pattern.permute.xlu0 2
      %2961 = vperm.xlu0 %2960, %v1436
      %v2962 = vpop.permute.xlu0 %2961
      %2963 = vset.pattern.permute.xlu0 2
      %2964 = vperm.xlu0 %2963, %v1437
      %v2965 = vpop.permute.xlu0 %2964
      %2966 = vset.pattern.permute.xlu0 2
      %2967 = vperm.xlu0 %2966, %v1438
      %v2968 = vpop.permute.xlu0 %2967
      %2969 = vset.pattern.permute.xlu0 2
      %2970 = vperm.xlu0 %2969, %v1439
      %v2971 = vpop.permute.xlu0 %2970
      %2972 = vset.pattern.permute.xlu0 2
      %2973 = vperm.xlu0 %2972, %v1440
      %v2974 = vpop.permute.xlu0 %2973
      %2975 = vset.pattern.permute.xlu0 2
      %2976 = vperm.xlu0 %2975, %v1441
      %v2977 = vpop.permute.xlu0 %2976
      %2978 = vset.pattern.permute.xlu0 2
      %2979 = vperm.xlu0 %2978, %v1442
      %v2980 = vpop.permute.xlu0 %2979
      %2981 = vset.pattern.permute.xlu0 2
      %2982 = vperm.xlu0 %2981, %v1443
      %v2983 = vpop.permute.xlu0 %2982
      %2984 = vset.pattern.permute.xlu0 2
      %2985 = vperm.xlu0 %2984, %v1444
      %v2986 = vpop.permute.xlu0 %2985
      %2987 = vset.pattern.permute.xlu0 2
      %2988 = vperm.xlu0 %2987, %v1445
      %v2989 = vpop.permute.xlu0 %2988
      %2990 = vset.pattern.permute.xlu0 2
      %2991 = vperm.xlu0 %2990, %v1446
      %v2992 = vpop.permute.xlu0 %2991
      %2993 = vset.pattern.permute.xlu0 2
      %2994 = vperm.xlu0 %2993, %v1447
      %v2995 = vpop.permute.xlu0 %2994
      %2996 = vset.pattern.permute.xlu0 2
      %2997 = vperm.xlu0 %2996, %v1448
      %v2998 = vpop.permute.xlu0 %2997
      %2999 = vset.pattern.permute.xlu0 2
      %3000 = vperm.xlu0 %2999, %v1449
      %v3001 = vpop.permute.xlu0 %3000
      %3002 = vset.pattern.permute.xlu0 2
      %3003 = vperm.xlu0 %3002, %v1450
      %v3004 = vpop.permute.xlu0 %3003
      %3005 = vset.pattern.permute.xlu0 2
      %3006 = vperm.xlu0 %3005, %v1451
      %v3007 = vpop.permute.xlu0 %3006
      %3008 = vset.pattern.permute.xlu0 2
      %3009 = vperm.xlu0 %3008, %v1452
      %v3010 = vpop.permute.xlu0 %3009
      %3011 = vset.pattern.permute.xlu0 2
      %3012 = vperm.xlu0 %3011, %v1453
      %v3013 = vpop.permute.xlu0 %3012
      %3014 = vset.pattern.permute.xlu0 2
      %3015 = vperm.xlu0 %3014, %v1454
      %v3016 = vpop.permute.xlu0 %3015
      %3017 = vset.pattern.permute.xlu0 2
      %3018 = vperm.xlu0 %3017, %v1455
      %v3019 = vpop.permute.xlu0 %3018
      %3020 = vset.pattern.permute.xlu0 2
      %3021 = vperm.xlu0 %3020, %v1456
      %v3022 = vpop.permute.xlu0 %3021
      %3023 = vset.pattern.permute.xlu0 2
      %3024 = vperm.xlu0 %3023, %v1457
      %v3025 = vpop.permute.xlu0 %3024
      %3026 = vset.pattern.permute.xlu0 2
      %3027 = vperm.xlu0 %3026, %v1458
      %v3028 = vpop.permute.xlu0 %3027
      %3029 = vset.pattern.permute.xlu0 2
      %3030 = vperm.xlu0 %3029, %v1459
      %v3031 = vpop.permute.xlu0 %3030
      %3032 = vset.pattern.permute.xlu0 2
      %3033 = vperm.xlu0 %3032, %v1460
      %v3034 = vpop.permute.xlu0 %3033
      %3035 = vset.pattern.permute.xlu0 2
      %3036 = vperm.xlu0 %3035, %v1461
      %v3037 = vpop.permute.xlu0 %3036
      %3038 = vset.pattern.permute.xlu0 2
      %3039 = vperm.xlu0 %3038, %v1462
      %v3040 = vpop.permute.xlu0 %3039
      %3041 = vset.pattern.permute.xlu0 2
      %3042 = vperm.xlu0 %3041, %v1463
      %v3043 = vpop.permute.xlu0 %3042
      %3044 = vset.pattern.permute.xlu0 2
      %3045 = vperm.xlu0 %3044, %v1464
      %v3046 = vpop.permute.xlu0 %3045
      %3047 = vset.pattern.permute.xlu0 2
      %3048 = vperm.xlu0 %3047, %v1465
      %v3049 = vpop.permute.xlu0 %3048
      %3050 = vset.pattern.permute.xlu0 2
      %3051 = vperm.xlu0 %3050, %v1466
      %v3052 = vpop.permute.xlu0 %3051
      %3053 = vset.pattern.permute.xlu0 2
      %3054 = vperm.xlu0 %3053, %v1467
      %v3055 = vpop.permute.xlu0 %3054
      %3056 = vset.pattern.permute.xlu0 2
      %3057 = vperm.xlu0 %3056, %v1468
      %v3058 = vpop.permute.xlu0 %3057
      %3059 = vset.pattern.permute.xlu0 2
      %3060 = vperm.xlu0 %3059, %v1469
      %v3061 = vpop.permute.xlu0 %3060
      %3062 = vset.pattern.permute.xlu0 2
      %3063 = vperm.xlu0 %3062, %v1470
      %v3064 = vpop.permute.xlu0 %3063
      %3065 = vset.pattern.permute.xlu0 2
      %3066 = vperm.xlu0 %3065, %v1471
      %v3067 = vpop.permute.xlu0 %3066
      %3068 = vset.pattern.permute.xlu0 2
      %3069 = vperm.xlu0 %3068, %v1472
      %v3070 = vpop.permute.xlu0 %3069
      %3071 = vset.pattern.permute.xlu0 2
      %3072 = vperm.xlu0 %3071, %v1473
      %v3073 = vpop.permute.xlu0 %3072
      %3074 = vset.pattern.permute.xlu0 2
      %3075 = vperm.xlu0 %3074, %v1474
      %v3076 = vpop.permute.xlu0 %3075
      %3077 = vset.pattern.permute.xlu0 2
      %3078 = vperm.xlu0 %3077, %v1475
      %v3079 = vpop.permute.xlu0 %3078
      %3080 = vset.pattern.permute.xlu0 2
      %3081 = vperm.xlu0 %3080, %v1476
      %v3082 = vpop.permute.xlu0 %3081
      %3083 = vset.pattern.permute.xlu0 2
      %3084 = vperm.xlu0 %3083, %v1477
      %v3085 = vpop.permute.xlu0 %3084
      %3086 = vset.pattern.permute.xlu0 2
      %3087 = vperm.xlu0 %3086, %v1478
      %v3088 = vpop.permute.xlu0 %3087
      %3089 = vset.pattern.permute.xlu0 2
      %3090 = vperm.xlu0 %3089, %v1479
      %v3091 = vpop.permute.xlu0 %3090
      %3092 = vset.pattern.permute.xlu0 2
      %3093 = vperm.xlu0 %3092, %v1480
      %v3094 = vpop.permute.xlu0 %3093
      %3095 = vset.pattern.permute.xlu0 2
      %3096 = vperm.xlu0 %3095, %v1481
      %v3097 = vpop.permute.xlu0 %3096
      %3098 = vset.pattern.permute.xlu0 2
      %3099 = vperm.xlu0 %3098, %v1482
      %v3100 = vpop.permute.xlu0 %3099
      %3101 = vset.pattern.permute.xlu0 2
      %3102 = vperm.xlu0 %3101, %v1483
      %v3103 = vpop.permute.xlu0 %3102
      %3104 = vset.pattern.permute.xlu0 2
      %3105 = vperm.xlu0 %3104, %v1484
      %v3106 = vpop.permute.xlu0 %3105
      %3107 = vset.pattern.permute.xlu0 2
      %3108 = vperm.xlu0 %3107, %v1485
      %v3109 = vpop.permute.xlu0 %3108
      %3110 = vset.pattern.permute.xlu0 2
      %3111 = vperm.xlu0 %3110, %v1486
      %v3112 = vpop.permute.xlu0 %3111
      %3113 = vset.pattern.permute.xlu0 2
      %3114 = vperm.xlu0 %3113, %v1487
      %v3115 = vpop.permute.xlu0 %3114
      %3116 = vset.pattern.permute.xlu0 2
      %3117 = vperm.xlu0 %3116, %v1488
      %v3118 = vpop.permute.xlu0 %3117
      %3119 = vset.pattern.permute.xlu0 2
      %3120 = vperm.xlu0 %3119, %v1489
      %v3121 = vpop.permute.xlu0 %3120
      %3122 = vset.pattern.permute.xlu0 2
      %3123 = vperm.xlu0 %3122, %v1490
      %v3124 = vpop.permute.xlu0 %3123
      %3125 = vset.pattern.permute.xlu0 2
      %3126 = vperm.xlu0 %3125, %v1491
      %v3127 = vpop.permute.xlu0 %3126
      %3128 = vset.pattern.permute.xlu0 2
      %3129 = vperm.xlu0 %3128, %v1492
      %v3130 = vpop.permute.xlu0 %3129
      %vm3131 = vcmp.eq.s32.totalorder %v1495, %v2941
      %vm3132 = vcmp.eq.s32.totalorder %v1495, %v2944
      %vm3133 = vcmp.eq.s32.totalorder %v1495, %v2947
      %vm3134 = vcmp.eq.s32.totalorder %v1495, %v2950
      %vm3135 = vcmp.eq.s32.totalorder %v1495, %v2953
      %vm3136 = vcmp.eq.s32.totalorder %v1495, %v2956
      %vm3137 = vcmp.eq.s32.totalorder %v1495, %v2959
      %vm3138 = vcmp.eq.s32.totalorder %v1495, %v2962
      %vm3139 = vcmp.eq.s32.totalorder %v1495, %v2965
      %vm3140 = vcmp.eq.s32.totalorder %v1495, %v2968
      %vm3141 = vcmp.eq.s32.totalorder %v1495, %v2971
      %vm3142 = vcmp.eq.s32.totalorder %v1495, %v2974
      %vm3143 = vcmp.eq.s32.totalorder %v1495, %v2977
      %vm3144 = vcmp.eq.s32.totalorder %v1495, %v2980
      %vm3145 = vcmp.eq.s32.totalorder %v1495, %v2983
      %vm3146 = vcmp.eq.s32.totalorder %v1495, %v2986
      %vm3147 = vcmp.eq.s32.totalorder %v1495, %v2989
      %vm3148 = vcmp.eq.s32.totalorder %v1495, %v2992
      %vm3149 = vcmp.eq.s32.totalorder %v1495, %v2995
      %vm3150 = vcmp.eq.s32.totalorder %v1495, %v2998
      %vm3151 = vcmp.eq.s32.totalorder %v1495, %v3001
      %vm3152 = vcmp.eq.s32.totalorder %v1495, %v3004
      %vm3153 = vcmp.eq.s32.totalorder %v1495, %v3007
      %vm3154 = vcmp.eq.s32.totalorder %v1495, %v3010
      %vm3155 = vcmp.eq.s32.totalorder %v1495, %v3013
      %vm3156 = vcmp.eq.s32.totalorder %v1495, %v3016
      %vm3157 = vcmp.eq.s32.totalorder %v1495, %v3019
      %vm3158 = vcmp.eq.s32.totalorder %v1495, %v3022
      %vm3159 = vcmp.eq.s32.totalorder %v1495, %v3025
      %vm3160 = vcmp.eq.s32.totalorder %v1495, %v3028
      %vm3161 = vcmp.eq.s32.totalorder %v1495, %v3031
      %vm3162 = vcmp.eq.s32.totalorder %v1495, %v3034
      %vm3163 = vcmp.eq.s32.totalorder %v1495, %v3037
      %vm3164 = vcmp.eq.s32.totalorder %v1495, %v3040
      %vm3165 = vcmp.eq.s32.totalorder %v1495, %v3043
      %vm3166 = vcmp.eq.s32.totalorder %v1495, %v3046
      %vm3167 = vcmp.eq.s32.totalorder %v1495, %v3049
      %vm3168 = vcmp.eq.s32.totalorder %v1495, %v3052
      %vm3169 = vcmp.eq.s32.totalorder %v1495, %v3055
      %vm3170 = vcmp.eq.s32.totalorder %v1495, %v3058
      %vm3171 = vcmp.eq.s32.totalorder %v1495, %v3061
      %vm3172 = vcmp.eq.s32.totalorder %v1495, %v3064
      %vm3173 = vcmp.eq.s32.totalorder %v1495, %v3067
      %vm3174 = vcmp.eq.s32.totalorder %v1495, %v3070
      %vm3175 = vcmp.eq.s32.totalorder %v1495, %v3073
      %vm3176 = vcmp.eq.s32.totalorder %v1495, %v3076
      %vm3177 = vcmp.eq.s32.totalorder %v1495, %v3079
      %vm3178 = vcmp.eq.s32.totalorder %v1495, %v3082
      %vm3179 = vcmp.eq.s32.totalorder %v1495, %v3085
      %vm3180 = vcmp.eq.s32.totalorder %v1495, %v3088
      %vm3181 = vcmp.eq.s32.totalorder %v1495, %v3091
      %vm3182 = vcmp.eq.s32.totalorder %v1495, %v3094
      %vm3183 = vcmp.eq.s32.totalorder %v1495, %v3097
      %vm3184 = vcmp.eq.s32.totalorder %v1495, %v3100
      %vm3185 = vcmp.eq.s32.totalorder %v1495, %v3103
      %vm3186 = vcmp.eq.s32.totalorder %v1495, %v3106
      %vm3187 = vcmp.eq.s32.totalorder %v1495, %v3109
      %vm3188 = vcmp.eq.s32.totalorder %v1495, %v3112
      %vm3189 = vcmp.eq.s32.totalorder %v1495, %v3115
      %vm3190 = vcmp.eq.s32.totalorder %v1495, %v3118
      %vm3191 = vcmp.eq.s32.totalorder %v1495, %v3121
      %vm3192 = vcmp.eq.s32.totalorder %v1495, %v3124
      %vm3193 = vcmp.eq.s32.totalorder %v1495, %v3127
      %vm3194 = vcmp.eq.s32.totalorder %v1495, %v3130
      %v3195 = vsel %vm3131, %v1111, 0.0
      %v3196 = vsel %vm3132, %v1116, 0.0
      %v3197 = vsel %vm3133, %v1121, 0.0
      %v3198 = vsel %vm3134, %v1126, 0.0
      %v3199 = vsel %vm3135, %v1131, 0.0
      %v3200 = vsel %vm3136, %v1136, 0.0
      %v3201 = vsel %vm3137, %v1141, 0.0
      %v3202 = vsel %vm3138, %v1146, 0.0
      %v3203 = vsel %vm3139, %v1151, 0.0
      %v3204 = vsel %vm3140, %v1156, 0.0
      %v3205 = vsel %vm3141, %v1161, 0.0
      %v3206 = vsel %vm3142, %v1166, 0.0
      %v3207 = vsel %vm3143, %v1171, 0.0
      %v3208 = vsel %vm3144, %v1176, 0.0
      %v3209 = vsel %vm3145, %v1181, 0.0
      %v3210 = vsel %vm3146, %v1186, 0.0
      %v3211 = vsel %vm3147, %v1191, 0.0
      %v3212 = vsel %vm3148, %v1196, 0.0
      %v3213 = vsel %vm3149, %v1201, 0.0
      %v3214 = vsel %vm3150, %v1206, 0.0
      %v3215 = vsel %vm3151, %v1211, 0.0
      %v3216 = vsel %vm3152, %v1216, 0.0
      %v3217 = vsel %vm3153, %v1221, 0.0
      %v3218 = vsel %vm3154, %v1226, 0.0
      %v3219 = vsel %vm3155, %v1231, 0.0
      %v3220 = vsel %vm3156, %v1236, 0.0
      %v3221 = vsel %vm3157, %v1241, 0.0
      %v3222 = vsel %vm3158, %v1246, 0.0
      %v3223 = vsel %vm3159, %v1251, 0.0
      %v3224 = vsel %vm3160, %v1256, 0.0
      %v3225 = vsel %vm3161, %v1261, 0.0
      %v3226 = vsel %vm3162, %v1266, 0.0
      %v3227 = vsel %vm3163, %v1271, 0.0
      %v3228 = vsel %vm3164, %v1276, 0.0
      %v3229 = vsel %vm3165, %v1281, 0.0
      %v3230 = vsel %vm3166, %v1286, 0.0
      %v3231 = vsel %vm3167, %v1291, 0.0
      %v3232 = vsel %vm3168, %v1296, 0.0
      %v3233 = vsel %vm3169, %v1301, 0.0
      %v3234 = vsel %vm3170, %v1306, 0.0
      %v3235 = vsel %vm3171, %v1311, 0.0
      %v3236 = vsel %vm3172, %v1316, 0.0
      %v3237 = vsel %vm3173, %v1321, 0.0
      %v3238 = vsel %vm3174, %v1326, 0.0
      %v3239 = vsel %vm3175, %v1331, 0.0
      %v3240 = vsel %vm3176, %v1336, 0.0
      %v3241 = vsel %vm3177, %v1341, 0.0
      %v3242 = vsel %vm3178, %v1346, 0.0
      %v3243 = vsel %vm3179, %v1351, 0.0
      %v3244 = vsel %vm3180, %v1356, 0.0
      %v3245 = vsel %vm3181, %v1361, 0.0
      %v3246 = vsel %vm3182, %v1366, 0.0
      %v3247 = vsel %vm3183, %v1371, 0.0
      %v3248 = vsel %vm3184, %v1376, 0.0
      %v3249 = vsel %vm3185, %v1381, 0.0
      %v3250 = vsel %vm3186, %v1386, 0.0
      %v3251 = vsel %vm3187, %v1391, 0.0
      %v3252 = vsel %vm3188, %v1396, 0.0
      %v3253 = vsel %vm3189, %v1401, 0.0
      %v3254 = vsel %vm3190, %v1406, 0.0
      %v3255 = vsel %vm3191, %v1411, 0.0
      %v3256 = vsel %vm3192, %v1416, 0.0
      %v3257 = vsel %vm3193, %v1421, 0.0
      %v3258 = vsel %vm3194, %v1426, 0.0
      %s3259 = scalar_lea.vmem %s6, 256
      %v3260 = vld [vmem:[%s3259] sm:$0xff]
      %v3261 = vld [vmem:[%s3259 + $0x8] sm:$0xff]
      %v3262 = vld [vmem:[%s3259 + $0x10] sm:$0xff]
      %v3263 = vld [vmem:[%s3259 + $0x18] sm:$0xff]
      %v3264 = vld [vmem:[%s3259 + $0x20] sm:$0xff]
      %v3265 = vld [vmem:[%s3259 + $0x28] sm:$0xff]
      %v3266 = vld [vmem:[%s3259 + $0x30] sm:$0xff]
      %v3267 = vld [vmem:[%s3259 + $0x38] sm:$0xff]
      %v3268 = vld [vmem:[%s3259 + $0x40] sm:$0xff]
      %v3269 = vld [vmem:[%s3259 + $0x48] sm:$0xff]
      %v3270 = vld [vmem:[%s3259 + $0x50] sm:$0xff]
      %v3271 = vld [vmem:[%s3259 + $0x58] sm:$0xff]
      %v3272 = vld [vmem:[%s3259 + $0x60] sm:$0xff]
      %v3273 = vld [vmem:[%s3259 + $0x68] sm:$0xff]
      %v3274 = vld [vmem:[%s3259 + $0x70] sm:$0xff]
      %v3275 = vld [vmem:[%s3259 + $0x78] sm:$0xff]
      %3276 = vmatprep.subr.mxu0 0.0
      %3277 = vmatpush1.msra.mxu0 %v3260
      %3278 = vmatprep.subr.mxu0 0.0
      %3279 = vmatpush1.msra.mxu0 %v3261
      %3280 = vmatprep.subr.mxu0 0.0
      %3281 = vmatpush1.msra.mxu0 %v3262
      %3282 = vmatprep.subr.mxu0 0.0
      %3283 = vmatpush1.msra.mxu0 %v3263
      %3284 = vmatprep.subr.mxu0 0.0
      %3285 = vmatpush1.msra.mxu0 %v3264
      %3286 = vmatprep.subr.mxu0 0.0
      %3287 = vmatpush1.msra.mxu0 %v3265
      %3288 = vmatprep.subr.mxu0 0.0
      %3289 = vmatpush1.msra.mxu0 %v3266
      %3290 = vmatprep.subr.mxu0 0.0
      %3291 = vmatpush1.msra.mxu0 %v3267
      %3292 = vmatprep.subr.mxu0 0.0
      %3293 = vmatpush1.msra.mxu0 %v3268
      %3294 = vmatprep.subr.mxu0 0.0
      %3295 = vmatpush1.msra.mxu0 %v3269
      %3296 = vmatprep.subr.mxu0 0.0
      %3297 = vmatpush1.msra.mxu0 %v3270
      %3298 = vmatprep.subr.mxu0 0.0
      %3299 = vmatpush1.msra.mxu0 %v3271
      %3300 = vmatprep.subr.mxu0 0.0
      %3301 = vmatpush1.msra.mxu0 %v3272
      %3302 = vmatprep.subr.mxu0 0.0
      %3303 = vmatpush1.msra.mxu0 %v3273
      %3304 = vmatprep.subr.mxu0 0.0
      %3305 = vmatpush1.msra.mxu0 %v3274
      %3306 = vmatprep.subr.mxu0 0.0
      %3307 = vmatpush1.msra.mxu0 %v3275
      %3308 = vmatprep.subr.mxu0 0.0
      %3309 = vmatpush1.msra.mxu0 0.0
      %3310 = vmatprep.subr.mxu0 0.0
      %3311 = vmatpush1.msra.mxu0 0.0
      %3312 = vmatprep.subr.mxu0 0.0
      %3313 = vmatpush1.msra.mxu0 0.0
      %3314 = vmatprep.subr.mxu0 0.0
      %3315 = vmatpush1.msra.mxu0 0.0
      %3316 = vmatprep.subr.mxu0 0.0
      %3317 = vmatpush1.msra.mxu0 0.0
      %3318 = vmatprep.subr.mxu0 0.0
      %3319 = vmatpush1.msra.mxu0 0.0
      %3320 = vmatprep.subr.mxu0 0.0
      %3321 = vmatpush1.msra.mxu0 0.0
      %3322 = vmatprep.subr.mxu0 0.0
      %3323 = vmatpush1.msra.mxu0 0.0
      %3324 = vmatprep.subr.mxu0 0.0
      %3325 = vmatpush1.msra.mxu0 0.0
      %3326 = vmatprep.subr.mxu0 0.0
      %3327 = vmatpush1.msra.mxu0 0.0
      %3328 = vmatprep.subr.mxu0 0.0
      %3329 = vmatpush1.msra.mxu0 0.0
      %3330 = vmatprep.subr.mxu0 0.0
      %3331 = vmatpush1.msra.mxu0 0.0
      %3332 = vmatprep.subr.mxu0 0.0
      %3333 = vmatpush1.msra.mxu0 0.0
      %3334 = vmatprep.subr.mxu0 0.0
      %3335 = vmatpush1.msra.mxu0 0.0
      %3336 = vmatprep.subr.mxu0 0.0
      %3337 = vmatpush1.msra.mxu0 0.0
      %3338 = vmatprep.subr.mxu0 0.0
      %3339 = vmatpush1.msra.mxu0 0.0
      %3340 = vmatprep.mubr.f32.mxu0 0.0
      %3341 = vmatmul.mubr.f32.gmra.mrb[0].mxu0 %v3195
      %v3342 = vpop.f32.mrb[0].mxu0
      %v3343 = vadd.f32 0.0, %v3342
      %v3344 = vpop.f32.mrb[0].mxu0
      %3345 = vmatprep.mubr.f32.mxu0 0.0
      %3346 = vmatmul.mubr.f32.gmra.mrb[0].mxu0 %v3196
      %v3347 = vpop.f32.mrb[0].mxu0
      %v3348 = vadd.f32 0.0, %v3347
      %v3349 = vpop.f32.mrb[0].mxu0
      %3350 = vmatprep.mubr.f32.mxu0 0.0
      %3351 = vmatmul.mubr.f32.gmra.mrb[0].mxu0 %v3197
      %v3352 = vpop.f32.mrb[0].mxu0
      %v3353 = vadd.f32 0.0, %v3352
      %v3354 = vpop.f32.mrb[0].mxu0
      %3355 = vmatprep.mubr.f32.mxu0 0.0
      %3356 = vmatmul.mubr.f32.gmra.mrb[0].mxu0 %v3198
      %v3357 = vpop.f32.mrb[0].mxu0
      %v3358 = vadd.f32 0.0, %v3357
      %v3359 = vpop.f32.mrb[0].mxu0
      %3360 = vmatprep.mubr.f32.mxu0 0.0
      %3361 = vmatmul.mubr.f32.gmra.mrb[0].mxu0 %v3199
      %v3362 = vpop.f32.mrb[0].mxu0
      %v3363 = vadd.f32 0.0, %v3362
      %v3364 = vpop.f32.mrb[0].mxu0
      %3365 = vmatprep.mubr.f32.mxu0 0.0
      %3366 = vmatmul.mubr.f32.gmra.mrb[0].mxu0 %v3200
      %v3367 = vpop.f32.mrb[0].mxu0
      %v3368 = vadd.f32 0.0, %v3367
      %v3369 = vpop.f32.mrb[0].mxu0
      %3370 = vmatprep.mubr.f32.mxu0 0.0
      %3371 = vmatmul.mubr.f32.gmra.mrb[0].mxu0 %v3201
      %v3372 = vpop.f32.mrb[0].mxu0
      %v3373 = vadd.f32 0.0, %v3372
      %v3374 = vpop.f32.mrb[0].mxu0
      %3375 = vmatprep.mubr.f32.mxu0 0.0
      %3376 = vmatmul.mubr.f32.gmra.mrb[0].mxu0 %v3202
      %v3377 = vpop.f32.mrb[0].mxu0
      %v3378 = vadd.f32 0.0, %v3377
      %v3379 = vpop.f32.mrb[0].mxu0
      %3380 = vmatprep.mubr.f32.mxu0 0.0
      %3381 = vmatmul.mubr.f32.gmra.mrb[0].mxu0 %v3203
      %v3382 = vpop.f32.mrb[0].mxu0
      %v3383 = vadd.f32 0.0, %v3382
      %v3384 = vpop.f32.mrb[0].mxu0
      %3385 = vmatprep.mubr.f32.mxu0 0.0
      %3386 = vmatmul.mubr.f32.gmra.mrb[0].mxu0 %v3204
      %v3387 = vpop.f32.mrb[0].mxu0
      %v3388 = vadd.f32 0.0, %v3387
      %v3389 = vpop.f32.mrb[0].mxu0
      %3390 = vmatprep.mubr.f32.mxu0 0.0
      %3391 = vmatmul.mubr.f32.gmra.mrb[0].mxu0 %v3205
      %v3392 = vpop.f32.mrb[0].mxu0
      %v3393 = vadd.f32 0.0, %v3392
      %v3394 = vpop.f32.mrb[0].mxu0
      %3395 = vmatprep.mubr.f32.mxu0 0.0
      %3396 = vmatmul.mubr.f32.gmra.mrb[0].mxu0 %v3206
      %v3397 = vpop.f32.mrb[0].mxu0
      %v3398 = vadd.f32 0.0, %v3397
      %v3399 = vpop.f32.mrb[0].mxu0
      %3400 = vmatprep.mubr.f32.mxu0 0.0
      %3401 = vmatmul.mubr.f32.gmra.mrb[0].mxu0 %v3207
      %v3402 = vpop.f32.mrb[0].mxu0
      %v3403 = vadd.f32 0.0, %v3402
      %v3404 = vpop.f32.mrb[0].mxu0
      %3405 = vmatprep.mubr.f32.mxu0 0.0
      %3406 = vmatmul.mubr.f32.gmra.mrb[0].mxu0 %v3208
      %v3407 = vpop.f32.mrb[0].mxu0
      %v3408 = vadd.f32 0.0, %v3407
      %v3409 = vpop.f32.mrb[0].mxu0
      %3410 = vmatprep.mubr.f32.mxu0 0.0
      %3411 = vmatmul.mubr.f32.gmra.mrb[0].mxu0 %v3209
      %v3412 = vpop.f32.mrb[0].mxu0
      %v3413 = vadd.f32 0.0, %v3412
      %v3414 = vpop.f32.mrb[0].mxu0
      %3415 = vmatprep.mubr.f32.mxu0 0.0
      %3416 = vmatmul.mubr.f32.gmra.mrb[0].mxu0 %v3210
      %v3417 = vpop.f32.mrb[0].mxu0
      %v3418 = vadd.f32 0.0, %v3417
      %v3419 = vpop.f32.mrb[0].mxu0
      %3420 = vmatprep.mubr.f32.mxu0 0.0
      %3421 = vmatmul.mubr.f32.gmra.mrb[0].mxu0 %v3211
      %v3422 = vpop.f32.mrb[0].mxu0
      %v3423 = vadd.f32 0.0, %v3422
      %v3424 = vpop.f32.mrb[0].mxu0
      %3425 = vmatprep.mubr.f32.mxu0 0.0
      %3426 = vmatmul.mubr.f32.gmra.mrb[0].mxu0 %v3212
      %v3427 = vpop.f32.mrb[0].mxu0
      %v3428 = vadd.f32 0.0, %v3427
      %v3429 = vpop.f32.mrb[0].mxu0
      %3430 = vmatprep.mubr.f32.mxu0 0.0
      %3431 = vmatmul.mubr.f32.gmra.mrb[0].mxu0 %v3213
      %v3432 = vpop.f32.mrb[0].mxu0
      %v3433 = vadd.f32 0.0, %v3432
      %v3434 = vpop.f32.mrb[0].mxu0
      %3435 = vmatprep.mubr.f32.mxu0 0.0
      %3436 = vmatmul.mubr.f32.gmra.mrb[0].mxu0 %v3214
      %v3437 = vpop.f32.mrb[0].mxu0
      %v3438 = vadd.f32 0.0, %v3437
      %v3439 = vpop.f32.mrb[0].mxu0
      %3440 = vmatprep.mubr.f32.mxu0 0.0
      %3441 = vmatmul.mubr.f32.gmra.mrb[0].mxu0 %v3215
      %v3442 = vpop.f32.mrb[0].mxu0
      %v3443 = vadd.f32 0.0, %v3442
      %v3444 = vpop.f32.mrb[0].mxu0
      %3445 = vmatprep.mubr.f32.mxu0 0.0
      %3446 = vmatmul.mubr.f32.gmra.mrb[0].mxu0 %v3216
      %v3447 = vpop.f32.mrb[0].mxu0
      %v3448 = vadd.f32 0.0, %v3447
      %v3449 = vpop.f32.mrb[0].mxu0
      %3450 = vmatprep.mubr.f32.mxu0 0.0
      %3451 = vmatmul.mubr.f32.gmra.mrb[0].mxu0 %v3217
      %v3452 = vpop.f32.mrb[0].mxu0
      %v3453 = vadd.f32 0.0, %v3452
      %v3454 = vpop.f32.mrb[0].mxu0
      %3455 = vmatprep.mubr.f32.mxu0 0.0
      %3456 = vmatmul.mubr.f32.gmra.mrb[0].mxu0 %v3218
      %v3457 = vpop.f32.mrb[0].mxu0
      %v3458 = vadd.f32 0.0, %v3457
      %v3459 = vpop.f32.mrb[0].mxu0
      %3460 = vmatprep.mubr.f32.mxu0 0.0
      %3461 = vmatmul.mubr.f32.gmra.mrb[0].mxu0 %v3219
      %v3462 = vpop.f32.mrb[0].mxu0
      %v3463 = vadd.f32 0.0, %v3462
      %v3464 = vpop.f32.mrb[0].mxu0
      %3465 = vmatprep.mubr.f32.mxu0 0.0
      %3466 = vmatmul.mubr.f32.gmra.mrb[0].mxu0 %v3220
      %v3467 = vpop.f32.mrb[0].mxu0
      %v3468 = vadd.f32 0.0, %v3467
      %v3469 = vpop.f32.mrb[0].mxu0
      %3470 = vmatprep.mubr.f32.mxu0 0.0
      %3471 = vmatmul.mubr.f32.gmra.mrb[0].mxu0 %v3221
      %v3472 = vpop.f32.mrb[0].mxu0
      %v3473 = vadd.f32 0.0, %v3472
      %v3474 = vpop.f32.mrb[0].mxu0
      %3475 = vmatprep.mubr.f32.mxu0 0.0
      %3476 = vmatmul.mubr.f32.gmra.mrb[0].mxu0 %v3222
      %v3477 = vpop.f32.mrb[0].mxu0
      %v3478 = vadd.f32 0.0, %v3477
      %v3479 = vpop.f32.mrb[0].mxu0
      %3480 = vmatprep.mubr.f32.mxu0 0.0
      %3481 = vmatmul.mubr.f32.gmra.mrb[0].mxu0 %v3223
      %v3482 = vpop.f32.mrb[0].mxu0
      %v3483 = vadd.f32 0.0, %v3482
      %v3484 = vpop.f32.mrb[0].mxu0
      %3485 = vmatprep.mubr.f32.mxu0 0.0
      %3486 = vmatmul.mubr.f32.gmra.mrb[0].mxu0 %v3224
      %v3487 = vpop.f32.mrb[0].mxu0
      %v3488 = vadd.f32 0.0, %v3487
      %v3489 = vpop.f32.mrb[0].mxu0
      %3490 = vmatprep.mubr.f32.mxu0 0.0
      %3491 = vmatmul.mubr.f32.gmra.mrb[0].mxu0 %v3225
      %v3492 = vpop.f32.mrb[0].mxu0
      %v3493 = vadd.f32 0.0, %v3492
      %v3494 = vpop.f32.mrb[0].mxu0
      %3495 = vmatprep.mubr.f32.mxu0 0.0
      %3496 = vmatmul.mubr.f32.gmra.mrb[0].mxu0 %v3226
      %v3497 = vpop.f32.mrb[0].mxu0
      %v3498 = vadd.f32 0.0, %v3497
      %v3499 = vpop.f32.mrb[0].mxu0
      %3500 = vmatprep.mubr.f32.mxu0 0.0
      %3501 = vmatmul.mubr.f32.gmra.mrb[0].mxu0 %v3227
      %v3502 = vpop.f32.mrb[0].mxu0
      %v3503 = vadd.f32 0.0, %v3502
      %v3504 = vpop.f32.mrb[0].mxu0
      %3505 = vmatprep.mubr.f32.mxu0 0.0
      %3506 = vmatmul.mubr.f32.gmra.mrb[0].mxu0 %v3228
      %v3507 = vpop.f32.mrb[0].mxu0
      %v3508 = vadd.f32 0.0, %v3507
      %v3509 = vpop.f32.mrb[0].mxu0
      %3510 = vmatprep.mubr.f32.mxu0 0.0
      %3511 = vmatmul.mubr.f32.gmra.mrb[0].mxu0 %v3229
      %v3512 = vpop.f32.mrb[0].mxu0
      %v3513 = vadd.f32 0.0, %v3512
      %v3514 = vpop.f32.mrb[0].mxu0
      %3515 = vmatprep.mubr.f32.mxu0 0.0
      %3516 = vmatmul.mubr.f32.gmra.mrb[0].mxu0 %v3230
      %v3517 = vpop.f32.mrb[0].mxu0
      %v3518 = vadd.f32 0.0, %v3517
      %v3519 = vpop.f32.mrb[0].mxu0
      %3520 = vmatprep.mubr.f32.mxu0 0.0
      %3521 = vmatmul.mubr.f32.gmra.mrb[0].mxu0 %v3231
      %v3522 = vpop.f32.mrb[0].mxu0
      %v3523 = vadd.f32 0.0, %v3522
      %v3524 = vpop.f32.mrb[0].mxu0
      %3525 = vmatprep.mubr.f32.mxu0 0.0
      %3526 = vmatmul.mubr.f32.gmra.mrb[0].mxu0 %v3232
      %v3527 = vpop.f32.mrb[0].mxu0
      %v3528 = vadd.f32 0.0, %v3527
      %v3529 = vpop.f32.mrb[0].mxu0
      %3530 = vmatprep.mubr.f32.mxu0 0.0
      %3531 = vmatmul.mubr.f32.gmra.mrb[0].mxu0 %v3233
      %v3532 = vpop.f32.mrb[0].mxu0
      %v3533 = vadd.f32 0.0, %v3532
      %v3534 = vpop.f32.mrb[0].mxu0
      %3535 = vmatprep.mubr.f32.mxu0 0.0
      %3536 = vmatmul.mubr.f32.gmra.mrb[0].mxu0 %v3234
      %v3537 = vpop.f32.mrb[0].mxu0
      %v3538 = vadd.f32 0.0, %v3537
      %v3539 = vpop.f32.mrb[0].mxu0
      %3540 = vmatprep.mubr.f32.mxu0 0.0
      %3541 = vmatmul.mubr.f32.gmra.mrb[0].mxu0 %v3235
      %v3542 = vpop.f32.mrb[0].mxu0
      %v3543 = vadd.f32 0.0, %v3542
      %v3544 = vpop.f32.mrb[0].mxu0
      %3545 = vmatprep.mubr.f32.mxu0 0.0
      %3546 = vmatmul.mubr.f32.gmra.mrb[0].mxu0 %v3236
      %v3547 = vpop.f32.mrb[0].mxu0
      %v3548 = vadd.f32 0.0, %v3547
      %v3549 = vpop.f32.mrb[0].mxu0
      %3550 = vmatprep.mubr.f32.mxu0 0.0
      %3551 = vmatmul.mubr.f32.gmra.mrb[0].mxu0 %v3237
      %v3552 = vpop.f32.mrb[0].mxu0
      %v3553 = vadd.f32 0.0, %v3552
      %v3554 = vpop.f32.mrb[0].mxu0
      %3555 = vmatprep.mubr.f32.mxu0 0.0
      %3556 = vmatmul.mubr.f32.gmra.mrb[0].mxu0 %v3238
      %v3557 = vpop.f32.mrb[0].mxu0
      %v3558 = vadd.f32 0.0, %v3557
      %v3559 = vpop.f32.mrb[0].mxu0
      %3560 = vmatprep.mubr.f32.mxu0 0.0
      %3561 = vmatmul.mubr.f32.gmra.mrb[0].mxu0 %v3239
      %v3562 = vpop.f32.mrb[0].mxu0
      %v3563 = vadd.f32 0.0, %v3562
      %v3564 = vpop.f32.mrb[0].mxu0
      %3565 = vmatprep.mubr.f32.mxu0 0.0
      %3566 = vmatmul.mubr.f32.gmra.mrb[0].mxu0 %v3240
      %v3567 = vpop.f32.mrb[0].mxu0
      %v3568 = vadd.f32 0.0, %v3567
      %v3569 = vpop.f32.mrb[0].mxu0
      %3570 = vmatprep.mubr.f32.mxu0 0.0
      %3571 = vmatmul.mubr.f32.gmra.mrb[0].mxu0 %v3241
      %v3572 = vpop.f32.mrb[0].mxu0
      %v3573 = vadd.f32 0.0, %v3572
      %v3574 = vpop.f32.mrb[0].mxu0
      %3575 = vmatprep.mubr.f32.mxu0 0.0
      %3576 = vmatmul.mubr.f32.gmra.mrb[0].mxu0 %v3242
      %v3577 = vpop.f32.mrb[0].mxu0
      %v3578 = vadd.f32 0.0, %v3577
      %v3579 = vpop.f32.mrb[0].mxu0
      %3580 = vmatprep.mubr.f32.mxu0 0.0
      %3581 = vmatmul.mubr.f32.gmra.mrb[0].mxu0 %v3243
      %v3582 = vpop.f32.mrb[0].mxu0
      %v3583 = vadd.f32 0.0, %v3582
      %v3584 = vpop.f32.mrb[0].mxu0
      %3585 = vmatprep.mubr.f32.mxu0 0.0
      %3586 = vmatmul.mubr.f32.gmra.mrb[0].mxu0 %v3244
      %v3587 = vpop.f32.mrb[0].mxu0
      %v3588 = vadd.f32 0.0, %v3587
      %v3589 = vpop.f32.mrb[0].mxu0
      %3590 = vmatprep.mubr.f32.mxu0 0.0
      %3591 = vmatmul.mubr.f32.gmra.mrb[0].mxu0 %v3245
      %v3592 = vpop.f32.mrb[0].mxu0
      %v3593 = vadd.f32 0.0, %v3592
      %v3594 = vpop.f32.mrb[0].mxu0
      %3595 = vmatprep.mubr.f32.mxu0 0.0
      %3596 = vmatmul.mubr.f32.gmra.mrb[0].mxu0 %v3246
      %v3597 = vpop.f32.mrb[0].mxu0
      %v3598 = vadd.f32 0.0, %v3597
      %v3599 = vpop.f32.mrb[0].mxu0
      %3600 = vmatprep.mubr.f32.mxu0 0.0
      %3601 = vmatmul.mubr.f32.gmra.mrb[0].mxu0 %v3247
      %v3602 = vpop.f32.mrb[0].mxu0
      %v3603 = vadd.f32 0.0, %v3602
      %v3604 = vpop.f32.mrb[0].mxu0
      %3605 = vmatprep.mubr.f32.mxu0 0.0
      %3606 = vmatmul.mubr.f32.gmra.mrb[0].mxu0 %v3248
      %v3607 = vpop.f32.mrb[0].mxu0
      %v3608 = vadd.f32 0.0, %v3607
      %v3609 = vpop.f32.mrb[0].mxu0
      %3610 = vmatprep.mubr.f32.mxu0 0.0
      %3611 = vmatmul.mubr.f32.gmra.mrb[0].mxu0 %v3249
      %v3612 = vpop.f32.mrb[0].mxu0
      %v3613 = vadd.f32 0.0, %v3612
      %v3614 = vpop.f32.mrb[0].mxu0
      %3615 = vmatprep.mubr.f32.mxu0 0.0
      %3616 = vmatmul.mubr.f32.gmra.mrb[0].mxu0 %v3250
      %v3617 = vpop.f32.mrb[0].mxu0
      %v3618 = vadd.f32 0.0, %v3617
      %v3619 = vpop.f32.mrb[0].mxu0
      %3620 = vmatprep.mubr.f32.mxu0 0.0
      %3621 = vmatmul.mubr.f32.gmra.mrb[0].mxu0 %v3251
      %v3622 = vpop.f32.mrb[0].mxu0
      %v3623 = vadd.f32 0.0, %v3622
      %v3624 = vpop.f32.mrb[0].mxu0
      %3625 = vmatprep.mubr.f32.mxu0 0.0
      %3626 = vmatmul.mubr.f32.gmra.mrb[0].mxu0 %v3252
      %v3627 = vpop.f32.mrb[0].mxu0
      %v3628 = vadd.f32 0.0, %v3627
      %v3629 = vpop.f32.mrb[0].mxu0
      %3630 = vmatprep.mubr.f32.mxu0 0.0
      %3631 = vmatmul.mubr.f32.gmra.mrb[0].mxu0 %v3253
      %v3632 = vpop.f32.mrb[0].mxu0
      %v3633 = vadd.f32 0.0, %v3632
      %v3634 = vpop.f32.mrb[0].mxu0
      %3635 = vmatprep.mubr.f32.mxu0 0.0
      %3636 = vmatmul.mubr.f32.gmra.mrb[0].mxu0 %v3254
      %v3637 = vpop.f32.mrb[0].mxu0
      %v3638 = vadd.f32 0.0, %v3637
      %v3639 = vpop.f32.mrb[0].mxu0
      %3640 = vmatprep.mubr.f32.mxu0 0.0
      %3641 = vmatmul.mubr.f32.gmra.mrb[0].mxu0 %v3255
      %v3642 = vpop.f32.mrb[0].mxu0
      %v3643 = vadd.f32 0.0, %v3642
      %v3644 = vpop.f32.mrb[0].mxu0
      %3645 = vmatprep.mubr.f32.mxu0 0.0
      %3646 = vmatmul.mubr.f32.gmra.mrb[0].mxu0 %v3256
      %v3647 = vpop.f32.mrb[0].mxu0
      %v3648 = vadd.f32 0.0, %v3647
      %v3649 = vpop.f32.mrb[0].mxu0
      %3650 = vmatprep.mubr.f32.mxu0 0.0
      %3651 = vmatmul.mubr.f32.gmra.mrb[0].mxu0 %v3257
      %v3652 = vpop.f32.mrb[0].mxu0
      %v3653 = vadd.f32 0.0, %v3652
      %v3654 = vpop.f32.mrb[0].mxu0
      %3655 = vmatprep.mubr.f32.mxu0 0.0
      %3656 = vmatmul.mubr.f32.gmra.mrb[0].mxu0 %v3258
      %v3657 = vpop.f32.mrb[0].mxu0
      %v3658 = vadd.f32 0.0, %v3657
      %v3659 = vpop.f32.mrb[0].mxu0
      %3660 = vdwg.mxu0
      %v3661 = vadd.f32 %v2621, %v3343
      %v3662 = vadd.f32 %v2626, %v3348
      %v3663 = vadd.f32 %v2631, %v3353
      %v3664 = vadd.f32 %v2636, %v3358
      %v3665 = vadd.f32 %v2641, %v3363
      %v3666 = vadd.f32 %v2646, %v3368
      %v3667 = vadd.f32 %v2651, %v3373
      %v3668 = vadd.f32 %v2656, %v3378
      %v3669 = vadd.f32 %v2661, %v3383
      %v3670 = vadd.f32 %v2666, %v3388
      %v3671 = vadd.f32 %v2671, %v3393
      %v3672 = vadd.f32 %v2676, %v3398
      %v3673 = vadd.f32 %v2681, %v3403
      %v3674 = vadd.f32 %v2686, %v3408
      %v3675 = vadd.f32 %v2691, %v3413
      %v3676 = vadd.f32 %v2696, %v3418
      %v3677 = vadd.f32 %v2701, %v3423
      %v3678 = vadd.f32 %v2706, %v3428
      %v3679 = vadd.f32 %v2711, %v3433
      %v3680 = vadd.f32 %v2716, %v3438
      %v3681 = vadd.f32 %v2721, %v3443
      %v3682 = vadd.f32 %v2726, %v3448
      %v3683 = vadd.f32 %v2731, %v3453
      %v3684 = vadd.f32 %v2736, %v3458
      %v3685 = vadd.f32 %v2741, %v3463
      %v3686 = vadd.f32 %v2746, %v3468
      %v3687 = vadd.f32 %v2751, %v3473
      %v3688 = vadd.f32 %v2756, %v3478
      %v3689 = vadd.f32 %v2761, %v3483
      %v3690 = vadd.f32 %v2766, %v3488
      %v3691 = vadd.f32 %v2771, %v3493
      %v3692 = vadd.f32 %v2776, %v3498
      %v3693 = vadd.f32 %v2781, %v3503
      %v3694 = vadd.f32 %v2786, %v3508
      %v3695 = vadd.f32 %v2791, %v3513
      %v3696 = vadd.f32 %v2796, %v3518
      %v3697 = vadd.f32 %v2801, %v3523
      %v3698 = vadd.f32 %v2806, %v3528
      %v3699 = vadd.f32 %v2811, %v3533
      %v3700 = vadd.f32 %v2816, %v3538
      %v3701 = vadd.f32 %v2821, %v3543
      %v3702 = vadd.f32 %v2826, %v3548
      %v3703 = vadd.f32 %v2831, %v3553
      %v3704 = vadd.f32 %v2836, %v3558
      %v3705 = vadd.f32 %v2841, %v3563
      %v3706 = vadd.f32 %v2846, %v3568
      %v3707 = vadd.f32 %v2851, %v3573
      %v3708 = vadd.f32 %v2856, %v3578
      %v3709 = vadd.f32 %v2861, %v3583
      %v3710 = vadd.f32 %v2866, %v3588
      %v3711 = vadd.f32 %v2871, %v3593
      %v3712 = vadd.f32 %v2876, %v3598
      %v3713 = vadd.f32 %v2881, %v3603
      %v3714 = vadd.f32 %v2886, %v3608
      %v3715 = vadd.f32 %v2891, %v3613
      %v3716 = vadd.f32 %v2896, %v3618
      %v3717 = vadd.f32 %v2901, %v3623
      %v3718 = vadd.f32 %v2906, %v3628
      %v3719 = vadd.f32 %v2911, %v3633
      %v3720 = vadd.f32 %v2916, %v3638
      %v3721 = vadd.f32 %v2921, %v3643
      %v3722 = vadd.f32 %v2926, %v3648
      %v3723 = vadd.f32 %v2931, %v3653
      %v3724 = vadd.f32 %v2936, %v3658
      %3725 = vset.pattern.permute.xlu0 3
      %3726 = vperm.xlu0 %3725, %v1429
      %v3727 = vpop.permute.xlu0 %3726
      %3728 = vset.pattern.permute.xlu0 3
      %3729 = vperm.xlu0 %3728, %v1430
      %v3730 = vpop.permute.xlu0 %3729
      %3731 = vset.pattern.permute.xlu0 3
      %3732 = vperm.xlu0 %3731, %v1431
      %v3733 = vpop.permute.xlu0 %3732
      %3734 = vset.pattern.permute.xlu0 3
      %3735 = vperm.xlu0 %3734, %v1432
      %v3736 = vpop.permute.xlu0 %3735
      %3737 = vset.pattern.permute.xlu0 3
      %3738 = vperm.xlu0 %3737, %v1433
      %v3739 = vpop.permute.xlu0 %3738
      %3740 = vset.pattern.permute.xlu0 3
      %3741 = vperm.xlu0 %3740, %v1434
      %v3742 = vpop.permute.xlu0 %3741
      %3743 = vset.pattern.permute.xlu0 3
      %3744 = vperm.xlu0 %3743, %v1435
      %v3745 = vpop.permute.xlu0 %3744
      %3746 = vset.pattern.permute.xlu0 3
      %3747 = vperm.xlu0 %3746, %v1436
      %v3748 = vpop.permute.xlu0 %3747
      %3749 = vset.pattern.permute.xlu0 3
      %3750 = vperm.xlu0 %3749, %v1437
      %v3751 = vpop.permute.xlu0 %3750
      %3752 = vset.pattern.permute.xlu0 3
      %3753 = vperm.xlu0 %3752, %v1438
      %v3754 = vpop.permute.xlu0 %3753
      %3755 = vset.pattern.permute.xlu0 3
      %3756 = vperm.xlu0 %3755, %v1439
      %v3757 = vpop.permute.xlu0 %3756
      %3758 = vset.pattern.permute.xlu0 3
      %3759 = vperm.xlu0 %3758, %v1440
      %v3760 = vpop.permute.xlu0 %3759
      %3761 = vset.pattern.permute.xlu0 3
      %3762 = vperm.xlu0 %3761, %v1441
      %v3763 = vpop.permute.xlu0 %3762
      %3764 = vset.pattern.permute.xlu0 3
      %3765 = vperm.xlu0 %3764, %v1442
      %v3766 = vpop.permute.xlu0 %3765
      %3767 = vset.pattern.permute.xlu0 3
      %3768 = vperm.xlu0 %3767, %v1443
      %v3769 = vpop.permute.xlu0 %3768
      %3770 = vset.pattern.permute.xlu0 3
      %3771 = vperm.xlu0 %3770, %v1444
      %v3772 = vpop.permute.xlu0 %3771
      %3773 = vset.pattern.permute.xlu0 3
      %3774 = vperm.xlu0 %3773, %v1445
      %v3775 = vpop.permute.xlu0 %3774
      %3776 = vset.pattern.permute.xlu0 3
      %3777 = vperm.xlu0 %3776, %v1446
      %v3778 = vpop.permute.xlu0 %3777
      %3779 = vset.pattern.permute.xlu0 3
      %3780 = vperm.xlu0 %3779, %v1447
      %v3781 = vpop.permute.xlu0 %3780
      %3782 = vset.pattern.permute.xlu0 3
      %3783 = vperm.xlu0 %3782, %v1448
      %v3784 = vpop.permute.xlu0 %3783
      %3785 = vset.pattern.permute.xlu0 3
      %3786 = vperm.xlu0 %3785, %v1449
      %v3787 = vpop.permute.xlu0 %3786
      %3788 = vset.pattern.permute.xlu0 3
      %3789 = vperm.xlu0 %3788, %v1450
      %v3790 = vpop.permute.xlu0 %3789
      %3791 = vset.pattern.permute.xlu0 3
      %3792 = vperm.xlu0 %3791, %v1451
      %v3793 = vpop.permute.xlu0 %3792
      %3794 = vset.pattern.permute.xlu0 3
      %3795 = vperm.xlu0 %3794, %v1452
      %v3796 = vpop.permute.xlu0 %3795
      %3797 = vset.pattern.permute.xlu0 3
      %3798 = vperm.xlu0 %3797, %v1453
      %v3799 = vpop.permute.xlu0 %3798
      %3800 = vset.pattern.permute.xlu0 3
      %3801 = vperm.xlu0 %3800, %v1454
      %v3802 = vpop.permute.xlu0 %3801
      %3803 = vset.pattern.permute.xlu0 3
      %3804 = vperm.xlu0 %3803, %v1455
      %v3805 = vpop.permute.xlu0 %3804
      %3806 = vset.pattern.permute.xlu0 3
      %3807 = vperm.xlu0 %3806, %v1456
      %v3808 = vpop.permute.xlu0 %3807
      %3809 = vset.pattern.permute.xlu0 3
      %3810 = vperm.xlu0 %3809, %v1457
      %v3811 = vpop.permute.xlu0 %3810
      %3812 = vset.pattern.permute.xlu0 3
      %3813 = vperm.xlu0 %3812, %v1458
      %v3814 = vpop.permute.xlu0 %3813
      %3815 = vset.pattern.permute.xlu0 3
      %3816 = vperm.xlu0 %3815, %v1459
      %v3817 = vpop.permute.xlu0 %3816
      %3818 = vset.pattern.permute.xlu0 3
      %3819 = vperm.xlu0 %3818, %v1460
      %v3820 = vpop.permute.xlu0 %3819
      %3821 = vset.pattern.permute.xlu0 3
      %3822 = vperm.xlu0 %3821, %v1461
      %v3823 = vpop.permute.xlu0 %3822
      %3824 = vset.pattern.permute.xlu0 3
      %3825 = vperm.xlu0 %3824, %v1462
      %v3826 = vpop.permute.xlu0 %3825
      %3827 = vset.pattern.permute.xlu0 3
      %3828 = vperm.xlu0 %3827, %v1463
      %v3829 = vpop.permute.xlu0 %3828
      %3830 = vset.pattern.permute.xlu0 3
      %3831 = vperm.xlu0 %3830, %v1464
      %v3832 = vpop.permute.xlu0 %3831
      %3833 = vset.pattern.permute.xlu0 3
      %3834 = vperm.xlu0 %3833, %v1465
      %v3835 = vpop.permute.xlu0 %3834
      %3836 = vset.pattern.permute.xlu0 3
      %3837 = vperm.xlu0 %3836, %v1466
      %v3838 = vpop.permute.xlu0 %3837
      %3839 = vset.pattern.permute.xlu0 3
      %3840 = vperm.xlu0 %3839, %v1467
      %v3841 = vpop.permute.xlu0 %3840
      %3842 = vset.pattern.permute.xlu0 3
      %3843 = vperm.xlu0 %3842, %v1468
      %v3844 = vpop.permute.xlu0 %3843
      %3845 = vset.pattern.permute.xlu0 3
      %3846 = vperm.xlu0 %3845, %v1469
      %v3847 = vpop.permute.xlu0 %3846
      %3848 = vset.pattern.permute.xlu0 3
      %3849 = vperm.xlu0 %3848, %v1470
      %v3850 = vpop.permute.xlu0 %3849
      %3851 = vset.pattern.permute.xlu0 3
      %3852 = vperm.xlu0 %3851, %v1471
      %v3853 = vpop.permute.xlu0 %3852
      %3854 = vset.pattern.permute.xlu0 3
      %3855 = vperm.xlu0 %3854, %v1472
      %v3856 = vpop.permute.xlu0 %3855
      %3857 = vset.pattern.permute.xlu0 3
      %3858 = vperm.xlu0 %3857, %v1473
      %v3859 = vpop.permute.xlu0 %3858
      %3860 = vset.pattern.permute.xlu0 3
      %3861 = vperm.xlu0 %3860, %v1474
      %v3862 = vpop.permute.xlu0 %3861
      %3863 = vset.pattern.permute.xlu0 3
      %3864 = vperm.xlu0 %3863, %v1475
      %v3865 = vpop.permute.xlu0 %3864
      %3866 = vset.pattern.permute.xlu0 3
      %3867 = vperm.xlu0 %3866, %v1476
      %v3868 = vpop.permute.xlu0 %3867
      %3869 = vset.pattern.permute.xlu0 3
      %3870 = vperm.xlu0 %3869, %v1477
      %v3871 = vpop.permute.xlu0 %3870
      %3872 = vset.pattern.permute.xlu0 3
      %3873 = vperm.xlu0 %3872, %v1478
      %v3874 = vpop.permute.xlu0 %3873
      %3875 = vset.pattern.permute.xlu0 3
      %3876 = vperm.xlu0 %3875, %v1479
      %v3877 = vpop.permute.xlu0 %3876
      %3878 = vset.pattern.permute.xlu0 3
      %3879 = vperm.xlu0 %3878, %v1480
      %v3880 = vpop.permute.xlu0 %3879
      %3881 = vset.pattern.permute.xlu0 3
      %3882 = vperm.xlu0 %3881, %v1481
      %v3883 = vpop.permute.xlu0 %3882
      %3884 = vset.pattern.permute.xlu0 3
      %3885 = vperm.xlu0 %3884, %v1482
      %v3886 = vpop.permute.xlu0 %3885
      %3887 = vset.pattern.permute.xlu0 3
      %3888 = vperm.xlu0 %3887, %v1483
      %v3889 = vpop.permute.xlu0 %3888
      %3890 = vset.pattern.permute.xlu0 3
      %3891 = vperm.xlu0 %3890, %v1484
      %v3892 = vpop.permute.xlu0 %3891
      %3893 = vset.pattern.permute.xlu0 3
      %3894 = vperm.xlu0 %3893, %v1485
      %v3895 = vpop.permute.xlu0 %3894
      %3896 = vset.pattern.permute.xlu0 3
      %3897 = vperm.xlu0 %3896, %v1486
      %v3898 = vpop.permute.xlu0 %3897
      %3899 = vset.pattern.permute.xlu0 3
      %3900 = vperm.xlu0 %3899, %v1487
      %v3901 = vpop.permute.xlu0 %3900
      %3902 = vset.pattern.permute.xlu0 3
      %3903 = vperm.xlu0 %3902, %v1488
      %v3904 = vpop.permute.xlu0 %3903
      %3905 = vset.pattern.permute.xlu0 3
      %3906 = vperm.xlu0 %3905, %v1489
      %v3907 = vpop.permute.xlu0 %3906
      %3908 = vset.pattern.permute.xlu0 3
      %3909 = vperm.xlu0 %3908, %v1490
      %v3910 = vpop.permute.xlu0 %3909
      %3911 = vset.pattern.permute.xlu0 3
      %3912 = vperm.xlu0 %3911, %v1491
      %v3913 = vpop.permute.xlu0 %3912
      %3914 = vset.pattern.permute.xlu0 3
      %3915 = vperm.xlu0 %3914, %v1492
      %v3916 = vpop.permute.xlu0 %3915
      %vm3917 = vcmp.eq.s32.totalorder %v1495, %v3727
      %vm3918 = vcmp.eq.s32.totalorder %v1495, %v3730
      %vm3919 = vcmp.eq.s32.totalorder %v1495, %v3733
      %vm3920 = vcmp.eq.s32.totalorder %v1495, %v3736
      %vm3921 = vcmp.eq.s32.totalorder %v1495, %v3739
      %vm3922 = vcmp.eq.s32.totalorder %v1495, %v3742
      %vm3923 = vcmp.eq.s32.totalorder %v1495, %v3745
      %vm3924 = vcmp.eq.s32.totalorder %v1495, %v3748
      %vm3925 = vcmp.eq.s32.totalorder %v1495, %v3751
      %vm3926 = vcmp.eq.s32.totalorder %v1495, %v3754
      %vm3927 = vcmp.eq.s32.totalorder %v1495, %v3757
      %vm3928 = vcmp.eq.s32.totalorder %v1495, %v3760
      %vm3929 = vcmp.eq.s32.totalorder %v1495, %v3763
      %vm3930 = vcmp.eq.s32.totalorder %v1495, %v3766
      %vm3931 = vcmp.eq.s32.totalorder %v1495, %v3769
      %vm3932 = vcmp.eq.s32.totalorder %v1495, %v3772
      %vm3933 = vcmp.eq.s32.totalorder %v1495, %v3775
      %vm3934 = vcmp.eq.s32.totalorder %v1495, %v3778
      %vm3935 = vcmp.eq.s32.totalorder %v1495, %v3781
      %vm3936 = vcmp.eq.s32.totalorder %v1495, %v3784
      %vm3937 = vcmp.eq.s32.totalorder %v1495, %v3787
      %vm3938 = vcmp.eq.s32.totalorder %v1495, %v3790
      %vm3939 = vcmp.eq.s32.totalorder %v1495, %v3793
      %vm3940 = vcmp.eq.s32.totalorder %v1495, %v3796
      %vm3941 = vcmp.eq.s32.totalorder %v1495, %v3799
      %vm3942 = vcmp.eq.s32.totalorder %v1495, %v3802
      %vm3943 = vcmp.eq.s32.totalorder %v1495, %v3805
      %vm3944 = vcmp.eq.s32.totalorder %v1495, %v3808
      %vm3945 = vcmp.eq.s32.totalorder %v1495, %v3811
      %vm3946 = vcmp.eq.s32.totalorder %v1495, %v3814
      %vm3947 = vcmp.eq.s32.totalorder %v1495, %v3817
      %vm3948 = vcmp.eq.s32.totalorder %v1495, %v3820
      %vm3949 = vcmp.eq.s32.totalorder %v1495, %v3823
      %vm3950 = vcmp.eq.s32.totalorder %v1495, %v3826
      %vm3951 = vcmp.eq.s32.totalorder %v1495, %v3829
      %vm3952 = vcmp.eq.s32.totalorder %v1495, %v3832
      %vm3953 = vcmp.eq.s32.totalorder %v1495, %v3835
      %vm3954 = vcmp.eq.s32.totalorder %v1495, %v3838
      %vm3955 = vcmp.eq.s32.totalorder %v1495, %v3841
      %vm3956 = vcmp.eq.s32.totalorder %v1495, %v3844
      %vm3957 = vcmp.eq.s32.totalorder %v1495, %v3847
      %vm3958 = vcmp.eq.s32.totalorder %v1495, %v3850
      %vm3959 = vcmp.eq.s32.totalorder %v1495, %v3853
      %vm3960 = vcmp.eq.s32.totalorder %v1495, %v3856
      %vm3961 = vcmp.eq.s32.totalorder %v1495, %v3859
      %vm3962 = vcmp.eq.s32.totalorder %v1495, %v3862
      %vm3963 = vcmp.eq.s32.totalorder %v1495, %v3865
      %vm3964 = vcmp.eq.s32.totalorder %v1495, %v3868
      %vm3965 = vcmp.eq.s32.totalorder %v1495, %v3871
      %vm3966 = vcmp.eq.s32.totalorder %v1495, %v3874
      %vm3967 = vcmp.eq.s32.totalorder %v1495, %v3877
      %vm3968 = vcmp.eq.s32.totalorder %v1495, %v3880
      %vm3969 = vcmp.eq.s32.totalorder %v1495, %v3883
      %vm3970 = vcmp.eq.s32.totalorder %v1495, %v3886
      %vm3971 = vcmp.eq.s32.totalorder %v1495, %v3889
      %vm3972 = vcmp.eq.s32.totalorder %v1495, %v3892
      %vm3973 = vcmp.eq.s32.totalorder %v1495, %v3895
      %vm3974 = vcmp.eq.s32.totalorder %v1495, %v3898
      %vm3975 = vcmp.eq.s32.totalorder %v1495, %v3901
      %vm3976 = vcmp.eq.s32.totalorder %v1495, %v3904
      %vm3977 = vcmp.eq.s32.totalorder %v1495, %v3907
      %vm3978 = vcmp.eq.s32.totalorder %v1495, %v3910
      %vm3979 = vcmp.eq.s32.totalorder %v1495, %v3913
      %vm3980 = vcmp.eq.s32.totalorder %v1495, %v3916
      %v3981 = vsel %vm3917, %v1111, 0.0
      %v3982 = vsel %vm3918, %v1116, 0.0
      %v3983 = vsel %vm3919, %v1121, 0.0
      %v3984 = vsel %vm3920, %v1126, 0.0
      %v3985 = vsel %vm3921, %v1131, 0.0
      %v3986 = vsel %vm3922, %v1136, 0.0
      %v3987 = vsel %vm3923, %v1141, 0.0
      %v3988 = vsel %vm3924, %v1146, 0.0
      %v3989 = vsel %vm3925, %v1151, 0.0
      %v3990 = vsel %vm3926, %v1156, 0.0
      %v3991 = vsel %vm3927, %v1161, 0.0
      %v3992 = vsel %vm3928, %v1166, 0.0
      %v3993 = vsel %vm3929, %v1171, 0.0
      %v3994 = vsel %vm3930, %v1176, 0.0
      %v3995 = vsel %vm3931, %v1181, 0.0
      %v3996 = vsel %vm3932, %v1186, 0.0
      %v3997 = vsel %vm3933, %v1191, 0.0
      %v3998 = vsel %vm3934, %v1196, 0.0
      %v3999 = vsel %vm3935, %v1201, 0.0
      %v4000 = vsel %vm3936, %v1206, 0.0
      %v4001 = vsel %vm3937, %v1211, 0.0
      %v4002 = vsel %vm3938, %v1216, 0.0
      %v4003 = vsel %vm3939, %v1221, 0.0
      %v4004 = vsel %vm3940, %v1226, 0.0
      %v4005 = vsel %vm3941, %v1231, 0.0
      %v4006 = vsel %vm3942, %v1236, 0.0
      %v4007 = vsel %vm3943, %v1241, 0.0
      %v4008 = vsel %vm3944, %v1246, 0.0
      %v4009 = vsel %vm3945, %v1251, 0.0
      %v4010 = vsel %vm3946, %v1256, 0.0
      %v4011 = vsel %vm3947, %v1261, 0.0
      %v4012 = vsel %vm3948, %v1266, 0.0
      %v4013 = vsel %vm3949, %v1271, 0.0
      %v4014 = vsel %vm3950, %v1276, 0.0
      %v4015 = vsel %vm3951, %v1281, 0.0
      %v4016 = vsel %vm3952, %v1286, 0.0
      %v4017 = vsel %vm3953, %v1291, 0.0
      %v4018 = vsel %vm3954, %v1296, 0.0
      %v4019 = vsel %vm3955, %v1301, 0.0
      %v4020 = vsel %vm3956, %v1306, 0.0
      %v4021 = vsel %vm3957, %v1311, 0.0
      %v4022 = vsel %vm3958, %v1316, 0.0
      %v4023 = vsel %vm3959, %v1321, 0.0
      %v4024 = vsel %vm3960, %v1326, 0.0
      %v4025 = vsel %vm3961, %v1331, 0.0
      %v4026 = vsel %vm3962, %v1336, 0.0
      %v4027 = vsel %vm3963, %v1341, 0.0
      %v4028 = vsel %vm3964, %v1346, 0.0
      %v4029 = vsel %vm3965, %v1351, 0.0
      %v4030 = vsel %vm3966, %v1356, 0.0
      %v4031 = vsel %vm3967, %v1361, 0.0
      %v4032 = vsel %vm3968, %v1366, 0.0
      %v4033 = vsel %vm3969, %v1371, 0.0
      %v4034 = vsel %vm3970, %v1376, 0.0
      %v4035 = vsel %vm3971, %v1381, 0.0
      %v4036 = vsel %vm3972, %v1386, 0.0
      %v4037 = vsel %vm3973, %v1391, 0.0
      %v4038 = vsel %vm3974, %v1396, 0.0
      %v4039 = vsel %vm3975, %v1401, 0.0
      %v4040 = vsel %vm3976, %v1406, 0.0
      %v4041 = vsel %vm3977, %v1411, 0.0
      %v4042 = vsel %vm3978, %v1416, 0.0
      %v4043 = vsel %vm3979, %v1421, 0.0
      %v4044 = vsel %vm3980, %v1426, 0.0
      %s4045 = scalar_lea.vmem %s6, 384
      %v4046 = vld [vmem:[%s4045] sm:$0xff]
      %v4047 = vld [vmem:[%s4045 + $0x8] sm:$0xff]
      %v4048 = vld [vmem:[%s4045 + $0x10] sm:$0xff]
      %v4049 = vld [vmem:[%s4045 + $0x18] sm:$0xff]
      %v4050 = vld [vmem:[%s4045 + $0x20] sm:$0xff]
      %v4051 = vld [vmem:[%s4045 + $0x28] sm:$0xff]
      %v4052 = vld [vmem:[%s4045 + $0x30] sm:$0xff]
      %v4053 = vld [vmem:[%s4045 + $0x38] sm:$0xff]
      %v4054 = vld [vmem:[%s4045 + $0x40] sm:$0xff]
      %v4055 = vld [vmem:[%s4045 + $0x48] sm:$0xff]
      %v4056 = vld [vmem:[%s4045 + $0x50] sm:$0xff]
      %v4057 = vld [vmem:[%s4045 + $0x58] sm:$0xff]
      %v4058 = vld [vmem:[%s4045 + $0x60] sm:$0xff]
      %v4059 = vld [vmem:[%s4045 + $0x68] sm:$0xff]
      %v4060 = vld [vmem:[%s4045 + $0x70] sm:$0xff]
      %v4061 = vld [vmem:[%s4045 + $0x78] sm:$0xff]
      %4062 = vmatprep.subr.mxu0 0.0
      %4063 = vmatpush1.msra.mxu0 %v4046
      %4064 = vmatprep.subr.mxu0 0.0
      %4065 = vmatpush1.msra.mxu0 %v4047
      %4066 = vmatprep.subr.mxu0 0.0
      %4067 = vmatpush1.msra.mxu0 %v4048
      %4068 = vmatprep.subr.mxu0 0.0
      %4069 = vmatpush1.msra.mxu0 %v4049
      %4070 = vmatprep.subr.mxu0 0.0
      %4071 = vmatpush1.msra.mxu0 %v4050
      %4072 = vmatprep.subr.mxu0 0.0
      %4073 = vmatpush1.msra.mxu0 %v4051
      %4074 = vmatprep.subr.mxu0 0.0
      %4075 = vmatpush1.msra.mxu0 %v4052
      %4076 = vmatprep.subr.mxu0 0.0
      %4077 = vmatpush1.msra.mxu0 %v4053
      %4078 = vmatprep.subr.mxu0 0.0
      %4079 = vmatpush1.msra.mxu0 %v4054
      %4080 = vmatprep.subr.mxu0 0.0
      %4081 = vmatpush1.msra.mxu0 %v4055
      %4082 = vmatprep.subr.mxu0 0.0
      %4083 = vmatpush1.msra.mxu0 %v4056
      %4084 = vmatprep.subr.mxu0 0.0
      %4085 = vmatpush1.msra.mxu0 %v4057
      %4086 = vmatprep.subr.mxu0 0.0
      %4087 = vmatpush1.msra.mxu0 %v4058
      %4088 = vmatprep.subr.mxu0 0.0
      %4089 = vmatpush1.msra.mxu0 %v4059
      %4090 = vmatprep.subr.mxu0 0.0
      %4091 = vmatpush1.msra.mxu0 %v4060
      %4092 = vmatprep.subr.mxu0 0.0
      %4093 = vmatpush1.msra.mxu0 %v4061
      %4094 = vmatprep.subr.mxu0 0.0
      %4095 = vmatpush1.msra.mxu0 0.0
      %4096 = vmatprep.subr.mxu0 0.0
      %4097 = vmatpush1.msra.mxu0 0.0
      %4098 = vmatprep.subr.mxu0 0.0
      %4099 = vmatpush1.msra.mxu0 0.0
      %4100 = vmatprep.subr.mxu0 0.0
      %4101 = vmatpush1.msra.mxu0 0.0
      %4102 = vmatprep.subr.mxu0 0.0
      %4103 = vmatpush1.msra.mxu0 0.0
      %4104 = vmatprep.subr.mxu0 0.0
      %4105 = vmatpush1.msra.mxu0 0.0
      %4106 = vmatprep.subr.mxu0 0.0
      %4107 = vmatpush1.msra.mxu0 0.0
      %4108 = vmatprep.subr.mxu0 0.0
      %4109 = vmatpush1.msra.mxu0 0.0
      %4110 = vmatprep.subr.mxu0 0.0
      %4111 = vmatpush1.msra.mxu0 0.0
      %4112 = vmatprep.subr.mxu0 0.0
      %4113 = vmatpush1.msra.mxu0 0.0
      %4114 = vmatprep.subr.mxu0 0.0
      %4115 = vmatpush1.msra.mxu0 0.0
      %4116 = vmatprep.subr.mxu0 0.0
      %4117 = vmatpush1.msra.mxu0 0.0
      %4118 = vmatprep.subr.mxu0 0.0
      %4119 = vmatpush1.msra.mxu0 0.0
      %4120 = vmatprep.subr.mxu0 0.0
      %4121 = vmatpush1.msra.mxu0 0.0
      %4122 = vmatprep.subr.mxu0 0.0
      %4123 = vmatpush1.msra.mxu0 0.0
      %4124 = vmatprep.subr.mxu0 0.0
      %4125 = vmatpush1.msra.mxu0 0.0
      %4126 = vmatprep.mubr.f32.mxu0 0.0
      %4127 = vmatmul.mubr.f32.gmra.mrb[0].mxu0 %v3981
      %v4128 = vpop.f32.mrb[0].mxu0
      %v4129 = vadd.f32 0.0, %v4128
      %v4130 = vpop.f32.mrb[0].mxu0
      %4131 = vmatprep.mubr.f32.mxu0 0.0
      %4132 = vmatmul.mubr.f32.gmra.mrb[0].mxu0 %v3982
      %v4133 = vpop.f32.mrb[0].mxu0
      %v4134 = vadd.f32 0.0, %v4133
      %v4135 = vpop.f32.mrb[0].mxu0
      %4136 = vmatprep.mubr.f32.mxu0 0.0
      %4137 = vmatmul.mubr.f32.gmra.mrb[0].mxu0 %v3983
      %v4138 = vpop.f32.mrb[0].mxu0
      %v4139 = vadd.f32 0.0, %v4138
      %v4140 = vpop.f32.mrb[0].mxu0
      %4141 = vmatprep.mubr.f32.mxu0 0.0
      %4142 = vmatmul.mubr.f32.gmra.mrb[0].mxu0 %v3984
      %v4143 = vpop.f32.mrb[0].mxu0
      %v4144 = vadd.f32 0.0, %v4143
      %v4145 = vpop.f32.mrb[0].mxu0
      %4146 = vmatprep.mubr.f32.mxu0 0.0
      %4147 = vmatmul.mubr.f32.gmra.mrb[0].mxu0 %v3985
      %v4148 = vpop.f32.mrb[0].mxu0
      %v4149 = vadd.f32 0.0, %v4148
      %v4150 = vpop.f32.mrb[0].mxu0
      %4151 = vmatprep.mubr.f32.mxu0 0.0
      %4152 = vmatmul.mubr.f32.gmra.mrb[0].mxu0 %v3986
      %v4153 = vpop.f32.mrb[0].mxu0
      %v4154 = vadd.f32 0.0, %v4153
      %v4155 = vpop.f32.mrb[0].mxu0
      %4156 = vmatprep.mubr.f32.mxu0 0.0
      %4157 = vmatmul.mubr.f32.gmra.mrb[0].mxu0 %v3987
      %v4158 = vpop.f32.mrb[0].mxu0
      %v4159 = vadd.f32 0.0, %v4158
      %v4160 = vpop.f32.mrb[0].mxu0
      %4161 = vmatprep.mubr.f32.mxu0 0.0
      %4162 = vmatmul.mubr.f32.gmra.mrb[0].mxu0 %v3988
      %v4163 = vpop.f32.mrb[0].mxu0
      %v4164 = vadd.f32 0.0, %v4163
      %v4165 = vpop.f32.mrb[0].mxu0
      %4166 = vmatprep.mubr.f32.mxu0 0.0
      %4167 = vmatmul.mubr.f32.gmra.mrb[0].mxu0 %v3989
      %v4168 = vpop.f32.mrb[0].mxu0
      %v4169 = vadd.f32 0.0, %v4168
      %v4170 = vpop.f32.mrb[0].mxu0
      %4171 = vmatprep.mubr.f32.mxu0 0.0
      %4172 = vmatmul.mubr.f32.gmra.mrb[0].mxu0 %v3990
      %v4173 = vpop.f32.mrb[0].mxu0
      %v4174 = vadd.f32 0.0, %v4173
      %v4175 = vpop.f32.mrb[0].mxu0
      %4176 = vmatprep.mubr.f32.mxu0 0.0
      %4177 = vmatmul.mubr.f32.gmra.mrb[0].mxu0 %v3991
      %v4178 = vpop.f32.mrb[0].mxu0
      %v4179 = vadd.f32 0.0, %v4178
      %v4180 = vpop.f32.mrb[0].mxu0
      %4181 = vmatprep.mubr.f32.mxu0 0.0
      %4182 = vmatmul.mubr.f32.gmra.mrb[0].mxu0 %v3992
      %v4183 = vpop.f32.mrb[0].mxu0
      %v4184 = vadd.f32 0.0, %v4183
      %v4185 = vpop.f32.mrb[0].mxu0
      %4186 = vmatprep.mubr.f32.mxu0 0.0
      %4187 = vmatmul.mubr.f32.gmra.mrb[0].mxu0 %v3993
      %v4188 = vpop.f32.mrb[0].mxu0
      %v4189 = vadd.f32 0.0, %v4188
      %v4190 = vpop.f32.mrb[0].mxu0
      %4191 = vmatprep.mubr.f32.mxu0 0.0
      %4192 = vmatmul.mubr.f32.gmra.mrb[0].mxu0 %v3994
      %v4193 = vpop.f32.mrb[0].mxu0
      %v4194 = vadd.f32 0.0, %v4193
      %v4195 = vpop.f32.mrb[0].mxu0
      %4196 = vmatprep.mubr.f32.mxu0 0.0
      %4197 = vmatmul.mubr.f32.gmra.mrb[0].mxu0 %v3995
      %v4198 = vpop.f32.mrb[0].mxu0
      %v4199 = vadd.f32 0.0, %v4198
      %v4200 = vpop.f32.mrb[0].mxu0
      %4201 = vmatprep.mubr.f32.mxu0 0.0
      %4202 = vmatmul.mubr.f32.gmra.mrb[0].mxu0 %v3996
      %v4203 = vpop.f32.mrb[0].mxu0
      %v4204 = vadd.f32 0.0, %v4203
      %v4205 = vpop.f32.mrb[0].mxu0
      %4206 = vmatprep.mubr.f32.mxu0 0.0
      %4207 = vmatmul.mubr.f32.gmra.mrb[0].mxu0 %v3997
      %v4208 = vpop.f32.mrb[0].mxu0
      %v4209 = vadd.f32 0.0, %v4208
      %v4210 = vpop.f32.mrb[0].mxu0
      %4211 = vmatprep.mubr.f32.mxu0 0.0
      %4212 = vmatmul.mubr.f32.gmra.mrb[0].mxu0 %v3998
      %v4213 = vpop.f32.mrb[0].mxu0
      %v4214 = vadd.f32 0.0, %v4213
      %v4215 = vpop.f32.mrb[0].mxu0
      %4216 = vmatprep.mubr.f32.mxu0 0.0
      %4217 = vmatmul.mubr.f32.gmra.mrb[0].mxu0 %v3999
      %v4218 = vpop.f32.mrb[0].mxu0
      %v4219 = vadd.f32 0.0, %v4218
      %v4220 = vpop.f32.mrb[0].mxu0
      %4221 = vmatprep.mubr.f32.mxu0 0.0
      %4222 = vmatmul.mubr.f32.gmra.mrb[0].mxu0 %v4000
      %v4223 = vpop.f32.mrb[0].mxu0
      %v4224 = vadd.f32 0.0, %v4223
      %v4225 = vpop.f32.mrb[0].mxu0
      %4226 = vmatprep.mubr.f32.mxu0 0.0
      %4227 = vmatmul.mubr.f32.gmra.mrb[0].mxu0 %v4001
      %v4228 = vpop.f32.mrb[0].mxu0
      %v4229 = vadd.f32 0.0, %v4228
      %v4230 = vpop.f32.mrb[0].mxu0
      %4231 = vmatprep.mubr.f32.mxu0 0.0
      %4232 = vmatmul.mubr.f32.gmra.mrb[0].mxu0 %v4002
      %v4233 = vpop.f32.mrb[0].mxu0
      %v4234 = vadd.f32 0.0, %v4233
      %v4235 = vpop.f32.mrb[0].mxu0
      %4236 = vmatprep.mubr.f32.mxu0 0.0
      %4237 = vmatmul.mubr.f32.gmra.mrb[0].mxu0 %v4003
      %v4238 = vpop.f32.mrb[0].mxu0
      %v4239 = vadd.f32 0.0, %v4238
      %v4240 = vpop.f32.mrb[0].mxu0
      %4241 = vmatprep.mubr.f32.mxu0 0.0
      %4242 = vmatmul.mubr.f32.gmra.mrb[0].mxu0 %v4004
      %v4243 = vpop.f32.mrb[0].mxu0
      %v4244 = vadd.f32 0.0, %v4243
      %v4245 = vpop.f32.mrb[0].mxu0
      %4246 = vmatprep.mubr.f32.mxu0 0.0
      %4247 = vmatmul.mubr.f32.gmra.mrb[0].mxu0 %v4005
      %v4248 = vpop.f32.mrb[0].mxu0
      %v4249 = vadd.f32 0.0, %v4248
      %v4250 = vpop.f32.mrb[0].mxu0
      %4251 = vmatprep.mubr.f32.mxu0 0.0
      %4252 = vmatmul.mubr.f32.gmra.mrb[0].mxu0 %v4006
      %v4253 = vpop.f32.mrb[0].mxu0
      %v4254 = vadd.f32 0.0, %v4253
      %v4255 = vpop.f32.mrb[0].mxu0
      %4256 = vmatprep.mubr.f32.mxu0 0.0
      %4257 = vmatmul.mubr.f32.gmra.mrb[0].mxu0 %v4007
      %v4258 = vpop.f32.mrb[0].mxu0
      %v4259 = vadd.f32 0.0, %v4258
      %v4260 = vpop.f32.mrb[0].mxu0
      %4261 = vmatprep.mubr.f32.mxu0 0.0
      %4262 = vmatmul.mubr.f32.gmra.mrb[0].mxu0 %v4008
      %v4263 = vpop.f32.mrb[0].mxu0
      %v4264 = vadd.f32 0.0, %v4263
      %v4265 = vpop.f32.mrb[0].mxu0
      %4266 = vmatprep.mubr.f32.mxu0 0.0
      %4267 = vmatmul.mubr.f32.gmra.mrb[0].mxu0 %v4009
      %v4268 = vpop.f32.mrb[0].mxu0
      %v4269 = vadd.f32 0.0, %v4268
      %v4270 = vpop.f32.mrb[0].mxu0
      %4271 = vmatprep.mubr.f32.mxu0 0.0
      %4272 = vmatmul.mubr.f32.gmra.mrb[0].mxu0 %v4010
      %v4273 = vpop.f32.mrb[0].mxu0
      %v4274 = vadd.f32 0.0, %v4273
      %v4275 = vpop.f32.mrb[0].mxu0
      %4276 = vmatprep.mubr.f32.mxu0 0.0
      %4277 = vmatmul.mubr.f32.gmra.mrb[0].mxu0 %v4011
      %v4278 = vpop.f32.mrb[0].mxu0
      %v4279 = vadd.f32 0.0, %v4278
      %v4280 = vpop.f32.mrb[0].mxu0
      %4281 = vmatprep.mubr.f32.mxu0 0.0
      %4282 = vmatmul.mubr.f32.gmra.mrb[0].mxu0 %v4012
      %v4283 = vpop.f32.mrb[0].mxu0
      %v4284 = vadd.f32 0.0, %v4283
      %v4285 = vpop.f32.mrb[0].mxu0
      %4286 = vmatprep.mubr.f32.mxu0 0.0
      %4287 = vmatmul.mubr.f32.gmra.mrb[0].mxu0 %v4013
      %v4288 = vpop.f32.mrb[0].mxu0
      %v4289 = vadd.f32 0.0, %v4288
      %v4290 = vpop.f32.mrb[0].mxu0
      %4291 = vmatprep.mubr.f32.mxu0 0.0
      %4292 = vmatmul.mubr.f32.gmra.mrb[0].mxu0 %v4014
      %v4293 = vpop.f32.mrb[0].mxu0
      %v4294 = vadd.f32 0.0, %v4293
      %v4295 = vpop.f32.mrb[0].mxu0
      %4296 = vmatprep.mubr.f32.mxu0 0.0
      %4297 = vmatmul.mubr.f32.gmra.mrb[0].mxu0 %v4015
      %v4298 = vpop.f32.mrb[0].mxu0
      %v4299 = vadd.f32 0.0, %v4298
      %v4300 = vpop.f32.mrb[0].mxu0
      %4301 = vmatprep.mubr.f32.mxu0 0.0
      %4302 = vmatmul.mubr.f32.gmra.mrb[0].mxu0 %v4016
      %v4303 = vpop.f32.mrb[0].mxu0
      %v4304 = vadd.f32 0.0, %v4303
      %v4305 = vpop.f32.mrb[0].mxu0
      %4306 = vmatprep.mubr.f32.mxu0 0.0
      %4307 = vmatmul.mubr.f32.gmra.mrb[0].mxu0 %v4017
      %v4308 = vpop.f32.mrb[0].mxu0
      %v4309 = vadd.f32 0.0, %v4308
      %v4310 = vpop.f32.mrb[0].mxu0
      %4311 = vmatprep.mubr.f32.mxu0 0.0
      %4312 = vmatmul.mubr.f32.gmra.mrb[0].mxu0 %v4018
      %v4313 = vpop.f32.mrb[0].mxu0
      %v4314 = vadd.f32 0.0, %v4313
      %v4315 = vpop.f32.mrb[0].mxu0
      %4316 = vmatprep.mubr.f32.mxu0 0.0
      %4317 = vmatmul.mubr.f32.gmra.mrb[0].mxu0 %v4019
      %v4318 = vpop.f32.mrb[0].mxu0
      %v4319 = vadd.f32 0.0, %v4318
      %v4320 = vpop.f32.mrb[0].mxu0
      %4321 = vmatprep.mubr.f32.mxu0 0.0
      %4322 = vmatmul.mubr.f32.gmra.mrb[0].mxu0 %v4020
      %v4323 = vpop.f32.mrb[0].mxu0
      %v4324 = vadd.f32 0.0, %v4323
      %v4325 = vpop.f32.mrb[0].mxu0
      %4326 = vmatprep.mubr.f32.mxu0 0.0
      %4327 = vmatmul.mubr.f32.gmra.mrb[0].mxu0 %v4021
      %v4328 = vpop.f32.mrb[0].mxu0
      %v4329 = vadd.f32 0.0, %v4328
      %v4330 = vpop.f32.mrb[0].mxu0
      %4331 = vmatprep.mubr.f32.mxu0 0.0
      %4332 = vmatmul.mubr.f32.gmra.mrb[0].mxu0 %v4022
      %v4333 = vpop.f32.mrb[0].mxu0
      %v4334 = vadd.f32 0.0, %v4333
      %v4335 = vpop.f32.mrb[0].mxu0
      %4336 = vmatprep.mubr.f32.mxu0 0.0
      %4337 = vmatmul.mubr.f32.gmra.mrb[0].mxu0 %v4023
      %v4338 = vpop.f32.mrb[0].mxu0
      %v4339 = vadd.f32 0.0, %v4338
      %v4340 = vpop.f32.mrb[0].mxu0
      %4341 = vmatprep.mubr.f32.mxu0 0.0
      %4342 = vmatmul.mubr.f32.gmra.mrb[0].mxu0 %v4024
      %v4343 = vpop.f32.mrb[0].mxu0
      %v4344 = vadd.f32 0.0, %v4343
      %v4345 = vpop.f32.mrb[0].mxu0
      %4346 = vmatprep.mubr.f32.mxu0 0.0
      %4347 = vmatmul.mubr.f32.gmra.mrb[0].mxu0 %v4025
      %v4348 = vpop.f32.mrb[0].mxu0
      %v4349 = vadd.f32 0.0, %v4348
      %v4350 = vpop.f32.mrb[0].mxu0
      %4351 = vmatprep.mubr.f32.mxu0 0.0
      %4352 = vmatmul.mubr.f32.gmra.mrb[0].mxu0 %v4026
      %v4353 = vpop.f32.mrb[0].mxu0
      %v4354 = vadd.f32 0.0, %v4353
      %v4355 = vpop.f32.mrb[0].mxu0
      %4356 = vmatprep.mubr.f32.mxu0 0.0
      %4357 = vmatmul.mubr.f32.gmra.mrb[0].mxu0 %v4027
      %v4358 = vpop.f32.mrb[0].mxu0
      %v4359 = vadd.f32 0.0, %v4358
      %v4360 = vpop.f32.mrb[0].mxu0
      %4361 = vmatprep.mubr.f32.mxu0 0.0
      %4362 = vmatmul.mubr.f32.gmra.mrb[0].mxu0 %v4028
      %v4363 = vpop.f32.mrb[0].mxu0
      %v4364 = vadd.f32 0.0, %v4363
      %v4365 = vpop.f32.mrb[0].mxu0
      %4366 = vmatprep.mubr.f32.mxu0 0.0
      %4367 = vmatmul.mubr.f32.gmra.mrb[0].mxu0 %v4029
      %v4368 = vpop.f32.mrb[0].mxu0
      %v4369 = vadd.f32 0.0, %v4368
      %v4370 = vpop.f32.mrb[0].mxu0
      %4371 = vmatprep.mubr.f32.mxu0 0.0
      %4372 = vmatmul.mubr.f32.gmra.mrb[0].mxu0 %v4030
      %v4373 = vpop.f32.mrb[0].mxu0
      %v4374 = vadd.f32 0.0, %v4373
      %v4375 = vpop.f32.mrb[0].mxu0
      %4376 = vmatprep.mubr.f32.mxu0 0.0
      %4377 = vmatmul.mubr.f32.gmra.mrb[0].mxu0 %v4031
      %v4378 = vpop.f32.mrb[0].mxu0
      %v4379 = vadd.f32 0.0, %v4378
      %v4380 = vpop.f32.mrb[0].mxu0
      %4381 = vmatprep.mubr.f32.mxu0 0.0
      %4382 = vmatmul.mubr.f32.gmra.mrb[0].mxu0 %v4032
      %v4383 = vpop.f32.mrb[0].mxu0
      %v4384 = vadd.f32 0.0, %v4383
      %v4385 = vpop.f32.mrb[0].mxu0
      %4386 = vmatprep.mubr.f32.mxu0 0.0
      %4387 = vmatmul.mubr.f32.gmra.mrb[0].mxu0 %v4033
      %v4388 = vpop.f32.mrb[0].mxu0
      %v4389 = vadd.f32 0.0, %v4388
      %v4390 = vpop.f32.mrb[0].mxu0
      %4391 = vmatprep.mubr.f32.mxu0 0.0
      %4392 = vmatmul.mubr.f32.gmra.mrb[0].mxu0 %v4034
      %v4393 = vpop.f32.mrb[0].mxu0
      %v4394 = vadd.f32 0.0, %v4393
      %v4395 = vpop.f32.mrb[0].mxu0
      %4396 = vmatprep.mubr.f32.mxu0 0.0
      %4397 = vmatmul.mubr.f32.gmra.mrb[0].mxu0 %v4035
      %v4398 = vpop.f32.mrb[0].mxu0
      %v4399 = vadd.f32 0.0, %v4398
      %v4400 = vpop.f32.mrb[0].mxu0
      %4401 = vmatprep.mubr.f32.mxu0 0.0
      %4402 = vmatmul.mubr.f32.gmra.mrb[0].mxu0 %v4036
      %v4403 = vpop.f32.mrb[0].mxu0
      %v4404 = vadd.f32 0.0, %v4403
      %v4405 = vpop.f32.mrb[0].mxu0
      %4406 = vmatprep.mubr.f32.mxu0 0.0
      %4407 = vmatmul.mubr.f32.gmra.mrb[0].mxu0 %v4037
      %v4408 = vpop.f32.mrb[0].mxu0
      %v4409 = vadd.f32 0.0, %v4408
      %v4410 = vpop.f32.mrb[0].mxu0
      %4411 = vmatprep.mubr.f32.mxu0 0.0
      %4412 = vmatmul.mubr.f32.gmra.mrb[0].mxu0 %v4038
      %v4413 = vpop.f32.mrb[0].mxu0
      %v4414 = vadd.f32 0.0, %v4413
      %v4415 = vpop.f32.mrb[0].mxu0
      %4416 = vmatprep.mubr.f32.mxu0 0.0
      %4417 = vmatmul.mubr.f32.gmra.mrb[0].mxu0 %v4039
      %v4418 = vpop.f32.mrb[0].mxu0
      %v4419 = vadd.f32 0.0, %v4418
      %v4420 = vpop.f32.mrb[0].mxu0
      %4421 = vmatprep.mubr.f32.mxu0 0.0
      %4422 = vmatmul.mubr.f32.gmra.mrb[0].mxu0 %v4040
      %v4423 = vpop.f32.mrb[0].mxu0
      %v4424 = vadd.f32 0.0, %v4423
      %v4425 = vpop.f32.mrb[0].mxu0
      %4426 = vmatprep.mubr.f32.mxu0 0.0
      %4427 = vmatmul.mubr.f32.gmra.mrb[0].mxu0 %v4041
      %v4428 = vpop.f32.mrb[0].mxu0
      %v4429 = vadd.f32 0.0, %v4428
      %v4430 = vpop.f32.mrb[0].mxu0
      %4431 = vmatprep.mubr.f32.mxu0 0.0
      %4432 = vmatmul.mubr.f32.gmra.mrb[0].mxu0 %v4042
      %v4433 = vpop.f32.mrb[0].mxu0
      %v4434 = vadd.f32 0.0, %v4433
      %v4435 = vpop.f32.mrb[0].mxu0
      %4436 = vmatprep.mubr.f32.mxu0 0.0
      %4437 = vmatmul.mubr.f32.gmra.mrb[0].mxu0 %v4043
      %v4438 = vpop.f32.mrb[0].mxu0
      %v4439 = vadd.f32 0.0, %v4438
      %v4440 = vpop.f32.mrb[0].mxu0
      %4441 = vmatprep.mubr.f32.mxu0 0.0
      %4442 = vmatmul.mubr.f32.gmra.mrb[0].mxu0 %v4044
      %v4443 = vpop.f32.mrb[0].mxu0
      %v4444 = vadd.f32 0.0, %v4443
      %v4445 = vpop.f32.mrb[0].mxu0
      %4446 = vdwg.mxu0
      %v4447 = vadd.f32 %v3661, %v4129
      %v4448 = vadd.f32 %v3662, %v4134
      %v4449 = vadd.f32 %v3663, %v4139
      %v4450 = vadd.f32 %v3664, %v4144
      %v4451 = vadd.f32 %v3665, %v4149
      %v4452 = vadd.f32 %v3666, %v4154
      %v4453 = vadd.f32 %v3667, %v4159
      %v4454 = vadd.f32 %v3668, %v4164
      %v4455 = vadd.f32 %v3669, %v4169
      %v4456 = vadd.f32 %v3670, %v4174
      %v4457 = vadd.f32 %v3671, %v4179
      %v4458 = vadd.f32 %v3672, %v4184
      %v4459 = vadd.f32 %v3673, %v4189
      %v4460 = vadd.f32 %v3674, %v4194
      %v4461 = vadd.f32 %v3675, %v4199
      %v4462 = vadd.f32 %v3676, %v4204
      %v4463 = vadd.f32 %v3677, %v4209
      %v4464 = vadd.f32 %v3678, %v4214
      %v4465 = vadd.f32 %v3679, %v4219
      %v4466 = vadd.f32 %v3680, %v4224
      %v4467 = vadd.f32 %v3681, %v4229
      %v4468 = vadd.f32 %v3682, %v4234
      %v4469 = vadd.f32 %v3683, %v4239
      %v4470 = vadd.f32 %v3684, %v4244
      %v4471 = vadd.f32 %v3685, %v4249
      %v4472 = vadd.f32 %v3686, %v4254
      %v4473 = vadd.f32 %v3687, %v4259
      %v4474 = vadd.f32 %v3688, %v4264
      %v4475 = vadd.f32 %v3689, %v4269
      %v4476 = vadd.f32 %v3690, %v4274
      %v4477 = vadd.f32 %v3691, %v4279
      %v4478 = vadd.f32 %v3692, %v4284
      %v4479 = vadd.f32 %v3693, %v4289
      %v4480 = vadd.f32 %v3694, %v4294
      %v4481 = vadd.f32 %v3695, %v4299
      %v4482 = vadd.f32 %v3696, %v4304
      %v4483 = vadd.f32 %v3697, %v4309
      %v4484 = vadd.f32 %v3698, %v4314
      %v4485 = vadd.f32 %v3699, %v4319
      %v4486 = vadd.f32 %v3700, %v4324
      %v4487 = vadd.f32 %v3701, %v4329
      %v4488 = vadd.f32 %v3702, %v4334
      %v4489 = vadd.f32 %v3703, %v4339
      %v4490 = vadd.f32 %v3704, %v4344
      %v4491 = vadd.f32 %v3705, %v4349
      %v4492 = vadd.f32 %v3706, %v4354
      %v4493 = vadd.f32 %v3707, %v4359
      %v4494 = vadd.f32 %v3708, %v4364
      %v4495 = vadd.f32 %v3709, %v4369
      %v4496 = vadd.f32 %v3710, %v4374
      %v4497 = vadd.f32 %v3711, %v4379
      %v4498 = vadd.f32 %v3712, %v4384
      %v4499 = vadd.f32 %v3713, %v4389
      %v4500 = vadd.f32 %v3714, %v4394
      %v4501 = vadd.f32 %v3715, %v4399
      %v4502 = vadd.f32 %v3716, %v4404
      %v4503 = vadd.f32 %v3717, %v4409
      %v4504 = vadd.f32 %v3718, %v4414
      %v4505 = vadd.f32 %v3719, %v4419
      %v4506 = vadd.f32 %v3720, %v4424
      %v4507 = vadd.f32 %v3721, %v4429
      %v4508 = vadd.f32 %v3722, %v4434
      %v4509 = vadd.f32 %v3723, %v4439
      %v4510 = vadd.f32 %v3724, %v4444
      %4575 = vrot.lane.b32.xlu0 %v4447, 125
      %v4576 = vpop.permute.xlu0 %4575
      %4577 = vrot.lane.b32.xlu0 %v4448, 125
      %v4578 = vpop.permute.xlu0 %4577
      %4579 = vrot.lane.b32.xlu0 %v4449, 125
      %v4580 = vpop.permute.xlu0 %4579
      %4581 = vrot.lane.b32.xlu0 %v4450, 125
      %v4582 = vpop.permute.xlu0 %4581
      %4583 = vrot.lane.b32.xlu0 %v4451, 125
      %v4584 = vpop.permute.xlu0 %4583
      %4585 = vrot.lane.b32.xlu0 %v4452, 125
      %v4586 = vpop.permute.xlu0 %4585
      %4587 = vrot.lane.b32.xlu0 %v4453, 125
      %v4588 = vpop.permute.xlu0 %4587
      %4589 = vrot.lane.b32.xlu0 %v4454, 125
      %v4590 = vpop.permute.xlu0 %4589
      %4591 = vrot.lane.b32.xlu0 %v4455, 125
      %v4592 = vpop.permute.xlu0 %4591
      %4593 = vrot.lane.b32.xlu0 %v4456, 125
      %v4594 = vpop.permute.xlu0 %4593
      %4595 = vrot.lane.b32.xlu0 %v4457, 125
      %v4596 = vpop.permute.xlu0 %4595
      %4597 = vrot.lane.b32.xlu0 %v4458, 125
      %v4598 = vpop.permute.xlu0 %4597
      %4599 = vrot.lane.b32.xlu0 %v4459, 125
      %v4600 = vpop.permute.xlu0 %4599
      %4601 = vrot.lane.b32.xlu0 %v4460, 125
      %v4602 = vpop.permute.xlu0 %4601
      %4603 = vrot.lane.b32.xlu0 %v4461, 125
      %v4604 = vpop.permute.xlu0 %4603
      %4605 = vrot.lane.b32.xlu0 %v4462, 125
      %v4606 = vpop.permute.xlu0 %4605
      %4607 = vrot.lane.b32.xlu0 %v4463, 125
      %v4608 = vpop.permute.xlu0 %4607
      %4609 = vrot.lane.b32.xlu0 %v4464, 125
      %v4610 = vpop.permute.xlu0 %4609
      %4611 = vrot.lane.b32.xlu0 %v4465, 125
      %v4612 = vpop.permute.xlu0 %4611
      %4613 = vrot.lane.b32.xlu0 %v4466, 125
      %v4614 = vpop.permute.xlu0 %4613
      %4615 = vrot.lane.b32.xlu0 %v4467, 125
      %v4616 = vpop.permute.xlu0 %4615
      %4617 = vrot.lane.b32.xlu0 %v4468, 125
      %v4618 = vpop.permute.xlu0 %4617
      %4619 = vrot.lane.b32.xlu0 %v4469, 125
      %v4620 = vpop.permute.xlu0 %4619
      %4621 = vrot.lane.b32.xlu0 %v4470, 125
      %v4622 = vpop.permute.xlu0 %4621
      %4623 = vrot.lane.b32.xlu0 %v4471, 125
      %v4624 = vpop.permute.xlu0 %4623
      %4625 = vrot.lane.b32.xlu0 %v4472, 125
      %v4626 = vpop.permute.xlu0 %4625
      %4627 = vrot.lane.b32.xlu0 %v4473, 125
      %v4628 = vpop.permute.xlu0 %4627
      %4629 = vrot.lane.b32.xlu0 %v4474, 125
      %v4630 = vpop.permute.xlu0 %4629
      %4631 = vrot.lane.b32.xlu0 %v4475, 125
      %v4632 = vpop.permute.xlu0 %4631
      %4633 = vrot.lane.b32.xlu0 %v4476, 125
      %v4634 = vpop.permute.xlu0 %4633
      %4635 = vrot.lane.b32.xlu0 %v4477, 125
      %v4636 = vpop.permute.xlu0 %4635
      %4637 = vrot.lane.b32.xlu0 %v4478, 125
      %v4638 = vpop.permute.xlu0 %4637
      %4639 = vrot.lane.b32.xlu0 %v4479, 125
      %v4640 = vpop.permute.xlu0 %4639
      %4641 = vrot.lane.b32.xlu0 %v4480, 125
      %v4642 = vpop.permute.xlu0 %4641
      %4643 = vrot.lane.b32.xlu0 %v4481, 125
      %v4644 = vpop.permute.xlu0 %4643
      %4645 = vrot.lane.b32.xlu0 %v4482, 125
      %v4646 = vpop.permute.xlu0 %4645
      %4647 = vrot.lane.b32.xlu0 %v4483, 125
      %v4648 = vpop.permute.xlu0 %4647
      %4649 = vrot.lane.b32.xlu0 %v4484, 125
      %v4650 = vpop.permute.xlu0 %4649
      %4651 = vrot.lane.b32.xlu0 %v4485, 125
      %v4652 = vpop.permute.xlu0 %4651
      %4653 = vrot.lane.b32.xlu0 %v4486, 125
      %v4654 = vpop.permute.xlu0 %4653
      %4655 = vrot.lane.b32.xlu0 %v4487, 125
      %v4656 = vpop.permute.xlu0 %4655
      %4657 = vrot.lane.b32.xlu0 %v4488, 125
      %v4658 = vpop.permute.xlu0 %4657
      %4659 = vrot.lane.b32.xlu0 %v4489, 125
      %v4660 = vpop.permute.xlu0 %4659
      %4661 = vrot.lane.b32.xlu0 %v4490, 125
      %v4662 = vpop.permute.xlu0 %4661
      %4663 = vrot.lane.b32.xlu0 %v4491, 125
      %v4664 = vpop.permute.xlu0 %4663
      %4665 = vrot.lane.b32.xlu0 %v4492, 125
      %v4666 = vpop.permute.xlu0 %4665
      %4667 = vrot.lane.b32.xlu0 %v4493, 125
      %v4668 = vpop.permute.xlu0 %4667
      %4669 = vrot.lane.b32.xlu0 %v4494, 125
      %v4670 = vpop.permute.xlu0 %4669
      %4671 = vrot.lane.b32.xlu0 %v4495, 125
      %v4672 = vpop.permute.xlu0 %4671
      %4673 = vrot.lane.b32.xlu0 %v4496, 125
      %v4674 = vpop.permute.xlu0 %4673
      %4675 = vrot.lane.b32.xlu0 %v4497, 125
      %v4676 = vpop.permute.xlu0 %4675
      %4677 = vrot.lane.b32.xlu0 %v4498, 125
      %v4678 = vpop.permute.xlu0 %4677
      %4679 = vrot.lane.b32.xlu0 %v4499, 125
      %v4680 = vpop.permute.xlu0 %4679
      %4681 = vrot.lane.b32.xlu0 %v4500, 125
      %v4682 = vpop.permute.xlu0 %4681
      %4683 = vrot.lane.b32.xlu0 %v4501, 125
      %v4684 = vpop.permute.xlu0 %4683
      %4685 = vrot.lane.b32.xlu0 %v4502, 125
      %v4686 = vpop.permute.xlu0 %4685
      %4687 = vrot.lane.b32.xlu0 %v4503, 125
      %v4688 = vpop.permute.xlu0 %4687
      %4689 = vrot.lane.b32.xlu0 %v4504, 125
      %v4690 = vpop.permute.xlu0 %4689
      %4691 = vrot.lane.b32.xlu0 %v4505, 125
      %v4692 = vpop.permute.xlu0 %4691
      %4693 = vrot.lane.b32.xlu0 %v4506, 125
      %v4694 = vpop.permute.xlu0 %4693
      %4695 = vrot.lane.b32.xlu0 %v4507, 125
      %v4696 = vpop.permute.xlu0 %4695
      %4697 = vrot.lane.b32.xlu0 %v4508, 125
      %v4698 = vpop.permute.xlu0 %4697
      %4699 = vrot.lane.b32.xlu0 %v4509, 125
      %v4700 = vpop.permute.xlu0 %4699
      %4701 = vrot.lane.b32.xlu0 %v4510, 125
      %v4702 = vpop.permute.xlu0 %4701
      %v4767 = vmul.f32 %v4447, %v4576
      %v4768 = vmul.f32 %v4448, %v4578
      %v4769 = vmul.f32 %v4449, %v4580
      %v4770 = vmul.f32 %v4450, %v4582
      %v4771 = vmul.f32 %v4451, %v4584
      %v4772 = vmul.f32 %v4452, %v4586
      %v4773 = vmul.f32 %v4453, %v4588
      %v4774 = vmul.f32 %v4454, %v4590
      %v4775 = vmul.f32 %v4455, %v4592
      %v4776 = vmul.f32 %v4456, %v4594
      %v4777 = vmul.f32 %v4457, %v4596
      %v4778 = vmul.f32 %v4458, %v4598
      %v4779 = vmul.f32 %v4459, %v4600
      %v4780 = vmul.f32 %v4460, %v4602
      %v4781 = vmul.f32 %v4461, %v4604
      %v4782 = vmul.f32 %v4462, %v4606
      %v4783 = vmul.f32 %v4463, %v4608
      %v4784 = vmul.f32 %v4464, %v4610
      %v4785 = vmul.f32 %v4465, %v4612
      %v4786 = vmul.f32 %v4466, %v4614
      %v4787 = vmul.f32 %v4467, %v4616
      %v4788 = vmul.f32 %v4468, %v4618
      %v4789 = vmul.f32 %v4469, %v4620
      %v4790 = vmul.f32 %v4470, %v4622
      %v4791 = vmul.f32 %v4471, %v4624
      %v4792 = vmul.f32 %v4472, %v4626
      %v4793 = vmul.f32 %v4473, %v4628
      %v4794 = vmul.f32 %v4474, %v4630
      %v4795 = vmul.f32 %v4475, %v4632
      %v4796 = vmul.f32 %v4476, %v4634
      %v4797 = vmul.f32 %v4477, %v4636
      %v4798 = vmul.f32 %v4478, %v4638
      %v4799 = vmul.f32 %v4479, %v4640
      %v4800 = vmul.f32 %v4480, %v4642
      %v4801 = vmul.f32 %v4481, %v4644
      %v4802 = vmul.f32 %v4482, %v4646
      %v4803 = vmul.f32 %v4483, %v4648
      %v4804 = vmul.f32 %v4484, %v4650
      %v4805 = vmul.f32 %v4485, %v4652
      %v4806 = vmul.f32 %v4486, %v4654
      %v4807 = vmul.f32 %v4487, %v4656
      %v4808 = vmul.f32 %v4488, %v4658
      %v4809 = vmul.f32 %v4489, %v4660
      %v4810 = vmul.f32 %v4490, %v4662
      %v4811 = vmul.f32 %v4491, %v4664
      %v4812 = vmul.f32 %v4492, %v4666
      %v4813 = vmul.f32 %v4493, %v4668
      %v4814 = vmul.f32 %v4494, %v4670
      %v4815 = vmul.f32 %v4495, %v4672
      %v4816 = vmul.f32 %v4496, %v4674
      %v4817 = vmul.f32 %v4497, %v4676
      %v4818 = vmul.f32 %v4498, %v4678
      %v4819 = vmul.f32 %v4499, %v4680
      %v4820 = vmul.f32 %v4500, %v4682
      %v4821 = vmul.f32 %v4501, %v4684
      %v4822 = vmul.f32 %v4502, %v4686
      %v4823 = vmul.f32 %v4503, %v4688
      %v4824 = vmul.f32 %v4504, %v4690
      %v4825 = vmul.f32 %v4505, %v4692
      %v4826 = vmul.f32 %v4506, %v4694
      %v4827 = vmul.f32 %v4507, %v4696
      %v4828 = vmul.f32 %v4508, %v4698
      %v4829 = vmul.f32 %v4509, %v4700
      %v4830 = vmul.f32 %v4510, %v4702
      %4831 = vrot.lane.b32.xlu0 %v4447, 127
      %v4832 = vpop.permute.xlu0 %4831
      %4833 = vrot.lane.b32.xlu0 %v4448, 127
      %v4834 = vpop.permute.xlu0 %4833
      %4835 = vrot.lane.b32.xlu0 %v4449, 127
      %v4836 = vpop.permute.xlu0 %4835
      %4837 = vrot.lane.b32.xlu0 %v4450, 127
      %v4838 = vpop.permute.xlu0 %4837
      %4839 = vrot.lane.b32.xlu0 %v4451, 127
      %v4840 = vpop.permute.xlu0 %4839
      %4841 = vrot.lane.b32.xlu0 %v4452, 127
      %v4842 = vpop.permute.xlu0 %4841
      %4843 = vrot.lane.b32.xlu0 %v4453, 127
      %v4844 = vpop.permute.xlu0 %4843
      %4845 = vrot.lane.b32.xlu0 %v4454, 127
      %v4846 = vpop.permute.xlu0 %4845
      %4847 = vrot.lane.b32.xlu0 %v4455, 127
      %v4848 = vpop.permute.xlu0 %4847
      %4849 = vrot.lane.b32.xlu0 %v4456, 127
      %v4850 = vpop.permute.xlu0 %4849
      %4851 = vrot.lane.b32.xlu0 %v4457, 127
      %v4852 = vpop.permute.xlu0 %4851
      %4853 = vrot.lane.b32.xlu0 %v4458, 127
      %v4854 = vpop.permute.xlu0 %4853
      %4855 = vrot.lane.b32.xlu0 %v4459, 127
      %v4856 = vpop.permute.xlu0 %4855
      %4857 = vrot.lane.b32.xlu0 %v4460, 127
      %v4858 = vpop.permute.xlu0 %4857
      %4859 = vrot.lane.b32.xlu0 %v4461, 127
      %v4860 = vpop.permute.xlu0 %4859
      %4861 = vrot.lane.b32.xlu0 %v4462, 127
      %v4862 = vpop.permute.xlu0 %4861
      %4863 = vrot.lane.b32.xlu0 %v4463, 127
      %v4864 = vpop.permute.xlu0 %4863
      %4865 = vrot.lane.b32.xlu0 %v4464, 127
      %v4866 = vpop.permute.xlu0 %4865
      %4867 = vrot.lane.b32.xlu0 %v4465, 127
      %v4868 = vpop.permute.xlu0 %4867
      %4869 = vrot.lane.b32.xlu0 %v4466, 127
      %v4870 = vpop.permute.xlu0 %4869
      %4871 = vrot.lane.b32.xlu0 %v4467, 127
      %v4872 = vpop.permute.xlu0 %4871
      %4873 = vrot.lane.b32.xlu0 %v4468, 127
      %v4874 = vpop.permute.xlu0 %4873
      %4875 = vrot.lane.b32.xlu0 %v4469, 127
      %v4876 = vpop.permute.xlu0 %4875
      %4877 = vrot.lane.b32.xlu0 %v4470, 127
      %v4878 = vpop.permute.xlu0 %4877
      %4879 = vrot.lane.b32.xlu0 %v4471, 127
      %v4880 = vpop.permute.xlu0 %4879
      %4881 = vrot.lane.b32.xlu0 %v4472, 127
      %v4882 = vpop.permute.xlu0 %4881
      %4883 = vrot.lane.b32.xlu0 %v4473, 127
      %v4884 = vpop.permute.xlu0 %4883
      %4885 = vrot.lane.b32.xlu0 %v4474, 127
      %v4886 = vpop.permute.xlu0 %4885
      %4887 = vrot.lane.b32.xlu0 %v4475, 127
      %v4888 = vpop.permute.xlu0 %4887
      %4889 = vrot.lane.b32.xlu0 %v4476, 127
      %v4890 = vpop.permute.xlu0 %4889
      %4891 = vrot.lane.b32.xlu0 %v4477, 127
      %v4892 = vpop.permute.xlu0 %4891
      %4893 = vrot.lane.b32.xlu0 %v4478, 127
      %v4894 = vpop.permute.xlu0 %4893
      %4895 = vrot.lane.b32.xlu0 %v4479, 127
      %v4896 = vpop.permute.xlu0 %4895
      %4897 = vrot.lane.b32.xlu0 %v4480, 127
      %v4898 = vpop.permute.xlu0 %4897
      %4899 = vrot.lane.b32.xlu0 %v4481, 127
      %v4900 = vpop.permute.xlu0 %4899
      %4901 = vrot.lane.b32.xlu0 %v4482, 127
      %v4902 = vpop.permute.xlu0 %4901
      %4903 = vrot.lane.b32.xlu0 %v4483, 127
      %v4904 = vpop.permute.xlu0 %4903
      %4905 = vrot.lane.b32.xlu0 %v4484, 127
      %v4906 = vpop.permute.xlu0 %4905
      %4907 = vrot.lane.b32.xlu0 %v4485, 127
      %v4908 = vpop.permute.xlu0 %4907
      %4909 = vrot.lane.b32.xlu0 %v4486, 127
      %v4910 = vpop.permute.xlu0 %4909
      %4911 = vrot.lane.b32.xlu0 %v4487, 127
      %v4912 = vpop.permute.xlu0 %4911
      %4913 = vrot.lane.b32.xlu0 %v4488, 127
      %v4914 = vpop.permute.xlu0 %4913
      %4915 = vrot.lane.b32.xlu0 %v4489, 127
      %v4916 = vpop.permute.xlu0 %4915
      %4917 = vrot.lane.b32.xlu0 %v4490, 127
      %v4918 = vpop.permute.xlu0 %4917
      %4919 = vrot.lane.b32.xlu0 %v4491, 127
      %v4920 = vpop.permute.xlu0 %4919
      %4921 = vrot.lane.b32.xlu0 %v4492, 127
      %v4922 = vpop.permute.xlu0 %4921
      %4923 = vrot.lane.b32.xlu0 %v4493, 127
      %v4924 = vpop.permute.xlu0 %4923
      %4925 = vrot.lane.b32.xlu0 %v4494, 127
      %v4926 = vpop.permute.xlu0 %4925
      %4927 = vrot.lane.b32.xlu0 %v4495, 127
      %v4928 = vpop.permute.xlu0 %4927
      %4929 = vrot.lane.b32.xlu0 %v4496, 127
      %v4930 = vpop.permute.xlu0 %4929
      %4931 = vrot.lane.b32.xlu0 %v4497, 127
      %v4932 = vpop.permute.xlu0 %4931
      %4933 = vrot.lane.b32.xlu0 %v4498, 127
      %v4934 = vpop.permute.xlu0 %4933
      %4935 = vrot.lane.b32.xlu0 %v4499, 127
      %v4936 = vpop.permute.xlu0 %4935
      %4937 = vrot.lane.b32.xlu0 %v4500, 127
      %v4938 = vpop.permute.xlu0 %4937
      %4939 = vrot.lane.b32.xlu0 %v4501, 127
      %v4940 = vpop.permute.xlu0 %4939
      %4941 = vrot.lane.b32.xlu0 %v4502, 127
      %v4942 = vpop.permute.xlu0 %4941
      %4943 = vrot.lane.b32.xlu0 %v4503, 127
      %v4944 = vpop.permute.xlu0 %4943
      %4945 = vrot.lane.b32.xlu0 %v4504, 127
      %v4946 = vpop.permute.xlu0 %4945
      %4947 = vrot.lane.b32.xlu0 %v4505, 127
      %v4948 = vpop.permute.xlu0 %4947
      %4949 = vrot.lane.b32.xlu0 %v4506, 127
      %v4950 = vpop.permute.xlu0 %4949
      %4951 = vrot.lane.b32.xlu0 %v4507, 127
      %v4952 = vpop.permute.xlu0 %4951
      %4953 = vrot.lane.b32.xlu0 %v4508, 127
      %v4954 = vpop.permute.xlu0 %4953
      %4955 = vrot.lane.b32.xlu0 %v4509, 127
      %v4956 = vpop.permute.xlu0 %4955
      %4957 = vrot.lane.b32.xlu0 %v4510, 127
      %v4958 = vpop.permute.xlu0 %4957
      %v5023 = vmul.f32 %v4447, %v4832
      %v5024 = vmul.f32 %v4448, %v4834
      %v5025 = vmul.f32 %v4449, %v4836
      %v5026 = vmul.f32 %v4450, %v4838
      %v5027 = vmul.f32 %v4451, %v4840
      %v5028 = vmul.f32 %v4452, %v4842
      %v5029 = vmul.f32 %v4453, %v4844
      %v5030 = vmul.f32 %v4454, %v4846
      %v5031 = vmul.f32 %v4455, %v4848
      %v5032 = vmul.f32 %v4456, %v4850
      %v5033 = vmul.f32 %v4457, %v4852
      %v5034 = vmul.f32 %v4458, %v4854
      %v5035 = vmul.f32 %v4459, %v4856
      %v5036 = vmul.f32 %v4460, %v4858
      %v5037 = vmul.f32 %v4461, %v4860
      %v5038 = vmul.f32 %v4462, %v4862
      %v5039 = vmul.f32 %v4463, %v4864
      %v5040 = vmul.f32 %v4464, %v4866
      %v5041 = vmul.f32 %v4465, %v4868
      %v5042 = vmul.f32 %v4466, %v4870
      %v5043 = vmul.f32 %v4467, %v4872
      %v5044 = vmul.f32 %v4468, %v4874
      %v5045 = vmul.f32 %v4469, %v4876
      %v5046 = vmul.f32 %v4470, %v4878
      %v5047 = vmul.f32 %v4471, %v4880
      %v5048 = vmul.f32 %v4472, %v4882
      %v5049 = vmul.f32 %v4473, %v4884
      %v5050 = vmul.f32 %v4474, %v4886
      %v5051 = vmul.f32 %v4475, %v4888
      %v5052 = vmul.f32 %v4476, %v4890
      %v5053 = vmul.f32 %v4477, %v4892
      %v5054 = vmul.f32 %v4478, %v4894
      %v5055 = vmul.f32 %v4479, %v4896
      %v5056 = vmul.f32 %v4480, %v4898
      %v5057 = vmul.f32 %v4481, %v4900
      %v5058 = vmul.f32 %v4482, %v4902
      %v5059 = vmul.f32 %v4483, %v4904
      %v5060 = vmul.f32 %v4484, %v4906
      %v5061 = vmul.f32 %v4485, %v4908
      %v5062 = vmul.f32 %v4486, %v4910
      %v5063 = vmul.f32 %v4487, %v4912
      %v5064 = vmul.f32 %v4488, %v4914
      %v5065 = vmul.f32 %v4489, %v4916
      %v5066 = vmul.f32 %v4490, %v4918
      %v5067 = vmul.f32 %v4491, %v4920
      %v5068 = vmul.f32 %v4492, %v4922
      %v5069 = vmul.f32 %v4493, %v4924
      %v5070 = vmul.f32 %v4494, %v4926
      %v5071 = vmul.f32 %v4495, %v4928
      %v5072 = vmul.f32 %v4496, %v4930
      %v5073 = vmul.f32 %v4497, %v4932
      %v5074 = vmul.f32 %v4498, %v4934
      %v5075 = vmul.f32 %v4499, %v4936
      %v5076 = vmul.f32 %v4500, %v4938
      %v5077 = vmul.f32 %v4501, %v4940
      %v5078 = vmul.f32 %v4502, %v4942
      %v5079 = vmul.f32 %v4503, %v4944
      %v5080 = vmul.f32 %v4504, %v4946
      %v5081 = vmul.f32 %v4505, %v4948
      %v5082 = vmul.f32 %v4506, %v4950
      %v5083 = vmul.f32 %v4507, %v4952
      %v5084 = vmul.f32 %v4508, %v4954
      %v5085 = vmul.f32 %v4509, %v4956
      %v5086 = vmul.f32 %v4510, %v4958
      %v5087 = vsub.f32 0.0, %v5023
      %v5088 = vsub.f32 0.0, %v5024
      %v5089 = vsub.f32 0.0, %v5025
      %v5090 = vsub.f32 0.0, %v5026
      %v5091 = vsub.f32 0.0, %v5027
      %v5092 = vsub.f32 0.0, %v5028
      %v5093 = vsub.f32 0.0, %v5029
      %v5094 = vsub.f32 0.0, %v5030
      %v5095 = vsub.f32 0.0, %v5031
      %v5096 = vsub.f32 0.0, %v5032
      %v5097 = vsub.f32 0.0, %v5033
      %v5098 = vsub.f32 0.0, %v5034
      %v5099 = vsub.f32 0.0, %v5035
      %v5100 = vsub.f32 0.0, %v5036
      %v5101 = vsub.f32 0.0, %v5037
      %v5102 = vsub.f32 0.0, %v5038
      %v5103 = vsub.f32 0.0, %v5039
      %v5104 = vsub.f32 0.0, %v5040
      %v5105 = vsub.f32 0.0, %v5041
      %v5106 = vsub.f32 0.0, %v5042
      %v5107 = vsub.f32 0.0, %v5043
      %v5108 = vsub.f32 0.0, %v5044
      %v5109 = vsub.f32 0.0, %v5045
      %v5110 = vsub.f32 0.0, %v5046
      %v5111 = vsub.f32 0.0, %v5047
      %v5112 = vsub.f32 0.0, %v5048
      %v5113 = vsub.f32 0.0, %v5049
      %v5114 = vsub.f32 0.0, %v5050
      %v5115 = vsub.f32 0.0, %v5051
      %v5116 = vsub.f32 0.0, %v5052
      %v5117 = vsub.f32 0.0, %v5053
      %v5118 = vsub.f32 0.0, %v5054
      %v5119 = vsub.f32 0.0, %v5055
      %v5120 = vsub.f32 0.0, %v5056
      %v5121 = vsub.f32 0.0, %v5057
      %v5122 = vsub.f32 0.0, %v5058
      %v5123 = vsub.f32 0.0, %v5059
      %v5124 = vsub.f32 0.0, %v5060
      %v5125 = vsub.f32 0.0, %v5061
      %v5126 = vsub.f32 0.0, %v5062
      %v5127 = vsub.f32 0.0, %v5063
      %v5128 = vsub.f32 0.0, %v5064
      %v5129 = vsub.f32 0.0, %v5065
      %v5130 = vsub.f32 0.0, %v5066
      %v5131 = vsub.f32 0.0, %v5067
      %v5132 = vsub.f32 0.0, %v5068
      %v5133 = vsub.f32 0.0, %v5069
      %v5134 = vsub.f32 0.0, %v5070
      %v5135 = vsub.f32 0.0, %v5071
      %v5136 = vsub.f32 0.0, %v5072
      %v5137 = vsub.f32 0.0, %v5073
      %v5138 = vsub.f32 0.0, %v5074
      %v5139 = vsub.f32 0.0, %v5075
      %v5140 = vsub.f32 0.0, %v5076
      %v5141 = vsub.f32 0.0, %v5077
      %v5142 = vsub.f32 0.0, %v5078
      %v5143 = vsub.f32 0.0, %v5079
      %v5144 = vsub.f32 0.0, %v5080
      %v5145 = vsub.f32 0.0, %v5081
      %v5146 = vsub.f32 0.0, %v5082
      %v5147 = vsub.f32 0.0, %v5083
      %v5148 = vsub.f32 0.0, %v5084
      %v5149 = vsub.f32 0.0, %v5085
      %v5150 = vsub.f32 0.0, %v5086
      %5215 = vrot.lane.b32.xlu0 %v5087, 127
      %v5216 = vpop.permute.xlu0 %5215
      %5217 = vrot.lane.b32.xlu0 %v5088, 127
      %v5218 = vpop.permute.xlu0 %5217
      %5219 = vrot.lane.b32.xlu0 %v5089, 127
      %v5220 = vpop.permute.xlu0 %5219
      %5221 = vrot.lane.b32.xlu0 %v5090, 127
      %v5222 = vpop.permute.xlu0 %5221
      %5223 = vrot.lane.b32.xlu0 %v5091, 127
      %v5224 = vpop.permute.xlu0 %5223
      %5225 = vrot.lane.b32.xlu0 %v5092, 127
      %v5226 = vpop.permute.xlu0 %5225
      %5227 = vrot.lane.b32.xlu0 %v5093, 127
      %v5228 = vpop.permute.xlu0 %5227
      %5229 = vrot.lane.b32.xlu0 %v5094, 127
      %v5230 = vpop.permute.xlu0 %5229
      %5231 = vrot.lane.b32.xlu0 %v5095, 127
      %v5232 = vpop.permute.xlu0 %5231
      %5233 = vrot.lane.b32.xlu0 %v5096, 127
      %v5234 = vpop.permute.xlu0 %5233
      %5235 = vrot.lane.b32.xlu0 %v5097, 127
      %v5236 = vpop.permute.xlu0 %5235
      %5237 = vrot.lane.b32.xlu0 %v5098, 127
      %v5238 = vpop.permute.xlu0 %5237
      %5239 = vrot.lane.b32.xlu0 %v5099, 127
      %v5240 = vpop.permute.xlu0 %5239
      %5241 = vrot.lane.b32.xlu0 %v5100, 127
      %v5242 = vpop.permute.xlu0 %5241
      %5243 = vrot.lane.b32.xlu0 %v5101, 127
      %v5244 = vpop.permute.xlu0 %5243
      %5245 = vrot.lane.b32.xlu0 %v5102, 127
      %v5246 = vpop.permute.xlu0 %5245
      %5247 = vrot.lane.b32.xlu0 %v5103, 127
      %v5248 = vpop.permute.xlu0 %5247
      %5249 = vrot.lane.b32.xlu0 %v5104, 127
      %v5250 = vpop.permute.xlu0 %5249
      %5251 = vrot.lane.b32.xlu0 %v5105, 127
      %v5252 = vpop.permute.xlu0 %5251
      %5253 = vrot.lane.b32.xlu0 %v5106, 127
      %v5254 = vpop.permute.xlu0 %5253
      %5255 = vrot.lane.b32.xlu0 %v5107, 127
      %v5256 = vpop.permute.xlu0 %5255
      %5257 = vrot.lane.b32.xlu0 %v5108, 127
      %v5258 = vpop.permute.xlu0 %5257
      %5259 = vrot.lane.b32.xlu0 %v5109, 127
      %v5260 = vpop.permute.xlu0 %5259
      %5261 = vrot.lane.b32.xlu0 %v5110, 127
      %v5262 = vpop.permute.xlu0 %5261
      %5263 = vrot.lane.b32.xlu0 %v5111, 127
      %v5264 = vpop.permute.xlu0 %5263
      %5265 = vrot.lane.b32.xlu0 %v5112, 127
      %v5266 = vpop.permute.xlu0 %5265
      %5267 = vrot.lane.b32.xlu0 %v5113, 127
      %v5268 = vpop.permute.xlu0 %5267
      %5269 = vrot.lane.b32.xlu0 %v5114, 127
      %v5270 = vpop.permute.xlu0 %5269
      %5271 = vrot.lane.b32.xlu0 %v5115, 127
      %v5272 = vpop.permute.xlu0 %5271
      %5273 = vrot.lane.b32.xlu0 %v5116, 127
      %v5274 = vpop.permute.xlu0 %5273
      %5275 = vrot.lane.b32.xlu0 %v5117, 127
      %v5276 = vpop.permute.xlu0 %5275
      %5277 = vrot.lane.b32.xlu0 %v5118, 127
      %v5278 = vpop.permute.xlu0 %5277
      %5279 = vrot.lane.b32.xlu0 %v5119, 127
      %v5280 = vpop.permute.xlu0 %5279
      %5281 = vrot.lane.b32.xlu0 %v5120, 127
      %v5282 = vpop.permute.xlu0 %5281
      %5283 = vrot.lane.b32.xlu0 %v5121, 127
      %v5284 = vpop.permute.xlu0 %5283
      %5285 = vrot.lane.b32.xlu0 %v5122, 127
      %v5286 = vpop.permute.xlu0 %5285
      %5287 = vrot.lane.b32.xlu0 %v5123, 127
      %v5288 = vpop.permute.xlu0 %5287
      %5289 = vrot.lane.b32.xlu0 %v5124, 127
      %v5290 = vpop.permute.xlu0 %5289
      %5291 = vrot.lane.b32.xlu0 %v5125, 127
      %v5292 = vpop.permute.xlu0 %5291
      %5293 = vrot.lane.b32.xlu0 %v5126, 127
      %v5294 = vpop.permute.xlu0 %5293
      %5295 = vrot.lane.b32.xlu0 %v5127, 127
      %v5296 = vpop.permute.xlu0 %5295
      %5297 = vrot.lane.b32.xlu0 %v5128, 127
      %v5298 = vpop.permute.xlu0 %5297
      %5299 = vrot.lane.b32.xlu0 %v5129, 127
      %v5300 = vpop.permute.xlu0 %5299
      %5301 = vrot.lane.b32.xlu0 %v5130, 127
      %v5302 = vpop.permute.xlu0 %5301
      %5303 = vrot.lane.b32.xlu0 %v5131, 127
      %v5304 = vpop.permute.xlu0 %5303
      %5305 = vrot.lane.b32.xlu0 %v5132, 127
      %v5306 = vpop.permute.xlu0 %5305
      %5307 = vrot.lane.b32.xlu0 %v5133, 127
      %v5308 = vpop.permute.xlu0 %5307
      %5309 = vrot.lane.b32.xlu0 %v5134, 127
      %v5310 = vpop.permute.xlu0 %5309
      %5311 = vrot.lane.b32.xlu0 %v5135, 127
      %v5312 = vpop.permute.xlu0 %5311
      %5313 = vrot.lane.b32.xlu0 %v5136, 127
      %v5314 = vpop.permute.xlu0 %5313
      %5315 = vrot.lane.b32.xlu0 %v5137, 127
      %v5316 = vpop.permute.xlu0 %5315
      %5317 = vrot.lane.b32.xlu0 %v5138, 127
      %v5318 = vpop.permute.xlu0 %5317
      %5319 = vrot.lane.b32.xlu0 %v5139, 127
      %v5320 = vpop.permute.xlu0 %5319
      %5321 = vrot.lane.b32.xlu0 %v5140, 127
      %v5322 = vpop.permute.xlu0 %5321
      %5323 = vrot.lane.b32.xlu0 %v5141, 127
      %v5324 = vpop.permute.xlu0 %5323
      %5325 = vrot.lane.b32.xlu0 %v5142, 127
      %v5326 = vpop.permute.xlu0 %5325
      %5327 = vrot.lane.b32.xlu0 %v5143, 127
      %v5328 = vpop.permute.xlu0 %5327
      %5329 = vrot.lane.b32.xlu0 %v5144, 127
      %v5330 = vpop.permute.xlu0 %5329
      %5331 = vrot.lane.b32.xlu0 %v5145, 127
      %v5332 = vpop.permute.xlu0 %5331
      %5333 = vrot.lane.b32.xlu0 %v5146, 127
      %v5334 = vpop.permute.xlu0 %5333
      %5335 = vrot.lane.b32.xlu0 %v5147, 127
      %v5336 = vpop.permute.xlu0 %5335
      %5337 = vrot.lane.b32.xlu0 %v5148, 127
      %v5338 = vpop.permute.xlu0 %5337
      %5339 = vrot.lane.b32.xlu0 %v5149, 127
      %v5340 = vpop.permute.xlu0 %5339
      %5341 = vrot.lane.b32.xlu0 %v5150, 127
      %v5342 = vpop.permute.xlu0 %5341
      %v5407 = vadd.f32 %v4767, %v5216
      %v5408 = vadd.f32 %v4768, %v5218
      %v5409 = vadd.f32 %v4769, %v5220
      %v5410 = vadd.f32 %v4770, %v5222
      %v5411 = vadd.f32 %v4771, %v5224
      %v5412 = vadd.f32 %v4772, %v5226
      %v5413 = vadd.f32 %v4773, %v5228
      %v5414 = vadd.f32 %v4774, %v5230
      %v5415 = vadd.f32 %v4775, %v5232
      %v5416 = vadd.f32 %v4776, %v5234
      %v5417 = vadd.f32 %v4777, %v5236
      %v5418 = vadd.f32 %v4778, %v5238
      %v5419 = vadd.f32 %v4779, %v5240
      %v5420 = vadd.f32 %v4780, %v5242
      %v5421 = vadd.f32 %v4781, %v5244
      %v5422 = vadd.f32 %v4782, %v5246
      %v5423 = vadd.f32 %v4783, %v5248
      %v5424 = vadd.f32 %v4784, %v5250
      %v5425 = vadd.f32 %v4785, %v5252
      %v5426 = vadd.f32 %v4786, %v5254
      %v5427 = vadd.f32 %v4787, %v5256
      %v5428 = vadd.f32 %v4788, %v5258
      %v5429 = vadd.f32 %v4789, %v5260
      %v5430 = vadd.f32 %v4790, %v5262
      %v5431 = vadd.f32 %v4791, %v5264
      %v5432 = vadd.f32 %v4792, %v5266
      %v5433 = vadd.f32 %v4793, %v5268
      %v5434 = vadd.f32 %v4794, %v5270
      %v5435 = vadd.f32 %v4795, %v5272
      %v5436 = vadd.f32 %v4796, %v5274
      %v5437 = vadd.f32 %v4797, %v5276
      %v5438 = vadd.f32 %v4798, %v5278
      %v5439 = vadd.f32 %v4799, %v5280
      %v5440 = vadd.f32 %v4800, %v5282
      %v5441 = vadd.f32 %v4801, %v5284
      %v5442 = vadd.f32 %v4802, %v5286
      %v5443 = vadd.f32 %v4803, %v5288
      %v5444 = vadd.f32 %v4804, %v5290
      %v5445 = vadd.f32 %v4805, %v5292
      %v5446 = vadd.f32 %v4806, %v5294
      %v5447 = vadd.f32 %v4807, %v5296
      %v5448 = vadd.f32 %v4808, %v5298
      %v5449 = vadd.f32 %v4809, %v5300
      %v5450 = vadd.f32 %v4810, %v5302
      %v5451 = vadd.f32 %v4811, %v5304
      %v5452 = vadd.f32 %v4812, %v5306
      %v5453 = vadd.f32 %v4813, %v5308
      %v5454 = vadd.f32 %v4814, %v5310
      %v5455 = vadd.f32 %v4815, %v5312
      %v5456 = vadd.f32 %v4816, %v5314
      %v5457 = vadd.f32 %v4817, %v5316
      %v5458 = vadd.f32 %v4818, %v5318
      %v5459 = vadd.f32 %v4819, %v5320
      %v5460 = vadd.f32 %v4820, %v5322
      %v5461 = vadd.f32 %v4821, %v5324
      %v5462 = vadd.f32 %v4822, %v5326
      %v5463 = vadd.f32 %v4823, %v5328
      %v5464 = vadd.f32 %v4824, %v5330
      %v5465 = vadd.f32 %v4825, %v5332
      %v5466 = vadd.f32 %v4826, %v5334
      %v5467 = vadd.f32 %v4827, %v5336
      %v5468 = vadd.f32 %v4828, %v5338
      %v5469 = vadd.f32 %v4829, %v5340
      %v5470 = vadd.f32 %v4830, %v5342
      %5535 = vrot.lane.b32.xlu0 %v5407, 124
      %v5536 = vpop.permute.xlu0 %5535
      %5537 = vrot.lane.b32.xlu0 %v5408, 124
      %v5538 = vpop.permute.xlu0 %5537
      %5539 = vrot.lane.b32.xlu0 %v5409, 124
      %v5540 = vpop.permute.xlu0 %5539
      %5541 = vrot.lane.b32.xlu0 %v5410, 124
      %v5542 = vpop.permute.xlu0 %5541
      %5543 = vrot.lane.b32.xlu0 %v5411, 124
      %v5544 = vpop.permute.xlu0 %5543
      %5545 = vrot.lane.b32.xlu0 %v5412, 124
      %v5546 = vpop.permute.xlu0 %5545
      %5547 = vrot.lane.b32.xlu0 %v5413, 124
      %v5548 = vpop.permute.xlu0 %5547
      %5549 = vrot.lane.b32.xlu0 %v5414, 124
      %v5550 = vpop.permute.xlu0 %5549
      %5551 = vrot.lane.b32.xlu0 %v5415, 124
      %v5552 = vpop.permute.xlu0 %5551
      %5553 = vrot.lane.b32.xlu0 %v5416, 124
      %v5554 = vpop.permute.xlu0 %5553
      %5555 = vrot.lane.b32.xlu0 %v5417, 124
      %v5556 = vpop.permute.xlu0 %5555
      %5557 = vrot.lane.b32.xlu0 %v5418, 124
      %v5558 = vpop.permute.xlu0 %5557
      %5559 = vrot.lane.b32.xlu0 %v5419, 124
      %v5560 = vpop.permute.xlu0 %5559
      %5561 = vrot.lane.b32.xlu0 %v5420, 124
      %v5562 = vpop.permute.xlu0 %5561
      %5563 = vrot.lane.b32.xlu0 %v5421, 124
      %v5564 = vpop.permute.xlu0 %5563
      %5565 = vrot.lane.b32.xlu0 %v5422, 124
      %v5566 = vpop.permute.xlu0 %5565
      %5567 = vrot.lane.b32.xlu0 %v5423, 124
      %v5568 = vpop.permute.xlu0 %5567
      %5569 = vrot.lane.b32.xlu0 %v5424, 124
      %v5570 = vpop.permute.xlu0 %5569
      %5571 = vrot.lane.b32.xlu0 %v5425, 124
      %v5572 = vpop.permute.xlu0 %5571
      %5573 = vrot.lane.b32.xlu0 %v5426, 124
      %v5574 = vpop.permute.xlu0 %5573
      %5575 = vrot.lane.b32.xlu0 %v5427, 124
      %v5576 = vpop.permute.xlu0 %5575
      %5577 = vrot.lane.b32.xlu0 %v5428, 124
      %v5578 = vpop.permute.xlu0 %5577
      %5579 = vrot.lane.b32.xlu0 %v5429, 124
      %v5580 = vpop.permute.xlu0 %5579
      %5581 = vrot.lane.b32.xlu0 %v5430, 124
      %v5582 = vpop.permute.xlu0 %5581
      %5583 = vrot.lane.b32.xlu0 %v5431, 124
      %v5584 = vpop.permute.xlu0 %5583
      %5585 = vrot.lane.b32.xlu0 %v5432, 124
      %v5586 = vpop.permute.xlu0 %5585
      %5587 = vrot.lane.b32.xlu0 %v5433, 124
      %v5588 = vpop.permute.xlu0 %5587
      %5589 = vrot.lane.b32.xlu0 %v5434, 124
      %v5590 = vpop.permute.xlu0 %5589
      %5591 = vrot.lane.b32.xlu0 %v5435, 124
      %v5592 = vpop.permute.xlu0 %5591
      %5593 = vrot.lane.b32.xlu0 %v5436, 124
      %v5594 = vpop.permute.xlu0 %5593
      %5595 = vrot.lane.b32.xlu0 %v5437, 124
      %v5596 = vpop.permute.xlu0 %5595
      %5597 = vrot.lane.b32.xlu0 %v5438, 124
      %v5598 = vpop.permute.xlu0 %5597
      %5599 = vrot.lane.b32.xlu0 %v5439, 124
      %v5600 = vpop.permute.xlu0 %5599
      %5601 = vrot.lane.b32.xlu0 %v5440, 124
      %v5602 = vpop.permute.xlu0 %5601
      %5603 = vrot.lane.b32.xlu0 %v5441, 124
      %v5604 = vpop.permute.xlu0 %5603
      %5605 = vrot.lane.b32.xlu0 %v5442, 124
      %v5606 = vpop.permute.xlu0 %5605
      %5607 = vrot.lane.b32.xlu0 %v5443, 124
      %v5608 = vpop.permute.xlu0 %5607
      %5609 = vrot.lane.b32.xlu0 %v5444, 124
      %v5610 = vpop.permute.xlu0 %5609
      %5611 = vrot.lane.b32.xlu0 %v5445, 124
      %v5612 = vpop.permute.xlu0 %5611
      %5613 = vrot.lane.b32.xlu0 %v5446, 124
      %v5614 = vpop.permute.xlu0 %5613
      %5615 = vrot.lane.b32.xlu0 %v5447, 124
      %v5616 = vpop.permute.xlu0 %5615
      %5617 = vrot.lane.b32.xlu0 %v5448, 124
      %v5618 = vpop.permute.xlu0 %5617
      %5619 = vrot.lane.b32.xlu0 %v5449, 124
      %v5620 = vpop.permute.xlu0 %5619
      %5621 = vrot.lane.b32.xlu0 %v5450, 124
      %v5622 = vpop.permute.xlu0 %5621
      %5623 = vrot.lane.b32.xlu0 %v5451, 124
      %v5624 = vpop.permute.xlu0 %5623
      %5625 = vrot.lane.b32.xlu0 %v5452, 124
      %v5626 = vpop.permute.xlu0 %5625
      %5627 = vrot.lane.b32.xlu0 %v5453, 124
      %v5628 = vpop.permute.xlu0 %5627
      %5629 = vrot.lane.b32.xlu0 %v5454, 124
      %v5630 = vpop.permute.xlu0 %5629
      %5631 = vrot.lane.b32.xlu0 %v5455, 124
      %v5632 = vpop.permute.xlu0 %5631
      %5633 = vrot.lane.b32.xlu0 %v5456, 124
      %v5634 = vpop.permute.xlu0 %5633
      %5635 = vrot.lane.b32.xlu0 %v5457, 124
      %v5636 = vpop.permute.xlu0 %5635
      %5637 = vrot.lane.b32.xlu0 %v5458, 124
      %v5638 = vpop.permute.xlu0 %5637
      %5639 = vrot.lane.b32.xlu0 %v5459, 124
      %v5640 = vpop.permute.xlu0 %5639
      %5641 = vrot.lane.b32.xlu0 %v5460, 124
      %v5642 = vpop.permute.xlu0 %5641
      %5643 = vrot.lane.b32.xlu0 %v5461, 124
      %v5644 = vpop.permute.xlu0 %5643
      %5645 = vrot.lane.b32.xlu0 %v5462, 124
      %v5646 = vpop.permute.xlu0 %5645
      %5647 = vrot.lane.b32.xlu0 %v5463, 124
      %v5648 = vpop.permute.xlu0 %5647
      %5649 = vrot.lane.b32.xlu0 %v5464, 124
      %v5650 = vpop.permute.xlu0 %5649
      %5651 = vrot.lane.b32.xlu0 %v5465, 124
      %v5652 = vpop.permute.xlu0 %5651
      %5653 = vrot.lane.b32.xlu0 %v5466, 124
      %v5654 = vpop.permute.xlu0 %5653
      %5655 = vrot.lane.b32.xlu0 %v5467, 124
      %v5656 = vpop.permute.xlu0 %5655
      %5657 = vrot.lane.b32.xlu0 %v5468, 124
      %v5658 = vpop.permute.xlu0 %5657
      %5659 = vrot.lane.b32.xlu0 %v5469, 124
      %v5660 = vpop.permute.xlu0 %5659
      %5661 = vrot.lane.b32.xlu0 %v5470, 124
      %v5662 = vpop.permute.xlu0 %5661
      %v5727 = vmul.f32 %v5407, %v5536
      %v5728 = vmul.f32 %v5408, %v5538
      %v5729 = vmul.f32 %v5409, %v5540
      %v5730 = vmul.f32 %v5410, %v5542
      %v5731 = vmul.f32 %v5411, %v5544
      %v5732 = vmul.f32 %v5412, %v5546
      %v5733 = vmul.f32 %v5413, %v5548
      %v5734 = vmul.f32 %v5414, %v5550
      %v5735 = vmul.f32 %v5415, %v5552
      %v5736 = vmul.f32 %v5416, %v5554
      %v5737 = vmul.f32 %v5417, %v5556
      %v5738 = vmul.f32 %v5418, %v5558
      %v5739 = vmul.f32 %v5419, %v5560
      %v5740 = vmul.f32 %v5420, %v5562
      %v5741 = vmul.f32 %v5421, %v5564
      %v5742 = vmul.f32 %v5422, %v5566
      %v5743 = vmul.f32 %v5423, %v5568
      %v5744 = vmul.f32 %v5424, %v5570
      %v5745 = vmul.f32 %v5425, %v5572
      %v5746 = vmul.f32 %v5426, %v5574
      %v5747 = vmul.f32 %v5427, %v5576
      %v5748 = vmul.f32 %v5428, %v5578
      %v5749 = vmul.f32 %v5429, %v5580
      %v5750 = vmul.f32 %v5430, %v5582
      %v5751 = vmul.f32 %v5431, %v5584
      %v5752 = vmul.f32 %v5432, %v5586
      %v5753 = vmul.f32 %v5433, %v5588
      %v5754 = vmul.f32 %v5434, %v5590
      %v5755 = vmul.f32 %v5435, %v5592
      %v5756 = vmul.f32 %v5436, %v5594
      %v5757 = vmul.f32 %v5437, %v5596
      %v5758 = vmul.f32 %v5438, %v5598
      %v5759 = vmul.f32 %v5439, %v5600
      %v5760 = vmul.f32 %v5440, %v5602
      %v5761 = vmul.f32 %v5441, %v5604
      %v5762 = vmul.f32 %v5442, %v5606
      %v5763 = vmul.f32 %v5443, %v5608
      %v5764 = vmul.f32 %v5444, %v5610
      %v5765 = vmul.f32 %v5445, %v5612
      %v5766 = vmul.f32 %v5446, %v5614
      %v5767 = vmul.f32 %v5447, %v5616
      %v5768 = vmul.f32 %v5448, %v5618
      %v5769 = vmul.f32 %v5449, %v5620
      %v5770 = vmul.f32 %v5450, %v5622
      %v5771 = vmul.f32 %v5451, %v5624
      %v5772 = vmul.f32 %v5452, %v5626
      %v5773 = vmul.f32 %v5453, %v5628
      %v5774 = vmul.f32 %v5454, %v5630
      %v5775 = vmul.f32 %v5455, %v5632
      %v5776 = vmul.f32 %v5456, %v5634
      %v5777 = vmul.f32 %v5457, %v5636
      %v5778 = vmul.f32 %v5458, %v5638
      %v5779 = vmul.f32 %v5459, %v5640
      %v5780 = vmul.f32 %v5460, %v5642
      %v5781 = vmul.f32 %v5461, %v5644
      %v5782 = vmul.f32 %v5462, %v5646
      %v5783 = vmul.f32 %v5463, %v5648
      %v5784 = vmul.f32 %v5464, %v5650
      %v5785 = vmul.f32 %v5465, %v5652
      %v5786 = vmul.f32 %v5466, %v5654
      %v5787 = vmul.f32 %v5467, %v5656
      %v5788 = vmul.f32 %v5468, %v5658
      %v5789 = vmul.f32 %v5469, %v5660
      %v5790 = vmul.f32 %v5470, %v5662
      %vm5791 = vcmask 7168
      %5792 = vst.msk [vmem:[%s302] sm:$0xff] %vm5791, %v5727
      %5793 = vst.msk [vmem:[%s302 + $0x8] sm:$0xff] %vm5791, %v5728
      %5794 = vst.msk [vmem:[%s302 + $0x10] sm:$0xff] %vm5791, %v5729
      %5795 = vst.msk [vmem:[%s302 + $0x18] sm:$0xff] %vm5791, %v5730
      %5796 = vst.msk [vmem:[%s302 + $0x20] sm:$0xff] %vm5791, %v5731
      %5797 = vst.msk [vmem:[%s302 + $0x28] sm:$0xff] %vm5791, %v5732
      %5798 = vst.msk [vmem:[%s302 + $0x30] sm:$0xff] %vm5791, %v5733
      %5799 = vst.msk [vmem:[%s302 + $0x38] sm:$0xff] %vm5791, %v5734
      %5800 = vst.msk [vmem:[%s302 + $0x40] sm:$0xff] %vm5791, %v5735
      %5801 = vst.msk [vmem:[%s302 + $0x48] sm:$0xff] %vm5791, %v5736
      %5802 = vst.msk [vmem:[%s302 + $0x50] sm:$0xff] %vm5791, %v5737
      %5803 = vst.msk [vmem:[%s302 + $0x58] sm:$0xff] %vm5791, %v5738
      %5804 = vst.msk [vmem:[%s302 + $0x60] sm:$0xff] %vm5791, %v5739
      %5805 = vst.msk [vmem:[%s302 + $0x68] sm:$0xff] %vm5791, %v5740
      %5806 = vst.msk [vmem:[%s302 + $0x70] sm:$0xff] %vm5791, %v5741
      %5807 = vst.msk [vmem:[%s302 + $0x78] sm:$0xff] %vm5791, %v5742
      %5808 = vst.msk [vmem:[%s302 + $0x80] sm:$0xff] %vm5791, %v5743
      %5809 = vst.msk [vmem:[%s302 + $0x88] sm:$0xff] %vm5791, %v5744
      %5810 = vst.msk [vmem:[%s302 + $0x90] sm:$0xff] %vm5791, %v5745
      %5811 = vst.msk [vmem:[%s302 + $0x98] sm:$0xff] %vm5791, %v5746
      %5812 = vst.msk [vmem:[%s302 + $0xa0] sm:$0xff] %vm5791, %v5747
      %5813 = vst.msk [vmem:[%s302 + $0xa8] sm:$0xff] %vm5791, %v5748
      %5814 = vst.msk [vmem:[%s302 + $0xb0] sm:$0xff] %vm5791, %v5749
      %5815 = vst.msk [vmem:[%s302 + $0xb8] sm:$0xff] %vm5791, %v5750
      %5816 = vst.msk [vmem:[%s302 + $0xc0] sm:$0xff] %vm5791, %v5751
      %5817 = vst.msk [vmem:[%s302 + $0xc8] sm:$0xff] %vm5791, %v5752
      %5818 = vst.msk [vmem:[%s302 + $0xd0] sm:$0xff] %vm5791, %v5753
      %5819 = vst.msk [vmem:[%s302 + $0xd8] sm:$0xff] %vm5791, %v5754
      %5820 = vst.msk [vmem:[%s302 + $0xe0] sm:$0xff] %vm5791, %v5755
      %5821 = vst.msk [vmem:[%s302 + $0xe8] sm:$0xff] %vm5791, %v5756
      %5822 = vst.msk [vmem:[%s302 + $0xf0] sm:$0xff] %vm5791, %v5757
      %5823 = vst.msk [vmem:[%s302 + $0xf8] sm:$0xff] %vm5791, %v5758
      %5824 = vst.msk [vmem:[%s302 + $0x100] sm:$0xff] %vm5791, %v5759
      %5825 = vst.msk [vmem:[%s302 + $0x108] sm:$0xff] %vm5791, %v5760
      %5826 = vst.msk [vmem:[%s302 + $0x110] sm:$0xff] %vm5791, %v5761
      %5827 = vst.msk [vmem:[%s302 + $0x118] sm:$0xff] %vm5791, %v5762
      %5828 = vst.msk [vmem:[%s302 + $0x120] sm:$0xff] %vm5791, %v5763
      %5829 = vst.msk [vmem:[%s302 + $0x128] sm:$0xff] %vm5791, %v5764
      %5830 = vst.msk [vmem:[%s302 + $0x130] sm:$0xff] %vm5791, %v5765
      %5831 = vst.msk [vmem:[%s302 + $0x138] sm:$0xff] %vm5791, %v5766
      %5832 = vst.msk [vmem:[%s302 + $0x140] sm:$0xff] %vm5791, %v5767
      %5833 = vst.msk [vmem:[%s302 + $0x148] sm:$0xff] %vm5791, %v5768
      %5834 = vst.msk [vmem:[%s302 + $0x150] sm:$0xff] %vm5791, %v5769
      %5835 = vst.msk [vmem:[%s302 + $0x158] sm:$0xff] %vm5791, %v5770
      %5836 = vst.msk [vmem:[%s302 + $0x160] sm:$0xff] %vm5791, %v5771
      %5837 = vst.msk [vmem:[%s302 + $0x168] sm:$0xff] %vm5791, %v5772
      %5838 = vst.msk [vmem:[%s302 + $0x170] sm:$0xff] %vm5791, %v5773
      %5839 = vst.msk [vmem:[%s302 + $0x178] sm:$0xff] %vm5791, %v5774
      %5840 = vst.msk [vmem:[%s302 + $0x180] sm:$0xff] %vm5791, %v5775
      %5841 = vst.msk [vmem:[%s302 + $0x188] sm:$0xff] %vm5791, %v5776
      %5842 = vst.msk [vmem:[%s302 + $0x190] sm:$0xff] %vm5791, %v5777
      %5843 = vst.msk [vmem:[%s302 + $0x198] sm:$0xff] %vm5791, %v5778
      %5844 = vst.msk [vmem:[%s302 + $0x1a0] sm:$0xff] %vm5791, %v5779
      %5845 = vst.msk [vmem:[%s302 + $0x1a8] sm:$0xff] %vm5791, %v5780
      %5846 = vst.msk [vmem:[%s302 + $0x1b0] sm:$0xff] %vm5791, %v5781
      %5847 = vst.msk [vmem:[%s302 + $0x1b8] sm:$0xff] %vm5791, %v5782
      %5848 = vst.msk [vmem:[%s302 + $0x1c0] sm:$0xff] %vm5791, %v5783
      %5849 = vst.msk [vmem:[%s302 + $0x1c8] sm:$0xff] %vm5791, %v5784
      %5850 = vst.msk [vmem:[%s302 + $0x1d0] sm:$0xff] %vm5791, %v5785
      %5851 = vst.msk [vmem:[%s302 + $0x1d8] sm:$0xff] %vm5791, %v5786
      %5852 = vst.msk [vmem:[%s302 + $0x1e0] sm:$0xff] %vm5791, %v5787
      %5853 = vst.msk [vmem:[%s302 + $0x1e8] sm:$0xff] %vm5791, %v5788
      %5854 = vst.msk [vmem:[%s302 + $0x1f0] sm:$0xff] %vm5791, %v5789
      %5855 = vst.msk [vmem:[%s302 + $0x1f8] sm:$0xff] %vm5791, %v5790
      %s5856 = smul.u32 64, %s18
      %p5857 = scmp.lt.s32.totalorder %s5856, 127
      %s5858 = scalar_select %p5857, %s5856, 127
      %s5859 = smul.addr %s5858, 8
      %s5860 = scalar_lea.vmem %s7, %s5859
      // Predicated region
      $region49: #{spinsep_nnb_forward.1} parent=47 // pred_check
        %p5861 = pneg %p193
      $region50: #{spinsep_nnb_forward.1} parent=47 // pred_check_branch
        %5863 = sbr.rel (%p5861) target = $region52
      $region51: #{spinsep_nnb_forward.1} parent=47 // pred_region
        %s5864 = smul.u32 64, %s18
      $region52: #{spinsep_nnb_forward.1} parent=47 // pred_fallthru
        _
    $region48: #{spinsep_nnb_forward.1} parent=5 // pred_fallthru
      _
    %p5865 = scmp.le.s32.totalorder 2, %s13
    // Predicated region
    $region53: #{spinsep_nnb_forward.1} parent=5 // pred_check
      %p5866 = pneg %p5865
    $region54: #{spinsep_nnb_forward.1} parent=5 // pred_check_branch
      %5868 = sbr.rel (%p5866) target = $region56
    $region55: #{spinsep_nnb_forward.1} parent=5 // pred_region
      %s5869 = ssub.s32 %s13, 2
      // Predicated region
      $region57: #{spinsep_nnb_forward.1} parent=55 // pred_check
        %p5870 = pneg %p199
      $region58: #{spinsep_nnb_forward.1} parent=55 // pred_check_branch
        %5872 = sbr.rel (%p5870) target = $region60
      $region59: #{spinsep_nnb_forward.1} parent=55 // pred_region
        %s5873 = smul.u32 64, %s19
        %p5874 = scmp.lt.s32.totalorder %s5873, 127
        %s5875 = scalar_select %p5874, %s5873, 127
        %s5876 = smul.addr %s5875, 8
        %s5877 = scalar_lea.vmem %s7, %s5876
      $region60: #{spinsep_nnb_forward.1} parent=55 // pred_fallthru
        _
    $region56: #{spinsep_nnb_forward.1} parent=5 // pred_fallthru
      _
  $region6: #{spinsep_nnb_forward.1} parent=0 // loop_footer
    %s17 = sadd.s32 1, %s13
  $region7: #{spinsep_nnb_forward.1} parent=0 // loop_footer_branch
    %12 = sbr.rel target = $region3
  $region8: #{spinsep_nnb_forward.1} parent=0 // loop_exit
    _

</llo_original>
